<compile_context>
chip_gen: v6e
topology: v6e:2x2x1
jax: 0.10.0
libtpu: 0.0.40
codegen_flags: <defaults>
</compile_context>

<pallas_src>
import jax
import jax.numpy as jnp
from jax import lax
from jax.experimental import pallas as pl
from jax.experimental.pallas import tpu as pltpu

BN_EPS = 1e-3
MAP_RECEPTIVE_KSIZE = {3: 1, 5: 2, 7: 3, 9: 4, 11: 5, 13: 6, 15: 7, 17: 8}


def eesp_dilation_rates(k, r_lim):
    k_sizes = []
    for i in range(k):
        ks = 3 + 2 * i
        ks = ks if ks <= r_lim else 3
        k_sizes.append(ks)
    k_sizes.sort()
    return [MAP_RECEPTIVE_KSIZE[ks] for ks in k_sizes]


# ----------------------------------------------------------------------------
# Parameter construction (PyTorch-shaped), deterministic.
# ----------------------------------------------------------------------------
def init_torch_params(key, nIn, nOut, k):
    n = nOut // k
    cin_g = nIn // k
    ks = jax.random.split(key, 8 + k)
    p = {}
    p['w_proj'] = jax.random.normal(ks[0], (n, cin_g, 1, 1), jnp.float32) * 0.2
    p['w_dw'] = [jax.random.normal(ks[1 + i], (n, 1, 3, 3), jnp.float32) * 0.2
                 for i in range(k)]
    p['w_exp'] = jax.random.normal(ks[1 + k], (nOut, nOut // k, 1, 1), jnp.float32) * 0.2

    def bn_params(kk, c):
        k1, k2, k3, k4 = jax.random.split(kk, 4)
        gamma = jax.random.uniform(k1, (c,), jnp.float32, 0.5, 1.5)
        beta = jax.random.normal(k2, (c,), jnp.float32) * 0.1
        mean = jax.random.normal(k3, (c,), jnp.float32) * 0.1
        var = jax.random.uniform(k4, (c,), jnp.float32, 0.5, 1.5)
        return gamma, beta, mean, var

    p['bn_proj'] = bn_params(ks[2 + k], n)
    p['bn_cat'] = bn_params(ks[3 + k], nOut)
    p['bn_exp'] = bn_params(ks[4 + k], nOut)
    p['a_proj'] = jax.random.uniform(ks[5 + k], (n,), jnp.float32, 0.1, 0.4)
    p['a_cat'] = jax.random.uniform(ks[6 + k], (nOut,), jnp.float32, 0.1, 0.4)
    p['a_mod'] = jax.random.uniform(ks[7 + k], (nOut,), jnp.float32, 0.1, 0.4)
    return p


def pack_kernel_params(p, nIn, nOut, k, W):
    """PyTorch-shaped grouped weights -> lane-dense, W-packed kernel tensors."""
    n = nOut // k
    assert nIn % k == 0 and nOut % k == 0 and n % k == 0, \
        "grouped 1x1 conv requires divisibility"
    cin_g = nIn // k
    out_per_g = n // k

    # grouped 1x1 proj (nIn -> n, groups=k): dense (nIn, n) block-diagonal.
    wproj_raw = p['w_proj'][:, :, 0, 0]                     # (n, cin_g)
    w_proj = jnp.zeros((nIn, n), jnp.float32)
    for o in range(n):
        g = o // out_per_g
        w_proj = w_proj.at[g * cin_g:(g + 1) * cin_g, o].set(wproj_raw[o])
    # W-packed: (W*nIn, W*n), lane-dense input and output.
    eye_w = jnp.eye(W, dtype=jnp.float32)
    w_proj_big = jnp.kron(eye_w, w_proj)

    # grouped 1x1 expansion (nOut -> nOut, groups=k): dense (nOut, nOut).
    gin = nOut // k
    wexp_raw = p['w_exp'][:, :, 0, 0]                        # (nOut, gin)
    w_exp = jnp.zeros((nOut, nOut), jnp.float32)
    for o in range(nOut):
        g = o // gin
        w_exp = w_exp.at[g * gin:(g + 1) * gin, o].set(wexp_raw[o])
    # Branch-major stacked + W-packed: (k*W*n, W*nOut); row block g is the
    # W-replicated (n, nOut) slice of the expansion that reads branch g.
    w_exp_big = jnp.concatenate(
        [jnp.kron(eye_w, w_exp[g * n:(g + 1) * n, :]) for g in range(k)], axis=0)

    # depthwise 3x3 taps, lane-tiled across W: (k, 9, W*n).
    w_dw = jnp.stack(
        [jnp.tile(jnp.transpose(p['w_dw'][g][:, 0], (1, 2, 0)).reshape(9, n), (1, W))
         for g in range(k)], axis=0)

    def fold_bn(bn):
        gamma, beta, mean, var = bn
        s = gamma / jnp.sqrt(var + BN_EPS)
        return s, beta - mean * s

    s_p, b_p = fold_bn(p['bn_proj'])     # (n,)
    s_c, b_c = fold_bn(p['bn_cat'])      # (nOut,)
    s_e, b_e = fold_bn(p['bn_exp'])      # (nOut,)

    def tile_w(v):                        # (c,) -> (W*c,) with lane = w*c + ch
        return jnp.tile(v, W)

    def cat_rows(v):                      # (nOut,) -> (k, W*n), row g = branch g
        return jnp.stack([tile_w(v[g * n:(g + 1) * n]) for g in range(k)], axis=0)

    return dict(
        w_proj=w_proj_big,
        s_proj=tile_w(s_p).reshape(1, W * n),
        b_proj=tile_w(b_p).reshape(1, W * n),
        a_proj=tile_w(p['a_proj']).reshape(1, W * n),
        w_dw=w_dw,
        s_cat=cat_rows(s_c), b_cat=cat_rows(b_c), a_cat=cat_rows(p['a_cat']),
        w_exp=w_exp_big,
        s_exp=tile_w(s_e).reshape(1, W * nOut),
        b_exp=tile_w(b_e).reshape(1, W * nOut),
        a_mod=tile_w(p['a_mod']).reshape(1, W * nOut),
    )


# ----------------------------------------------------------------------------
# Pallas kernel
# ----------------------------------------------------------------------------
def build_eesp_kernel(Nb, H, W, nIn, nOut, k, d_rates, add_residual,
                      mxu_dtype, precision):
    n = nOut // k
    pad = max(d_rates)
    Hp = H + 2 * pad
    WPn = (W + 2 * pad) * n            # padded lane width of the scratch
    Ln = W * n                         # lane width of one branch / of p
    Lo = W * nOut                      # lane width of the output
    R = Nb * H                         # matmul row count per grid step

    # branches grouped by distinct dilation (d_rates is sorted -> contiguous).
    d_groups = []
    for g, d in enumerate(d_rates):
        if d_groups and d_groups[-1][0] == d:
            d_groups[-1][1].append(g)
        else:
            d_groups.append((d, [g]))

    def kernel(x_ref, wproj_ref, sproj_ref, bproj_ref, aproj_ref,
               wdw_ref, scat_ref, bcat_ref, acat_ref,
               wexp_ref, sexp_ref, bexp_ref, amod_ref,
               out_ref, pad_scr):
        # ---- REDUCE: grouped 1x1 proj as a W-packed block-diagonal matmul
        #      (lane-dense input and output) + folded BN + PReLU.
        x = x_ref[...].reshape(R, W * nIn)               # leading-dim merge (free)
        p = jnp.dot(x.astype(mxu_dtype), wproj_ref[...],
                    preferred_element_type=jnp.float32, precision=precision)
        p = p * sproj_ref[...] + bproj_ref[...]
        p = jnp.where(p >= 0.0, p, aproj_ref[...] * p)

        # ---- Zero ONLY the halo border of the padded scratch (interior is fully
        #      overwritten every grid step; never program_id-gated: megacore-safe).
        zr = jnp.zeros((Nb, pad, WPn), jnp.float32)
        pad_scr[:, :pad, :] = zr
        pad_scr[:, pad + H:, :] = zr
        zc = jnp.zeros((Nb, Hp, pad * n), jnp.float32)
        pad_scr[:, :, :pad * n] = zc
        pad_scr[:, :, pad * n + Ln:] = zc
        pad_scr[:, pad:pad + H, pad * n:pad * n + Ln] = p.reshape(Nb, H, Ln)

        # ---- SPLIT + TRANSFORM: dilated depthwise 3x3, all branches, lane-dense.
        #      Each (tap, distinct-dilation) window is loaded once and FMA'd into
        #      every branch of that dilation group (no per-tap concatenates).
        br = [jnp.zeros((Nb, H, Ln), jnp.float32) for _ in range(k)]
        for t in range(9):
            ti, tj = t // 3, t % 3
            for d, gids in d_groups:
                r0 = pad + (ti - 1) * d
                c0 = (pad + (tj - 1) * d) * n
                win = pad_scr[:, r0:r0 + H, c0:c0 + Ln]   # (Nb, H, 128) dense
                for g in gids:
                    br[g] = br[g] + win * wdw_ref[g, t]   # (W*n,) lane weights

        # ---- Hierarchical feature fusion (running prefix sum) fused with the
        #      folded br_after_cat BN affine + PReLU, still lane-dense.
        ys = []
        acc = None
        for g in range(k):
            acc = br[g] if acc is None else acc + br[g]
            yg = acc * scat_ref[g] + bcat_ref[g]
            yg = jnp.where(yg >= 0.0, yg, acat_ref[g] * yg)
            ys.append(yg.reshape(R, Ln))                  # leading-dim merge only
        y_cat = jnp.concatenate(ys, axis=-1)              # (R, k*W*n), 128-aligned

        # ---- MERGE: grouped 1x1 expansion as one W-packed block-diagonal matmul;
        #      its output is already in the lane-dense NHWC row-major layout.
        e = jnp.dot(y_cat.astype(mxu_dtype), wexp_ref[...],
                    preferred_element_type=jnp.float32, precision=precision)
        e = e * sexp_ref[...] + bexp_ref[...]             # conv_1x1_exp BN
        if add_residual:
            e = e + x                                     # f32 residual, nIn == nOut
        e = jnp.where(e >= 0.0, e, amod_ref[...] * e)     # module_act PReLU
        out_ref[...] = e.reshape(Nb, H, Lo).astype(out_ref.dtype)  # dense store

    return kernel, pad


def eesp_forward_pallas(x_nchw, kp, *, k, d_rates, add_residual,
                        images_per_block=1, mxu_precision="bf16"):
    N, nIn, H, W = x_nchw.shape
    nOut = kp['s_exp'].shape[-1] // W
    n = nOut // k
    Nb = images_per_block
    assert N % Nb == 0, "images_per_block must divide the batch"

    if mxu_precision == "bf16":          # default: bf16 operands, f32 accumulation
        mxu_dtype, precision = jnp.bfloat16, None
    elif mxu_precision == "f32":         # numerical-validation path only
        mxu_dtype, precision = jnp.float32, lax.Precision.HIGHEST
    else:
        raise ValueError("mxu_precision must be 'bf16' or 'f32'")

    # Wrapper-side layout plumbing: NCHW -> NHWC -> lane-dense (N, H, W*C) slabs
    # (pure metadata reshape after the transpose; dense HBM<->VMEM DMA).
    x_rows = jnp.transpose(x_nchw, (0, 2, 3, 1)).reshape(N, H, W * nIn)
    x_rows = x_rows.astype(jnp.float32)
    w_proj = kp['w_proj'].astype(mxu_dtype)
    w_exp = kp['w_exp'].astype(mxu_dtype)

    kernel, pad = build_eesp_kernel(Nb, H, W, nIn, nOut, k, d_rates,
                                    add_residual, mxu_dtype, precision)

    def full_spec(a):
        nd = a.ndim
        return pl.BlockSpec(a.shape, lambda b, _nd=nd: (0,) * _nd)

    args = (x_rows, w_proj, kp['s_proj'], kp['b_proj'], kp['a_proj'],
            kp['w_dw'], kp['s_cat'], kp['b_cat'], kp['a_cat'],
            w_exp, kp['s_exp'], kp['b_exp'], kp['a_mod'])
    in_specs = [pl.BlockSpec((Nb, H, W * nIn), lambda b: (b, 0, 0))] + \
               [full_spec(a) for a in args[1:]]

    out = pl.pallas_call(
        kernel,
        out_shape=jax.ShapeDtypeStruct((N, H, W * nOut), jnp.float32),
        grid_spec=pltpu.PrefetchScalarGridSpec(
            num_scalar_prefetch=0,
            grid=(N // Nb,),
            in_specs=in_specs,
            out_specs=pl.BlockSpec((Nb, H, W * nOut), lambda b: (b, 0, 0)),
            scratch_shapes=[
                pltpu.VMEM((Nb, H + 2 * pad, (W + 2 * pad) * n), jnp.float32)],
        ),
        compiler_params=pltpu.CompilerParams(
            dimension_semantics=("parallel",),      # batch steps -> both v7x TCs
            vmem_limit_bytes=48 * 1024 * 1024),
    )(*args)

    return jnp.transpose(out.reshape(N, H, W, nOut), (0, 3, 1, 2))  # back to NCHW


# ----------------------------------------------------------------------------
# Pure-JAX reference (NCHW, mirrors the PyTorch module with lax convs)
# ----------------------------------------------------------------------------
def _prelu(x, a):
    return jnp.where(x >= 0.0, x, a.reshape(1, -1, 1, 1) * x)


def _bn(x, gamma, beta, mean, var):
    s = gamma / jnp.sqrt(var + BN_EPS)
    b = beta - mean * s
    return x * s.reshape(1, -1, 1, 1) + b.reshape(1, -1, 1, 1)


def eesp_reference(x, p, *, k, d_rates, stride=1):
    dn = ('NCHW', 'OIHW', 'NCHW')
    prec = lax.Precision.HIGHEST
    y = lax.conv_general_dilated(x, p['w_proj'], (1, 1), 'VALID',
                                 feature_group_count=k, dimension_numbers=dn,
                                 precision=prec)
    y = _prelu(_bn(y, *p['bn_proj']), p['a_proj'])
    n = y.shape[1]
    prev, outs = None, []
    for i, d in enumerate(d_rates):
        z = lax.conv_general_dilated(y, p['w_dw'][i], (stride, stride),
                                     [(d, d), (d, d)], rhs_dilation=(d, d),
                                     feature_group_count=n, dimension_numbers=dn,
                                     precision=prec)
        if prev is not None:
            z = z + prev
        prev = z
        outs.append(z)
    cat = jnp.concatenate(outs, axis=1)
    cat = _prelu(_bn(cat, *p['bn_cat']), p['a_cat'])
    e = lax.conv_general_dilated(cat, p['w_exp'], (1, 1), 'VALID',
                                 feature_group_count=k, dimension_numbers=dn,
                                 precision=prec)
    e = _bn(e, *p['bn_exp'])
    if e.shape == x.shape:
        e = e + x
    return _prelu(e, p['a_mod'])


# ----------------------------------------------------------------------------
if __name__ == "__main__":
    N, nIn, H, W = 2, 32, 16, 16
    nOut, k, r_lim, stride = 32, 4, 7, 1
    d_rates = eesp_dilation_rates(k, r_lim)              # [1, 1, 2, 3]

    key = jax.random.PRNGKey(0)
    kx, kparams = jax.random.split(key)
    x = jax.random.normal(kx, (N, nIn, H, W), jnp.float32)   # NCHW, like PyTorch

    torch_params = init_torch_params(kparams, nIn, nOut, k)
    kernel_params = pack_kernel_params(torch_params, nIn, nOut, k, W)
    add_residual = (stride == 1 and nIn == nOut)

    ref = eesp_reference(x, torch_params, k=k, d_rates=d_rates, stride=stride)

    # Default (performance) path: bf16 MXU operands, one image per grid step ->
    # two 'parallel' grid steps feed both v7x TensorCores.  Loose tolerance:
    # bf16 operand rounding of the two 1x1 matmul stages vs the f32 reference.
    out_bf = eesp_forward_pallas(x, kernel_params, k=k, d_rates=d_rates,
                                 add_residual=add_residual,
                                 images_per_block=1, mxu_precision="bf16")
    out_bf = jax.block_until_ready(out_bf)
    assert out_bf.shape == ref.shape == (N, nOut, H, W)
    max_err_bf = float(jnp.max(jnp.abs(out_bf - ref)))
    mean_err_bf = float(jnp.mean(jnp.abs(out_bf - ref)))
    assert max_err_bf < 0.35, f"bf16 max abs err {max_err_bf}"
    assert mean_err_bf < 0.05, f"bf16 mean abs err {mean_err_bf}"

    # Numerical-validation path: f32 operands / HIGHEST precision, and a
    # multi-image block (images_per_block=2) to exercise the batched scratch
    # (the configuration one would pick on single-TC v5e/v6e).
    out_f32 = eesp_forward_pallas(x, kernel_params, k=k, d_rates=d_rates,
                                  add_residual=add_residual,
                                  images_per_block=2, mxu_precision="f32")
    out_f32 = jax.block_until_ready(out_f32)
    max_err = float(jnp.max(jnp.abs(out_f32 - ref)))
    assert max_err < 1e-3, f"f32 max abs err {max_err}"

    print("KERNEL_OK")
</pallas_src>

<mosaic_0001>
module attributes {stable_mosaic.version = 11 : i64} {
  func.func @kernel(%arg0: i32, %arg1: memref<1x16x512xf32, #tpu.memory_space<vmem>>, %arg2: memref<512x128xbf16, #tpu.memory_space<vmem>>, %arg3: memref<1x128xf32, #tpu.memory_space<vmem>>, %arg4: memref<1x128xf32, #tpu.memory_space<vmem>>, %arg5: memref<1x128xf32, #tpu.memory_space<vmem>>, %arg6: memref<4x9x128xf32, #tpu.memory_space<vmem>>, %arg7: memref<4x128xf32, #tpu.memory_space<vmem>>, %arg8: memref<4x128xf32, #tpu.memory_space<vmem>>, %arg9: memref<4x128xf32, #tpu.memory_space<vmem>>, %arg10: memref<512x512xbf16, #tpu.memory_space<vmem>>, %arg11: memref<1x512xf32, #tpu.memory_space<vmem>>, %arg12: memref<1x512xf32, #tpu.memory_space<vmem>>, %arg13: memref<1x512xf32, #tpu.memory_space<vmem>>, %arg14: memref<1x16x512xf32, #tpu.memory_space<vmem>>, %arg15: memref<1x22x176xf32, #tpu.memory_space<vmem>>) attributes {dimension_semantics = [#tpu.dimension_semantics<parallel>], iteration_bounds = array<i64: 2>, scalar_prefetch = 0 : i64, scratch_operands = 1 : i64, tpu.core_type = #tpu.core_type<tc>, window_params = [{transform_indices = @transform_0, window_bounds = array<i64: 1, 16, 512>}, {pipeline_mode = #tpu.pipeline_mode<synchronous>, transform_indices = @transform_1, window_bounds = array<i64: 512, 128>}, {pipeline_mode = #tpu.pipeline_mode<synchronous>, transform_indices = @transform_2, window_bounds = array<i64: 1, 128>}, {pipeline_mode = #tpu.pipeline_mode<synchronous>, transform_indices = @transform_3, window_bounds = array<i64: 1, 128>}, {pipeline_mode = #tpu.pipeline_mode<synchronous>, transform_indices = @transform_4, window_bounds = array<i64: 1, 128>}, {pipeline_mode = #tpu.pipeline_mode<synchronous>, transform_indices = @transform_5, window_bounds = array<i64: 4, 9, 128>}, {pipeline_mode = #tpu.pipeline_mode<synchronous>, transform_indices = @transform_6, window_bounds = array<i64: 4, 128>}, {pipeline_mode = #tpu.pipeline_mode<synchronous>, transform_indices = @transform_7, window_bounds = array<i64: 4, 128>}, {pipeline_mode = #tpu.pipeline_mode<synchronous>, transform_indices = @transform_8, window_bounds = array<i64: 4, 128>}, {pipeline_mode = #tpu.pipeline_mode<synchronous>, transform_indices = @transform_9, window_bounds = array<i64: 512, 512>}, {pipeline_mode = #tpu.pipeline_mode<synchronous>, transform_indices = @transform_10, window_bounds = array<i64: 1, 512>}, {pipeline_mode = #tpu.pipeline_mode<synchronous>, transform_indices = @transform_11, window_bounds = array<i64: 1, 512>}, {pipeline_mode = #tpu.pipeline_mode<synchronous>, transform_indices = @transform_12, window_bounds = array<i64: 1, 512>}, {transform_indices = @transform_13, window_bounds = array<i64: 1, 16, 512>}]} {
    %c0 = arith.constant 0 : index
    %c0_0 = arith.constant 0 : index
    %c0_1 = arith.constant 0 : index
    %0 = vector.load %arg1[%c0, %c0_0, %c0_1] : memref<1x16x512xf32, #tpu.memory_space<vmem>>, vector<1x16x512xf32>
    %1 = vector.shape_cast %0 : vector<1x16x512xf32> to vector<16x512xf32>
    %2 = arith.truncf %1 : vector<16x512xf32> to vector<16x512xbf16>
    %c0_2 = arith.constant 0 : index
    %c0_3 = arith.constant 0 : index
    %3 = vector.load %arg2[%c0_2, %c0_3] : memref<512x128xbf16, #tpu.memory_space<vmem>>, vector<512x128xbf16>
    %cst = arith.constant dense<0.000000e+00> : vector<16x128xf32>
    %4 = tpu.matmul %2, %3, %cst {dimension_numbers = #tpu.dot_dimension_numbers<[1], [0], [0], [1], [0, 0, 1, 1], [], []>} : vector<16x512xbf16>, vector<512x128xbf16>, vector<16x128xf32> -> vector<16x128xf32>
    %c0_4 = arith.constant 0 : index
    %c0_5 = arith.constant 0 : index
    %5 = vector.load %arg3[%c0_4, %c0_5] : memref<1x128xf32, #tpu.memory_space<vmem>>, vector<1x128xf32>
    %6 = vector.broadcast %5 : vector<1x128xf32> to vector<16x128xf32>
    %7 = arith.mulf %4, %6 : vector<16x128xf32>
    %c0_6 = arith.constant 0 : index
    %c0_7 = arith.constant 0 : index
    %8 = vector.load %arg4[%c0_6, %c0_7] : memref<1x128xf32, #tpu.memory_space<vmem>>, vector<1x128xf32>
    %9 = vector.broadcast %8 : vector<1x128xf32> to vector<16x128xf32>
    %10 = arith.addf %7, %9 : vector<16x128xf32>
    %cst_8 = arith.constant 0.000000e+00 : f32
    %11 = vector.broadcast %cst_8 : f32 to vector<16x128xf32>
    %12 = arith.cmpf oge, %10, %11 : vector<16x128xf32>
    %c0_9 = arith.constant 0 : index
    %c0_10 = arith.constant 0 : index
    %13 = vector.load %arg5[%c0_9, %c0_10] : memref<1x128xf32, #tpu.memory_space<vmem>>, vector<1x128xf32>
    %14 = vector.broadcast %13 : vector<1x128xf32> to vector<16x128xf32>
    %15 = arith.mulf %14, %10 : vector<16x128xf32>
    %16 = arith.select %12, %10, %15 : vector<16x128xi1>, vector<16x128xf32>
    %cst_11 = arith.constant 0.000000e+00 : f32
    %17 = vector.broadcast %cst_11 : f32 to vector<1x3x176xf32>
    %c0_12 = arith.constant 0 : index
    %c0_13 = arith.constant 0 : index
    %c0_14 = arith.constant 0 : index
    %18 = vector.load %arg15[%c0_12, %c0_13, %c0_14] : memref<1x22x176xf32, #tpu.memory_space<vmem>>, vector<1x3x176xf32>
    tpu.vector_store %arg15[%c0_12, %c0_13, %c0_14], %17 {strides = array<i32>} : memref<1x22x176xf32, #tpu.memory_space<vmem>>, vector<1x3x176xf32>,
    %c0_15 = arith.constant 0 : index
    %c19 = arith.constant 19 : index
    %c0_16 = arith.constant 0 : index
    %19 = vector.load %arg15[%c0_15, %c19, %c0_16] : memref<1x22x176xf32, #tpu.memory_space<vmem>>, vector<1x3x176xf32>
    tpu.vector_store %arg15[%c0_15, %c19, %c0_16], %17 {strides = array<i32>} : memref<1x22x176xf32, #tpu.memory_space<vmem>>, vector<1x3x176xf32>,
    %cst_17 = arith.constant 0.000000e+00 : f32
    %20 = vector.broadcast %cst_17 : f32 to vector<1x22x24xf32>
    %c0_18 = arith.constant 0 : index
    %c0_19 = arith.constant 0 : index
    %c0_20 = arith.constant 0 : index
    %21 = vector.load %arg15[%c0_18, %c0_19, %c0_20] : memref<1x22x176xf32, #tpu.memory_space<vmem>>, vector<1x22x24xf32>
    tpu.vector_store %arg15[%c0_18, %c0_19, %c0_20], %20 {strides = array<i32>} : memref<1x22x176xf32, #tpu.memory_space<vmem>>, vector<1x22x24xf32>,
    %c0_21 = arith.constant 0 : index
    %c0_22 = arith.constant 0 : index
    %c152 = arith.constant 152 : index
    %22 = vector.load %arg15[%c0_21, %c0_22, %c152] : memref<1x22x176xf32, #tpu.memory_space<vmem>>, vector<1x22x24xf32>
    tpu.vector_store %arg15[%c0_21, %c0_22, %c152], %20 {strides = array<i32>} : memref<1x22x176xf32, #tpu.memory_space<vmem>>, vector<1x22x24xf32>,
    %23 = vector.shape_cast %16 : vector<16x128xf32> to vector<1x16x128xf32>
    %c0_23 = arith.constant 0 : index
    %c3 = arith.constant 3 : index
    %c24 = arith.constant 24 : index
    %24 = vector.load %arg15[%c0_23, %c3, %c24] : memref<1x22x176xf32, #tpu.memory_space<vmem>>, vector<1x16x128xf32>
    tpu.vector_store %arg15[%c0_23, %c3, %c24], %23 {strides = array<i32>} : memref<1x22x176xf32, #tpu.memory_space<vmem>>, vector<1x16x128xf32>,
    %cst_24 = arith.constant 0.000000e+00 : f32
    %25 = vector.broadcast %cst_24 : f32 to vector<1x16x128xf32>
    %cst_25 = arith.constant 0.000000e+00 : f32
    %26 = vector.broadcast %cst_25 : f32 to vector<1x16x128xf32>
    %cst_26 = arith.constant 0.000000e+00 : f32
    %27 = vector.broadcast %cst_26 : f32 to vector<1x16x128xf32>
    %cst_27 = arith.constant 0.000000e+00 : f32
    %28 = vector.broadcast %cst_27 : f32 to vector<1x16x128xf32>
    %c0_28 = arith.constant 0 : index
    %c2 = arith.constant 2 : index
    %c16 = arith.constant 16 : index
    %29 = vector.load %arg15[%c0_28, %c2, %c16] : memref<1x22x176xf32, #tpu.memory_space<vmem>>, vector<1x16x128xf32>
    %c0_29 = arith.constant 0 : index
    %c0_30 = arith.constant 0 : index
    %c0_31 = arith.constant 0 : index
    %30 = vector.load %arg6[%c0_29, %c0_30, %c0_31] : memref<4x9x128xf32, #tpu.memory_space<vmem>>, vector<1x1x128xf32>
    %31 = vector.shape_cast %30 : vector<1x1x128xf32> to vector<128xf32>
    %32 = vector.shape_cast %31 : vector<128xf32> to vector<1x1x128xf32>
    %33 = vector.broadcast %32 : vector<1x1x128xf32> to vector<1x16x128xf32>
    %34 = arith.mulf %29, %33 : vector<1x16x128xf32>
    %35 = arith.addf %25, %34 : vector<1x16x128xf32>
    %c1 = arith.constant 1 : index
    %c0_32 = arith.constant 0 : index
    %c0_33 = arith.constant 0 : index
    %36 = vector.load %arg6[%c1, %c0_32, %c0_33] : memref<4x9x128xf32, #tpu.memory_space<vmem>>, vector<1x1x128xf32>
    %37 = vector.shape_cast %36 : vector<1x1x128xf32> to vector<128xf32>
    %38 = vector.shape_cast %37 : vector<128xf32> to vector<1x1x128xf32>
    %39 = vector.broadcast %38 : vector<1x1x128xf32> to vector<1x16x128xf32>
    %40 = arith.mulf %29, %39 : vector<1x16x128xf32>
    %41 = arith.addf %26, %40 : vector<1x16x128xf32>
    %c0_34 = arith.constant 0 : index
    %c1_35 = arith.constant 1 : index
    %c8 = arith.constant 8 : index
    %42 = vector.load %arg15[%c0_34, %c1_35, %c8] : memref<1x22x176xf32, #tpu.memory_space<vmem>>, vector<1x16x128xf32>
    %c2_36 = arith.constant 2 : index
    %c0_37 = arith.constant 0 : index
    %c0_38 = arith.constant 0 : index
    %43 = vector.load %arg6[%c2_36, %c0_37, %c0_38] : memref<4x9x128xf32, #tpu.memory_space<vmem>>, vector<1x1x128xf32>
    %44 = vector.shape_cast %43 : vector<1x1x128xf32> to vector<128xf32>
    %45 = vector.shape_cast %44 : vector<128xf32> to vector<1x1x128xf32>
    %46 = vector.broadcast %45 : vector<1x1x128xf32> to vector<1x16x128xf32>
    %47 = arith.mulf %42, %46 : vector<1x16x128xf32>
    %48 = arith.addf %27, %47 : vector<1x16x128xf32>
    %c0_39 = arith.constant 0 : index
    %c0_40 = arith.constant 0 : index
    %c0_41 = arith.constant 0 : index
    %49 = vector.load %arg15[%c0_39, %c0_40, %c0_41] : memref<1x22x176xf32, #tpu.memory_space<vmem>>, vector<1x16x128xf32>
    %c3_42 = arith.constant 3 : index
    %c0_43 = arith.constant 0 : index
    %c0_44 = arith.constant 0 : index
    %50 = vector.load %arg6[%c3_42, %c0_43, %c0_44] : memref<4x9x128xf32, #tpu.memory_space<vmem>>, vector<1x1x128xf32>
    %51 = vector.shape_cast %50 : vector<1x1x128xf32> to vector<128xf32>
    %52 = vector.shape_cast %51 : vector<128xf32> to vector<1x1x128xf32>
    %53 = vector.broadcast %52 : vector<1x1x128xf32> to vector<1x16x128xf32>
    %54 = arith.mulf %49, %53 : vector<1x16x128xf32>
    %55 = arith.addf %28, %54 : vector<1x16x128xf32>
    %c0_45 = arith.constant 0 : index
    %c2_46 = arith.constant 2 : index
    %c24_47 = arith.constant 24 : index
    %56 = vector.load %arg15[%c0_45, %c2_46, %c24_47] : memref<1x22x176xf32, #tpu.memory_space<vmem>>, vector<1x16x128xf32>
    %c0_48 = arith.constant 0 : index
    %c1_49 = arith.constant 1 : index
    %c0_50 = arith.constant 0 : index
    %57 = vector.load %arg6[%c0_48, %c1_49, %c0_50] : memref<4x9x128xf32, #tpu.memory_space<vmem>>, vector<1x1x128xf32>
    %58 = vector.shape_cast %57 : vector<1x1x128xf32> to vector<128xf32>
    %59 = vector.shape_cast %58 : vector<128xf32> to vector<1x1x128xf32>
    %60 = vector.broadcast %59 : vector<1x1x128xf32> to vector<1x16x128xf32>
    %61 = arith.mulf %56, %60 : vector<1x16x128xf32>
    %62 = arith.addf %35, %61 : vector<1x16x128xf32>
    %c1_51 = arith.constant 1 : index
    %c1_52 = arith.constant 1 : index
    %c0_53 = arith.constant 0 : index
    %63 = vector.load %arg6[%c1_51, %c1_52, %c0_53] : memref<4x9x128xf32, #tpu.memory_space<vmem>>, vector<1x1x128xf32>
    %64 = vector.shape_cast %63 : vector<1x1x128xf32> to vector<128xf32>
    %65 = vector.shape_cast %64 : vector<128xf32> to vector<1x1x128xf32>
    %66 = vector.broadcast %65 : vector<1x1x128xf32> to vector<1x16x128xf32>
    %67 = arith.mulf %56, %66 : vector<1x16x128xf32>
    %68 = arith.addf %41, %67 : vector<1x16x128xf32>
    %c0_54 = arith.constant 0 : index
    %c1_55 = arith.constant 1 : index
    %c24_56 = arith.constant 24 : index
    %69 = vector.load %arg15[%c0_54, %c1_55, %c24_56] : memref<1x22x176xf32, #tpu.memory_space<vmem>>, vector<1x16x128xf32>
    %c2_57 = arith.constant 2 : index
    %c1_58 = arith.constant 1 : index
    %c0_59 = arith.constant 0 : index
    %70 = vector.load %arg6[%c2_57, %c1_58, %c0_59] : memref<4x9x128xf32, #tpu.memory_space<vmem>>, vector<1x1x128xf32>
    %71 = vector.shape_cast %70 : vector<1x1x128xf32> to vector<128xf32>
    %72 = vector.shape_cast %71 : vector<128xf32> to vector<1x1x128xf32>
    %73 = vector.broadcast %72 : vector<1x1x128xf32> to vector<1x16x128xf32>
    %74 = arith.mulf %69, %73 : vector<1x16x128xf32>
    %75 = arith.addf %48, %74 : vector<1x16x128xf32>
    %c0_60 = arith.constant 0 : index
    %c0_61 = arith.constant 0 : index
    %c24_62 = arith.constant 24 : index
    %76 = vector.load %arg15[%c0_60, %c0_61, %c24_62] : memref<1x22x176xf32, #tpu.memory_space<vmem>>, vector<1x16x128xf32>
    %c3_63 = arith.constant 3 : index
    %c1_64 = arith.constant 1 : index
    %c0_65 = arith.constant 0 : index
    %77 = vector.load %arg6[%c3_63, %c1_64, %c0_65] : memref<4x9x128xf32, #tpu.memory_space<vmem>>, vector<1x1x128xf32>
    %78 = vector.shape_cast %77 : vector<1x1x128xf32> to vector<128xf32>
    %79 = vector.shape_cast %78 : vector<128xf32> to vector<1x1x128xf32>
    %80 = vector.broadcast %79 : vector<1x1x128xf32> to vector<1x16x128xf32>
    %81 = arith.mulf %76, %80 : vector<1x16x128xf32>
    %82 = arith.addf %55, %81 : vector<1x16x128xf32>
    %c0_66 = arith.constant 0 : index
    %c2_67 = arith.constant 2 : index
    %c32 = arith.constant 32 : index
    %83 = vector.load %arg15[%c0_66, %c2_67, %c32] : memref<1x22x176xf32, #tpu.memory_space<vmem>>, vector<1x16x128xf32>
    %c0_68 = arith.constant 0 : index
    %c2_69 = arith.constant 2 : index
    %c0_70 = arith.constant 0 : index
    %84 = vector.load %arg6[%c0_68, %c2_69, %c0_70] : memref<4x9x128xf32, #tpu.memory_space<vmem>>, vector<1x1x128xf32>
    %85 = vector.shape_cast %84 : vector<1x1x128xf32> to vector<128xf32>
    %86 = vector.shape_cast %85 : vector<128xf32> to vector<1x1x128xf32>
    %87 = vector.broadcast %86 : vector<1x1x128xf32> to vector<1x16x128xf32>
    %88 = arith.mulf %83, %87 : vector<1x16x128xf32>
    %89 = arith.addf %62, %88 : vector<1x16x128xf32>
    %c1_71 = arith.constant 1 : index
    %c2_72 = arith.constant 2 : index
    %c0_73 = arith.constant 0 : index
    %90 = vector.load %arg6[%c1_71, %c2_72, %c0_73] : memref<4x9x128xf32, #tpu.memory_space<vmem>>, vector<1x1x128xf32>
    %91 = vector.shape_cast %90 : vector<1x1x128xf32> to vector<128xf32>
    %92 = vector.shape_cast %91 : vector<128xf32> to vector<1x1x128xf32>
    %93 = vector.broadcast %92 : vector<1x1x128xf32> to vector<1x16x128xf32>
    %94 = arith.mulf %83, %93 : vector<1x16x128xf32>
    %95 = arith.addf %68, %94 : vector<1x16x128xf32>
    %c0_74 = arith.constant 0 : index
    %c1_75 = arith.constant 1 : index
    %c40 = arith.constant 40 : index
    %96 = vector.load %arg15[%c0_74, %c1_75, %c40] : memref<1x22x176xf32, #tpu.memory_space<vmem>>, vector<1x16x128xf32>
    %c2_76 = arith.constant 2 : index
    %c2_77 = arith.constant 2 : index
    %c0_78 = arith.constant 0 : index
    %97 = vector.load %arg6[%c2_76, %c2_77, %c0_78] : memref<4x9x128xf32, #tpu.memory_space<vmem>>, vector<1x1x128xf32>
    %98 = vector.shape_cast %97 : vector<1x1x128xf32> to vector<128xf32>
    %99 = vector.shape_cast %98 : vector<128xf32> to vector<1x1x128xf32>
    %100 = vector.broadcast %99 : vector<1x1x128xf32> to vector<1x16x128xf32>
    %101 = arith.mulf %96, %100 : vector<1x16x128xf32>
    %102 = arith.addf %75, %101 : vector<1x16x128xf32>
    %c0_79 = arith.constant 0 : index
    %c0_80 = arith.constant 0 : index
    %c48 = arith.constant 48 : index
    %103 = vector.load %arg15[%c0_79, %c0_80, %c48] : memref<1x22x176xf32, #tpu.memory_space<vmem>>, vector<1x16x128xf32>
    %c3_81 = arith.constant 3 : index
    %c2_82 = arith.constant 2 : index
    %c0_83 = arith.constant 0 : index
    %104 = vector.load %arg6[%c3_81, %c2_82, %c0_83] : memref<4x9x128xf32, #tpu.memory_space<vmem>>, vector<1x1x128xf32>
    %105 = vector.shape_cast %104 : vector<1x1x128xf32> to vector<128xf32>
    %106 = vector.shape_cast %105 : vector<128xf32> to vector<1x1x128xf32>
    %107 = vector.broadcast %106 : vector<1x1x128xf32> to vector<1x16x128xf32>
    %108 = arith.mulf %103, %107 : vector<1x16x128xf32>
    %109 = arith.addf %82, %108 : vector<1x16x128xf32>
    %c0_84 = arith.constant 0 : index
    %c3_85 = arith.constant 3 : index
    %c16_86 = arith.constant 16 : index
    %110 = vector.load %arg15[%c0_84, %c3_85, %c16_86] : memref<1x22x176xf32, #tpu.memory_space<vmem>>, vector<1x16x128xf32>
    %c0_87 = arith.constant 0 : index
    %c3_88 = arith.constant 3 : index
    %c0_89 = arith.constant 0 : index
    %111 = vector.load %arg6[%c0_87, %c3_88, %c0_89] : memref<4x9x128xf32, #tpu.memory_space<vmem>>, vector<1x1x128xf32>
    %112 = vector.shape_cast %111 : vector<1x1x128xf32> to vector<128xf32>
    %113 = vector.shape_cast %112 : vector<128xf32> to vector<1x1x128xf32>
    %114 = vector.broadcast %113 : vector<1x1x128xf32> to vector<1x16x128xf32>
    %115 = arith.mulf %110, %114 : vector<1x16x128xf32>
    %116 = arith.addf %89, %115 : vector<1x16x128xf32>
    %c1_90 = arith.constant 1 : index
    %c3_91 = arith.constant 3 : index
    %c0_92 = arith.constant 0 : index
    %117 = vector.load %arg6[%c1_90, %c3_91, %c0_92] : memref<4x9x128xf32, #tpu.memory_space<vmem>>, vector<1x1x128xf32>
    %118 = vector.shape_cast %117 : vector<1x1x128xf32> to vector<128xf32>
    %119 = vector.shape_cast %118 : vector<128xf32> to vector<1x1x128xf32>
    %120 = vector.broadcast %119 : vector<1x1x128xf32> to vector<1x16x128xf32>
    %121 = arith.mulf %110, %120 : vector<1x16x128xf32>
    %122 = arith.addf %95, %121 : vector<1x16x128xf32>
    %c0_93 = arith.constant 0 : index
    %c3_94 = arith.constant 3 : index
    %c8_95 = arith.constant 8 : index
    %123 = vector.load %arg15[%c0_93, %c3_94, %c8_95] : memref<1x22x176xf32, #tpu.memory_space<vmem>>, vector<1x16x128xf32>
    %c2_96 = arith.constant 2 : index
    %c3_97 = arith.constant 3 : index
    %c0_98 = arith.constant 0 : index
    %124 = vector.load %arg6[%c2_96, %c3_97, %c0_98] : memref<4x9x128xf32, #tpu.memory_space<vmem>>, vector<1x1x128xf32>
    %125 = vector.shape_cast %124 : vector<1x1x128xf32> to vector<128xf32>
    %126 = vector.shape_cast %125 : vector<128xf32> to vector<1x1x128xf32>
    %127 = vector.broadcast %126 : vector<1x1x128xf32> to vector<1x16x128xf32>
    %128 = arith.mulf %123, %127 : vector<1x16x128xf32>
    %129 = arith.addf %102, %128 : vector<1x16x128xf32>
    %c0_99 = arith.constant 0 : index
    %c3_100 = arith.constant 3 : index
    %c0_101 = arith.constant 0 : index
    %130 = vector.load %arg15[%c0_99, %c3_100, %c0_101] : memref<1x22x176xf32, #tpu.memory_space<vmem>>, vector<1x16x128xf32>
    %c3_102 = arith.constant 3 : index
    %c3_103 = arith.constant 3 : index
    %c0_104 = arith.constant 0 : index
    %131 = vector.load %arg6[%c3_102, %c3_103, %c0_104] : memref<4x9x128xf32, #tpu.memory_space<vmem>>, vector<1x1x128xf32>
    %132 = vector.shape_cast %131 : vector<1x1x128xf32> to vector<128xf32>
    %133 = vector.shape_cast %132 : vector<128xf32> to vector<1x1x128xf32>
    %134 = vector.broadcast %133 : vector<1x1x128xf32> to vector<1x16x128xf32>
    %135 = arith.mulf %130, %134 : vector<1x16x128xf32>
    %136 = arith.addf %109, %135 : vector<1x16x128xf32>
    %c0_105 = arith.constant 0 : index
    %c3_106 = arith.constant 3 : index
    %c24_107 = arith.constant 24 : index
    %137 = vector.load %arg15[%c0_105, %c3_106, %c24_107] : memref<1x22x176xf32, #tpu.memory_space<vmem>>, vector<1x16x128xf32>
    %c0_108 = arith.constant 0 : index
    %c4 = arith.constant 4 : index
    %c0_109 = arith.constant 0 : index
    %138 = vector.load %arg6[%c0_108, %c4, %c0_109] : memref<4x9x128xf32, #tpu.memory_space<vmem>>, vector<1x1x128xf32>
    %139 = vector.shape_cast %138 : vector<1x1x128xf32> to vector<128xf32>
    %140 = vector.shape_cast %139 : vector<128xf32> to vector<1x1x128xf32>
    %141 = vector.broadcast %140 : vector<1x1x128xf32> to vector<1x16x128xf32>
    %142 = arith.mulf %137, %141 : vector<1x16x128xf32>
    %143 = arith.addf %116, %142 : vector<1x16x128xf32>
    %c1_110 = arith.constant 1 : index
    %c4_111 = arith.constant 4 : index
    %c0_112 = arith.constant 0 : index
    %144 = vector.load %arg6[%c1_110, %c4_111, %c0_112] : memref<4x9x128xf32, #tpu.memory_space<vmem>>, vector<1x1x128xf32>
    %145 = vector.shape_cast %144 : vector<1x1x128xf32> to vector<128xf32>
    %146 = vector.shape_cast %145 : vector<128xf32> to vector<1x1x128xf32>
    %147 = vector.broadcast %146 : vector<1x1x128xf32> to vector<1x16x128xf32>
    %148 = arith.mulf %137, %147 : vector<1x16x128xf32>
    %149 = arith.addf %122, %148 : vector<1x16x128xf32>
    %c0_113 = arith.constant 0 : index
    %c3_114 = arith.constant 3 : index
    %c24_115 = arith.constant 24 : index
    %150 = vector.load %arg15[%c0_113, %c3_114, %c24_115] : memref<1x22x176xf32, #tpu.memory_space<vmem>>, vector<1x16x128xf32>
    %c2_116 = arith.constant 2 : index
    %c4_117 = arith.constant 4 : index
    %c0_118 = arith.constant 0 : index
    %151 = vector.load %arg6[%c2_116, %c4_117, %c0_118] : memref<4x9x128xf32, #tpu.memory_space<vmem>>, vector<1x1x128xf32>
    %152 = vector.shape_cast %151 : vector<1x1x128xf32> to vector<128xf32>
    %153 = vector.shape_cast %152 : vector<128xf32> to vector<1x1x128xf32>
    %154 = vector.broadcast %153 : vector<1x1x128xf32> to vector<1x16x128xf32>
    %155 = arith.mulf %150, %154 : vector<1x16x128xf32>
    %156 = arith.addf %129, %155 : vector<1x16x128xf32>
    %c0_119 = arith.constant 0 : index
    %c3_120 = arith.constant 3 : index
    %c24_121 = arith.constant 24 : index
    %157 = vector.load %arg15[%c0_119, %c3_120, %c24_121] : memref<1x22x176xf32, #tpu.memory_space<vmem>>, vector<1x16x128xf32>
    %c3_122 = arith.constant 3 : index
    %c4_123 = arith.constant 4 : index
    %c0_124 = arith.constant 0 : index
    %158 = vector.load %arg6[%c3_122, %c4_123, %c0_124] : memref<4x9x128xf32, #tpu.memory_space<vmem>>, vector<1x1x128xf32>
    %159 = vector.shape_cast %158 : vector<1x1x128xf32> to vector<128xf32>
    %160 = vector.shape_cast %159 : vector<128xf32> to vector<1x1x128xf32>
    %161 = vector.broadcast %160 : vector<1x1x128xf32> to vector<1x16x128xf32>
    %162 = arith.mulf %157, %161 : vector<1x16x128xf32>
    %163 = arith.addf %136, %162 : vector<1x16x128xf32>
    %c0_125 = arith.constant 0 : index
    %c3_126 = arith.constant 3 : index
    %c32_127 = arith.constant 32 : index
    %164 = vector.load %arg15[%c0_125, %c3_126, %c32_127] : memref<1x22x176xf32, #tpu.memory_space<vmem>>, vector<1x16x128xf32>
    %c0_128 = arith.constant 0 : index
    %c5 = arith.constant 5 : index
    %c0_129 = arith.constant 0 : index
    %165 = vector.load %arg6[%c0_128, %c5, %c0_129] : memref<4x9x128xf32, #tpu.memory_space<vmem>>, vector<1x1x128xf32>
    %166 = vector.shape_cast %165 : vector<1x1x128xf32> to vector<128xf32>
    %167 = vector.shape_cast %166 : vector<128xf32> to vector<1x1x128xf32>
    %168 = vector.broadcast %167 : vector<1x1x128xf32> to vector<1x16x128xf32>
    %169 = arith.mulf %164, %168 : vector<1x16x128xf32>
    %170 = arith.addf %143, %169 : vector<1x16x128xf32>
    %c1_130 = arith.constant 1 : index
    %c5_131 = arith.constant 5 : index
    %c0_132 = arith.constant 0 : index
    %171 = vector.load %arg6[%c1_130, %c5_131, %c0_132] : memref<4x9x128xf32, #tpu.memory_space<vmem>>, vector<1x1x128xf32>
    %172 = vector.shape_cast %171 : vector<1x1x128xf32> to vector<128xf32>
    %173 = vector.shape_cast %172 : vector<128xf32> to vector<1x1x128xf32>
    %174 = vector.broadcast %173 : vector<1x1x128xf32> to vector<1x16x128xf32>
    %175 = arith.mulf %164, %174 : vector<1x16x128xf32>
    %176 = arith.addf %149, %175 : vector<1x16x128xf32>
    %c0_133 = arith.constant 0 : index
    %c3_134 = arith.constant 3 : index
    %c40_135 = arith.constant 40 : index
    %177 = vector.load %arg15[%c0_133, %c3_134, %c40_135] : memref<1x22x176xf32, #tpu.memory_space<vmem>>, vector<1x16x128xf32>
    %c2_136 = arith.constant 2 : index
    %c5_137 = arith.constant 5 : index
    %c0_138 = arith.constant 0 : index
    %178 = vector.load %arg6[%c2_136, %c5_137, %c0_138] : memref<4x9x128xf32, #tpu.memory_space<vmem>>, vector<1x1x128xf32>
    %179 = vector.shape_cast %178 : vector<1x1x128xf32> to vector<128xf32>
    %180 = vector.shape_cast %179 : vector<128xf32> to vector<1x1x128xf32>
    %181 = vector.broadcast %180 : vector<1x1x128xf32> to vector<1x16x128xf32>
    %182 = arith.mulf %177, %181 : vector<1x16x128xf32>
    %183 = arith.addf %156, %182 : vector<1x16x128xf32>
    %c0_139 = arith.constant 0 : index
    %c3_140 = arith.constant 3 : index
    %c48_141 = arith.constant 48 : index
    %184 = vector.load %arg15[%c0_139, %c3_140, %c48_141] : memref<1x22x176xf32, #tpu.memory_space<vmem>>, vector<1x16x128xf32>
    %c3_142 = arith.constant 3 : index
    %c5_143 = arith.constant 5 : index
    %c0_144 = arith.constant 0 : index
    %185 = vector.load %arg6[%c3_142, %c5_143, %c0_144] : memref<4x9x128xf32, #tpu.memory_space<vmem>>, vector<1x1x128xf32>
    %186 = vector.shape_cast %185 : vector<1x1x128xf32> to vector<128xf32>
    %187 = vector.shape_cast %186 : vector<128xf32> to vector<1x1x128xf32>
    %188 = vector.broadcast %187 : vector<1x1x128xf32> to vector<1x16x128xf32>
    %189 = arith.mulf %184, %188 : vector<1x16x128xf32>
    %190 = arith.addf %163, %189 : vector<1x16x128xf32>
    %c0_145 = arith.constant 0 : index
    %c4_146 = arith.constant 4 : index
    %c16_147 = arith.constant 16 : index
    %191 = vector.load %arg15[%c0_145, %c4_146, %c16_147] : memref<1x22x176xf32, #tpu.memory_space<vmem>>, vector<1x16x128xf32>
    %c0_148 = arith.constant 0 : index
    %c6 = arith.constant 6 : index
    %c0_149 = arith.constant 0 : index
    %192 = vector.load %arg6[%c0_148, %c6, %c0_149] : memref<4x9x128xf32, #tpu.memory_space<vmem>>, vector<1x1x128xf32>
    %193 = vector.shape_cast %192 : vector<1x1x128xf32> to vector<128xf32>
    %194 = vector.shape_cast %193 : vector<128xf32> to vector<1x1x128xf32>
    %195 = vector.broadcast %194 : vector<1x1x128xf32> to vector<1x16x128xf32>
    %196 = arith.mulf %191, %195 : vector<1x16x128xf32>
    %197 = arith.addf %170, %196 : vector<1x16x128xf32>
    %c1_150 = arith.constant 1 : index
    %c6_151 = arith.constant 6 : index
    %c0_152 = arith.constant 0 : index
    %198 = vector.load %arg6[%c1_150, %c6_151, %c0_152] : memref<4x9x128xf32, #tpu.memory_space<vmem>>, vector<1x1x128xf32>
    %199 = vector.shape_cast %198 : vector<1x1x128xf32> to vector<128xf32>
    %200 = vector.shape_cast %199 : vector<128xf32> to vector<1x1x128xf32>
    %201 = vector.broadcast %200 : vector<1x1x128xf32> to vector<1x16x128xf32>
    %202 = arith.mulf %191, %201 : vector<1x16x128xf32>
    %203 = arith.addf %176, %202 : vector<1x16x128xf32>
    %c0_153 = arith.constant 0 : index
    %c5_154 = arith.constant 5 : index
    %c8_155 = arith.constant 8 : index
    %204 = vector.load %arg15[%c0_153, %c5_154, %c8_155] : memref<1x22x176xf32, #tpu.memory_space<vmem>>, vector<1x16x128xf32>
    %c2_156 = arith.constant 2 : index
    %c6_157 = arith.constant 6 : index
    %c0_158 = arith.constant 0 : index
    %205 = vector.load %arg6[%c2_156, %c6_157, %c0_158] : memref<4x9x128xf32, #tpu.memory_space<vmem>>, vector<1x1x128xf32>
    %206 = vector.shape_cast %205 : vector<1x1x128xf32> to vector<128xf32>
    %207 = vector.shape_cast %206 : vector<128xf32> to vector<1x1x128xf32>
    %208 = vector.broadcast %207 : vector<1x1x128xf32> to vector<1x16x128xf32>
    %209 = arith.mulf %204, %208 : vector<1x16x128xf32>
    %210 = arith.addf %183, %209 : vector<1x16x128xf32>
    %c0_159 = arith.constant 0 : index
    %c6_160 = arith.constant 6 : index
    %c0_161 = arith.constant 0 : index
    %211 = vector.load %arg15[%c0_159, %c6_160, %c0_161] : memref<1x22x176xf32, #tpu.memory_space<vmem>>, vector<1x16x128xf32>
    %c3_162 = arith.constant 3 : index
    %c6_163 = arith.constant 6 : index
    %c0_164 = arith.constant 0 : index
    %212 = vector.load %arg6[%c3_162, %c6_163, %c0_164] : memref<4x9x128xf32, #tpu.memory_space<vmem>>, vector<1x1x128xf32>
    %213 = vector.shape_cast %212 : vector<1x1x128xf32> to vector<128xf32>
    %214 = vector.shape_cast %213 : vector<128xf32> to vector<1x1x128xf32>
    %215 = vector.broadcast %214 : vector<1x1x128xf32> to vector<1x16x128xf32>
    %216 = arith.mulf %211, %215 : vector<1x16x128xf32>
    %217 = arith.addf %190, %216 : vector<1x16x128xf32>
    %c0_165 = arith.constant 0 : index
    %c4_166 = arith.constant 4 : index
    %c24_167 = arith.constant 24 : index
    %218 = vector.load %arg15[%c0_165, %c4_166, %c24_167] : memref<1x22x176xf32, #tpu.memory_space<vmem>>, vector<1x16x128xf32>
    %c0_168 = arith.constant 0 : index
    %c7 = arith.constant 7 : index
    %c0_169 = arith.constant 0 : index
    %219 = vector.load %arg6[%c0_168, %c7, %c0_169] : memref<4x9x128xf32, #tpu.memory_space<vmem>>, vector<1x1x128xf32>
    %220 = vector.shape_cast %219 : vector<1x1x128xf32> to vector<128xf32>
    %221 = vector.shape_cast %220 : vector<128xf32> to vector<1x1x128xf32>
    %222 = vector.broadcast %221 : vector<1x1x128xf32> to vector<1x16x128xf32>
    %223 = arith.mulf %218, %222 : vector<1x16x128xf32>
    %224 = arith.addf %197, %223 : vector<1x16x128xf32>
    %c1_170 = arith.constant 1 : index
    %c7_171 = arith.constant 7 : index
    %c0_172 = arith.constant 0 : index
    %225 = vector.load %arg6[%c1_170, %c7_171, %c0_172] : memref<4x9x128xf32, #tpu.memory_space<vmem>>, vector<1x1x128xf32>
    %226 = vector.shape_cast %225 : vector<1x1x128xf32> to vector<128xf32>
    %227 = vector.shape_cast %226 : vector<128xf32> to vector<1x1x128xf32>
    %228 = vector.broadcast %227 : vector<1x1x128xf32> to vector<1x16x128xf32>
    %229 = arith.mulf %218, %228 : vector<1x16x128xf32>
    %230 = arith.addf %203, %229 : vector<1x16x128xf32>
    %c0_173 = arith.constant 0 : index
    %c5_174 = arith.constant 5 : index
    %c24_175 = arith.constant 24 : index
    %231 = vector.load %arg15[%c0_173, %c5_174, %c24_175] : memref<1x22x176xf32, #tpu.memory_space<vmem>>, vector<1x16x128xf32>
    %c2_176 = arith.constant 2 : index
    %c7_177 = arith.constant 7 : index
    %c0_178 = arith.constant 0 : index
    %232 = vector.load %arg6[%c2_176, %c7_177, %c0_178] : memref<4x9x128xf32, #tpu.memory_space<vmem>>, vector<1x1x128xf32>
    %233 = vector.shape_cast %232 : vector<1x1x128xf32> to vector<128xf32>
    %234 = vector.shape_cast %233 : vector<128xf32> to vector<1x1x128xf32>
    %235 = vector.broadcast %234 : vector<1x1x128xf32> to vector<1x16x128xf32>
    %236 = arith.mulf %231, %235 : vector<1x16x128xf32>
    %237 = arith.addf %210, %236 : vector<1x16x128xf32>
    %c0_179 = arith.constant 0 : index
    %c6_180 = arith.constant 6 : index
    %c24_181 = arith.constant 24 : index
    %238 = vector.load %arg15[%c0_179, %c6_180, %c24_181] : memref<1x22x176xf32, #tpu.memory_space<vmem>>, vector<1x16x128xf32>
    %c3_182 = arith.constant 3 : index
    %c7_183 = arith.constant 7 : index
    %c0_184 = arith.constant 0 : index
    %239 = vector.load %arg6[%c3_182, %c7_183, %c0_184] : memref<4x9x128xf32, #tpu.memory_space<vmem>>, vector<1x1x128xf32>
    %240 = vector.shape_cast %239 : vector<1x1x128xf32> to vector<128xf32>
    %241 = vector.shape_cast %240 : vector<128xf32> to vector<1x1x128xf32>
    %242 = vector.broadcast %241 : vector<1x1x128xf32> to vector<1x16x128xf32>
    %243 = arith.mulf %238, %242 : vector<1x16x128xf32>
    %244 = arith.addf %217, %243 : vector<1x16x128xf32>
    %c0_185 = arith.constant 0 : index
    %c4_186 = arith.constant 4 : index
    %c32_187 = arith.constant 32 : index
    %245 = vector.load %arg15[%c0_185, %c4_186, %c32_187] : memref<1x22x176xf32, #tpu.memory_space<vmem>>, vector<1x16x128xf32>
    %c0_188 = arith.constant 0 : index
    %c8_189 = arith.constant 8 : index
    %c0_190 = arith.constant 0 : index
    %246 = vector.load %arg6[%c0_188, %c8_189, %c0_190] : memref<4x9x128xf32, #tpu.memory_space<vmem>>, vector<1x1x128xf32>
    %247 = vector.shape_cast %246 : vector<1x1x128xf32> to vector<128xf32>
    %248 = vector.shape_cast %247 : vector<128xf32> to vector<1x1x128xf32>
    %249 = vector.broadcast %248 : vector<1x1x128xf32> to vector<1x16x128xf32>
    %250 = arith.mulf %245, %249 : vector<1x16x128xf32>
    %251 = arith.addf %224, %250 : vector<1x16x128xf32>
    %c1_191 = arith.constant 1 : index
    %c8_192 = arith.constant 8 : index
    %c0_193 = arith.constant 0 : index
    %252 = vector.load %arg6[%c1_191, %c8_192, %c0_193] : memref<4x9x128xf32, #tpu.memory_space<vmem>>, vector<1x1x128xf32>
    %253 = vector.shape_cast %252 : vector<1x1x128xf32> to vector<128xf32>
    %254 = vector.shape_cast %253 : vector<128xf32> to vector<1x1x128xf32>
    %255 = vector.broadcast %254 : vector<1x1x128xf32> to vector<1x16x128xf32>
    %256 = arith.mulf %245, %255 : vector<1x16x128xf32>
    %257 = arith.addf %230, %256 : vector<1x16x128xf32>
    %c0_194 = arith.constant 0 : index
    %c5_195 = arith.constant 5 : index
    %c40_196 = arith.constant 40 : index
    %258 = vector.load %arg15[%c0_194, %c5_195, %c40_196] : memref<1x22x176xf32, #tpu.memory_space<vmem>>, vector<1x16x128xf32>
    %c2_197 = arith.constant 2 : index
    %c8_198 = arith.constant 8 : index
    %c0_199 = arith.constant 0 : index
    %259 = vector.load %arg6[%c2_197, %c8_198, %c0_199] : memref<4x9x128xf32, #tpu.memory_space<vmem>>, vector<1x1x128xf32>
    %260 = vector.shape_cast %259 : vector<1x1x128xf32> to vector<128xf32>
    %261 = vector.shape_cast %260 : vector<128xf32> to vector<1x1x128xf32>
    %262 = vector.broadcast %261 : vector<1x1x128xf32> to vector<1x16x128xf32>
    %263 = arith.mulf %258, %262 : vector<1x16x128xf32>
    %264 = arith.addf %237, %263 : vector<1x16x128xf32>
    %c0_200 = arith.constant 0 : index
    %c6_201 = arith.constant 6 : index
    %c48_202 = arith.constant 48 : index
    %265 = vector.load %arg15[%c0_200, %c6_201, %c48_202] : memref<1x22x176xf32, #tpu.memory_space<vmem>>, vector<1x16x128xf32>
    %c3_203 = arith.constant 3 : index
    %c8_204 = arith.constant 8 : index
    %c0_205 = arith.constant 0 : index
    %266 = vector.load %arg6[%c3_203, %c8_204, %c0_205] : memref<4x9x128xf32, #tpu.memory_space<vmem>>, vector<1x1x128xf32>
    %267 = vector.shape_cast %266 : vector<1x1x128xf32> to vector<128xf32>
    %268 = vector.shape_cast %267 : vector<128xf32> to vector<1x1x128xf32>
    %269 = vector.broadcast %268 : vector<1x1x128xf32> to vector<1x16x128xf32>
    %270 = arith.mulf %265, %269 : vector<1x16x128xf32>
    %271 = arith.addf %244, %270 : vector<1x16x128xf32>
    %c0_206 = arith.constant 0 : index
    %c0_207 = arith.constant 0 : index
    %272 = vector.load %arg7[%c0_206, %c0_207] : memref<4x128xf32, #tpu.memory_space<vmem>>, vector<1x128xf32>
    %273 = vector.shape_cast %272 : vector<1x128xf32> to vector<128xf32>
    %274 = vector.shape_cast %273 : vector<128xf32> to vector<1x1x128xf32>
    %275 = vector.broadcast %274 : vector<1x1x128xf32> to vector<1x16x128xf32>
    %276 = arith.mulf %251, %275 : vector<1x16x128xf32>
    %c0_208 = arith.constant 0 : index
    %c0_209 = arith.constant 0 : index
    %277 = vector.load %arg8[%c0_208, %c0_209] : memref<4x128xf32, #tpu.memory_space<vmem>>, vector<1x128xf32>
    %278 = vector.shape_cast %277 : vector<1x128xf32> to vector<128xf32>
    %279 = vector.shape_cast %278 : vector<128xf32> to vector<1x1x128xf32>
    %280 = vector.broadcast %279 : vector<1x1x128xf32> to vector<1x16x128xf32>
    %281 = arith.addf %276, %280 : vector<1x16x128xf32>
    %cst_210 = arith.constant 0.000000e+00 : f32
    %282 = vector.broadcast %cst_210 : f32 to vector<1x16x128xf32>
    %283 = arith.cmpf oge, %281, %282 : vector<1x16x128xf32>
    %c0_211 = arith.constant 0 : index
    %c0_212 = arith.constant 0 : index
    %284 = vector.load %arg9[%c0_211, %c0_212] : memref<4x128xf32, #tpu.memory_space<vmem>>, vector<1x128xf32>
    %285 = vector.shape_cast %284 : vector<1x128xf32> to vector<128xf32>
    %286 = vector.shape_cast %285 : vector<128xf32> to vector<1x1x128xf32>
    %287 = vector.broadcast %286 : vector<1x1x128xf32> to vector<1x16x128xf32>
    %288 = arith.mulf %287, %281 : vector<1x16x128xf32>
    %289 = arith.select %283, %281, %288 : vector<1x16x128xi1>, vector<1x16x128xf32>
    %290 = vector.shape_cast %289 : vector<1x16x128xf32> to vector<16x128xf32>
    %291 = arith.addf %251, %257 : vector<1x16x128xf32>
    %c1_213 = arith.constant 1 : index
    %c0_214 = arith.constant 0 : index
    %292 = vector.load %arg7[%c1_213, %c0_214] : memref<4x128xf32, #tpu.memory_space<vmem>>, vector<1x128xf32>
    %293 = vector.shape_cast %292 : vector<1x128xf32> to vector<128xf32>
    %294 = vector.shape_cast %293 : vector<128xf32> to vector<1x1x128xf32>
    %295 = vector.broadcast %294 : vector<1x1x128xf32> to vector<1x16x128xf32>
    %296 = arith.mulf %291, %295 : vector<1x16x128xf32>
    %c1_215 = arith.constant 1 : index
    %c0_216 = arith.constant 0 : index
    %297 = vector.load %arg8[%c1_215, %c0_216] : memref<4x128xf32, #tpu.memory_space<vmem>>, vector<1x128xf32>
    %298 = vector.shape_cast %297 : vector<1x128xf32> to vector<128xf32>
    %299 = vector.shape_cast %298 : vector<128xf32> to vector<1x1x128xf32>
    %300 = vector.broadcast %299 : vector<1x1x128xf32> to vector<1x16x128xf32>
    %301 = arith.addf %296, %300 : vector<1x16x128xf32>
    %cst_217 = arith.constant 0.000000e+00 : f32
    %302 = vector.broadcast %cst_217 : f32 to vector<1x16x128xf32>
    %303 = arith.cmpf oge, %301, %302 : vector<1x16x128xf32>
    %c1_218 = arith.constant 1 : index
    %c0_219 = arith.constant 0 : index
    %304 = vector.load %arg9[%c1_218, %c0_219] : memref<4x128xf32, #tpu.memory_space<vmem>>, vector<1x128xf32>
    %305 = vector.shape_cast %304 : vector<1x128xf32> to vector<128xf32>
    %306 = vector.shape_cast %305 : vector<128xf32> to vector<1x1x128xf32>
    %307 = vector.broadcast %306 : vector<1x1x128xf32> to vector<1x16x128xf32>
    %308 = arith.mulf %307, %301 : vector<1x16x128xf32>
    %309 = arith.select %303, %301, %308 : vector<1x16x128xi1>, vector<1x16x128xf32>
    %310 = vector.shape_cast %309 : vector<1x16x128xf32> to vector<16x128xf32>
    %311 = arith.addf %291, %264 : vector<1x16x128xf32>
    %c2_220 = arith.constant 2 : index
    %c0_221 = arith.constant 0 : index
    %312 = vector.load %arg7[%c2_220, %c0_221] : memref<4x128xf32, #tpu.memory_space<vmem>>, vector<1x128xf32>
    %313 = vector.shape_cast %312 : vector<1x128xf32> to vector<128xf32>
    %314 = vector.shape_cast %313 : vector<128xf32> to vector<1x1x128xf32>
    %315 = vector.broadcast %314 : vector<1x1x128xf32> to vector<1x16x128xf32>
    %316 = arith.mulf %311, %315 : vector<1x16x128xf32>
    %c2_222 = arith.constant 2 : index
    %c0_223 = arith.constant 0 : index
    %317 = vector.load %arg8[%c2_222, %c0_223] : memref<4x128xf32, #tpu.memory_space<vmem>>, vector<1x128xf32>
    %318 = vector.shape_cast %317 : vector<1x128xf32> to vector<128xf32>
    %319 = vector.shape_cast %318 : vector<128xf32> to vector<1x1x128xf32>
    %320 = vector.broadcast %319 : vector<1x1x128xf32> to vector<1x16x128xf32>
    %321 = arith.addf %316, %320 : vector<1x16x128xf32>
    %cst_224 = arith.constant 0.000000e+00 : f32
    %322 = vector.broadcast %cst_224 : f32 to vector<1x16x128xf32>
    %323 = arith.cmpf oge, %321, %322 : vector<1x16x128xf32>
    %c2_225 = arith.constant 2 : index
    %c0_226 = arith.constant 0 : index
    %324 = vector.load %arg9[%c2_225, %c0_226] : memref<4x128xf32, #tpu.memory_space<vmem>>, vector<1x128xf32>
    %325 = vector.shape_cast %324 : vector<1x128xf32> to vector<128xf32>
    %326 = vector.shape_cast %325 : vector<128xf32> to vector<1x1x128xf32>
    %327 = vector.broadcast %326 : vector<1x1x128xf32> to vector<1x16x128xf32>
    %328 = arith.mulf %327, %321 : vector<1x16x128xf32>
    %329 = arith.select %323, %321, %328 : vector<1x16x128xi1>, vector<1x16x128xf32>
    %330 = vector.shape_cast %329 : vector<1x16x128xf32> to vector<16x128xf32>
    %331 = arith.addf %311, %271 : vector<1x16x128xf32>
    %c3_227 = arith.constant 3 : index
    %c0_228 = arith.constant 0 : index
    %332 = vector.load %arg7[%c3_227, %c0_228] : memref<4x128xf32, #tpu.memory_space<vmem>>, vector<1x128xf32>
    %333 = vector.shape_cast %332 : vector<1x128xf32> to vector<128xf32>
    %334 = vector.shape_cast %333 : vector<128xf32> to vector<1x1x128xf32>
    %335 = vector.broadcast %334 : vector<1x1x128xf32> to vector<1x16x128xf32>
    %336 = arith.mulf %331, %335 : vector<1x16x128xf32>
    %c3_229 = arith.constant 3 : index
    %c0_230 = arith.constant 0 : index
    %337 = vector.load %arg8[%c3_229, %c0_230] : memref<4x128xf32, #tpu.memory_space<vmem>>, vector<1x128xf32>
    %338 = vector.shape_cast %337 : vector<1x128xf32> to vector<128xf32>
    %339 = vector.shape_cast %338 : vector<128xf32> to vector<1x1x128xf32>
    %340 = vector.broadcast %339 : vector<1x1x128xf32> to vector<1x16x128xf32>
    %341 = arith.addf %336, %340 : vector<1x16x128xf32>
    %cst_231 = arith.constant 0.000000e+00 : f32
    %342 = vector.broadcast %cst_231 : f32 to vector<1x16x128xf32>
    %343 = arith.cmpf oge, %341, %342 : vector<1x16x128xf32>
    %c3_232 = arith.constant 3 : index
    %c0_233 = arith.constant 0 : index
    %344 = vector.load %arg9[%c3_232, %c0_233] : memref<4x128xf32, #tpu.memory_space<vmem>>, vector<1x128xf32>
    %345 = vector.shape_cast %344 : vector<1x128xf32> to vector<128xf32>
    %346 = vector.shape_cast %345 : vector<128xf32> to vector<1x1x128xf32>
    %347 = vector.broadcast %346 : vector<1x1x128xf32> to vector<1x16x128xf32>
    %348 = arith.mulf %347, %341 : vector<1x16x128xf32>
    %349 = arith.select %343, %341, %348 : vector<1x16x128xi1>, vector<1x16x128xf32>
    %350 = vector.shape_cast %349 : vector<1x16x128xf32> to vector<16x128xf32>
    %351 = tpu.concatenate %290, %310, %330, %350 in 1 : vector<16x128xf32>, vector<16x128xf32>, vector<16x128xf32>, vector<16x128xf32> -> vector<16x512xf32>
    %352 = arith.truncf %351 : vector<16x512xf32> to vector<16x512xbf16>
    %c0_234 = arith.constant 0 : index
    %c0_235 = arith.constant 0 : index
    %353 = vector.load %arg10[%c0_234, %c0_235] : memref<512x512xbf16, #tpu.memory_space<vmem>>, vector<512x512xbf16>
    %cst_236 = arith.constant dense<0.000000e+00> : vector<16x512xf32>
    %354 = tpu.matmul %352, %353, %cst_236 {dimension_numbers = #tpu.dot_dimension_numbers<[1], [0], [0], [1], [0, 0, 1, 1], [], []>} : vector<16x512xbf16>, vector<512x512xbf16>, vector<16x512xf32> -> vector<16x512xf32>
    %c0_237 = arith.constant 0 : index
    %c0_238 = arith.constant 0 : index
    %355 = vector.load %arg11[%c0_237, %c0_238] : memref<1x512xf32, #tpu.memory_space<vmem>>, vector<1x512xf32>
    %356 = vector.broadcast %355 : vector<1x512xf32> to vector<16x512xf32>
    %357 = arith.mulf %354, %356 : vector<16x512xf32>
    %c0_239 = arith.constant 0 : index
    %c0_240 = arith.constant 0 : index
    %358 = vector.load %arg12[%c0_239, %c0_240] : memref<1x512xf32, #tpu.memory_space<vmem>>, vector<1x512xf32>
    %359 = vector.broadcast %358 : vector<1x512xf32> to vector<16x512xf32>
    %360 = arith.addf %357, %359 : vector<16x512xf32>
    %361 = arith.addf %360, %1 : vector<16x512xf32>
    %cst_241 = arith.constant 0.000000e+00 : f32
    %362 = vector.broadcast %cst_241 : f32 to vector<16x512xf32>
    %363 = arith.cmpf oge, %361, %362 : vector<16x512xf32>
    %c0_242 = arith.constant 0 : index
    %c0_243 = arith.constant 0 : index
    %364 = vector.load %arg13[%c0_242, %c0_243] : memref<1x512xf32, #tpu.memory_space<vmem>>, vector<1x512xf32>
    %365 = vector.broadcast %364 : vector<1x512xf32> to vector<16x512xf32>
    %366 = arith.mulf %365, %361 : vector<16x512xf32>
    %367 = arith.select %363, %361, %366 : vector<16x512xi1>, vector<16x512xf32>
    %368 = vector.shape_cast %367 : vector<16x512xf32> to vector<1x16x512xf32>
    %c0_244 = arith.constant 0 : index
    %c0_245 = arith.constant 0 : index
    %c0_246 = arith.constant 0 : index
    %369 = vector.load %arg14[%c0_244, %c0_245, %c0_246] : memref<1x16x512xf32, #tpu.memory_space<vmem>>, vector<1x16x512xf32>
    tpu.vector_store %arg14[%c0_244, %c0_245, %c0_246], %368 {strides = array<i32>} : memref<1x16x512xf32, #tpu.memory_space<vmem>>, vector<1x16x512xf32>,
    return
  }
  func.func @transform_0(%arg0: i32) -> (i32, i32, i32) {
    %c0_i32 = arith.constant 0 : i32
    %c0_i32_0 = arith.constant 0 : i32
    %c0_i32_1 = arith.constant 0 : i32
    return %arg0, %c0_i32, %c0_i32_0 : i32, i32, i32
  }
  func.func @transform_1(%arg0: i32) -> (i32, i32) {
    %c0_i32 = arith.constant 0 : i32
    %c0_i32_0 = arith.constant 0 : i32
    %c0_i32_1 = arith.constant 0 : i32
    return %c0_i32, %c0_i32_0 : i32, i32
  }
  func.func @transform_2(%arg0: i32) -> (i32, i32) {
    %c0_i32 = arith.constant 0 : i32
    %c0_i32_0 = arith.constant 0 : i32
    %c0_i32_1 = arith.constant 0 : i32
    return %c0_i32, %c0_i32_0 : i32, i32
  }
  func.func @transform_3(%arg0: i32) -> (i32, i32) {
    %c0_i32 = arith.constant 0 : i32
    %c0_i32_0 = arith.constant 0 : i32
    %c0_i32_1 = arith.constant 0 : i32
    return %c0_i32, %c0_i32_0 : i32, i32
  }
  func.func @transform_4(%arg0: i32) -> (i32, i32) {
    %c0_i32 = arith.constant 0 : i32
    %c0_i32_0 = arith.constant 0 : i32
    %c0_i32_1 = arith.constant 0 : i32
    return %c0_i32, %c0_i32_0 : i32, i32
  }
  func.func @transform_5(%arg0: i32) -> (i32, i32, i32) {
    %c0_i32 = arith.constant 0 : i32
    %c0_i32_0 = arith.constant 0 : i32
    %c0_i32_1 = arith.constant 0 : i32
    %c0_i32_2 = arith.constant 0 : i32
    return %c0_i32, %c0_i32_0, %c0_i32_1 : i32, i32, i32
  }
  func.func @transform_6(%arg0: i32) -> (i32, i32) {
    %c0_i32 = arith.constant 0 : i32
    %c0_i32_0 = arith.constant 0 : i32
    %c0_i32_1 = arith.constant 0 : i32
    return %c0_i32, %c0_i32_0 : i32, i32
  }
  func.func @transform_7(%arg0: i32) -> (i32, i32) {
    %c0_i32 = arith.constant 0 : i32
    %c0_i32_0 = arith.constant 0 : i32
    %c0_i32_1 = arith.constant 0 : i32
    return %c0_i32, %c0_i32_0 : i32, i32
  }
  func.func @transform_8(%arg0: i32) -> (i32, i32) {
    %c0_i32 = arith.constant 0 : i32
    %c0_i32_0 = arith.constant 0 : i32
    %c0_i32_1 = arith.constant 0 : i32
    return %c0_i32, %c0_i32_0 : i32, i32
  }
  func.func @transform_9(%arg0: i32) -> (i32, i32) {
    %c0_i32 = arith.constant 0 : i32
    %c0_i32_0 = arith.constant 0 : i32
    %c0_i32_1 = arith.constant 0 : i32
    return %c0_i32, %c0_i32_0 : i32, i32
  }
  func.func @transform_10(%arg0: i32) -> (i32, i32) {
    %c0_i32 = arith.constant 0 : i32
    %c0_i32_0 = arith.constant 0 : i32
    %c0_i32_1 = arith.constant 0 : i32
    return %c0_i32, %c0_i32_0 : i32, i32
  }
  func.func @transform_11(%arg0: i32) -> (i32, i32) {
    %c0_i32 = arith.constant 0 : i32
    %c0_i32_0 = arith.constant 0 : i32
    %c0_i32_1 = arith.constant 0 : i32
    return %c0_i32, %c0_i32_0 : i32, i32
  }
  func.func @transform_12(%arg0: i32) -> (i32, i32) {
    %c0_i32 = arith.constant 0 : i32
    %c0_i32_0 = arith.constant 0 : i32
    %c0_i32_1 = arith.constant 0 : i32
    return %c0_i32, %c0_i32_0 : i32, i32
  }
  func.func @transform_13(%arg0: i32) -> (i32, i32, i32) {
    %c0_i32 = arith.constant 0 : i32
    %c0_i32_0 = arith.constant 0 : i32
    %c0_i32_1 = arith.constant 0 : i32
    return %arg0, %c0_i32, %c0_i32_0 : i32, i32, i32
  }
}

</mosaic_0001>

<llo_original>
// kernel: tpu_custom_call.1
$region0: #{tpu_custom_call.1}
  #allocation0 [shape = 'u32[]', space=smem, size = 0x4, offset = 0x4, fixed_abs, tag = 'smem constant byte address 0x4 - core index']
  #allocation1 [shape = 'u32[144,128]{1,0:T(1,128)}', space=vmem, size = 0x12000, scoped, tag = 'internal scratch']
  #allocation2 [shape = 'f32[1,22,176]{2,1,0:T(8,128)}', space=vmem, size = 0x6000, scoped, tag = 'scratch operand']
  %s0 = inlined_call_operand.hbm [shape: f32[2,16,512], index: 0, kind: input, shape index: {}]
  %s1 = inlined_call_operand.hbm [shape: bf16[512,128], index: 1, kind: input, shape index: {}]
  %s2 = inlined_call_operand.vmem [shape: f32[1,128], index: 2, kind: input, shape index: {}]
  %s3 = inlined_call_operand.vmem [shape: f32[1,128], index: 3, kind: input, shape index: {}]
  %s4 = inlined_call_operand.vmem [shape: f32[1,128], index: 4, kind: input, shape index: {}]
  %s5 = inlined_call_operand.vmem [shape: f32[4,9,128], index: 5, kind: input, shape index: {}]
  %s6 = inlined_call_operand.vmem [shape: f32[4,128], index: 6, kind: input, shape index: {}]
  %s7 = inlined_call_operand.vmem [shape: f32[4,128], index: 7, kind: input, shape index: {}]
  %s8 = inlined_call_operand.vmem [shape: f32[4,128], index: 8, kind: input, shape index: {}]
  %s9 = inlined_call_operand.hbm [shape: bf16[512,512], index: 9, kind: input, shape index: {}]
  %s10 = inlined_call_operand.vmem [shape: f32[1,512], index: 10, kind: input, shape index: {}]
  %s11 = inlined_call_operand.vmem [shape: f32[1,512], index: 11, kind: input, shape index: {}]
  %s12 = inlined_call_operand.vmem [shape: f32[1,512], index: 12, kind: input, shape index: {}]
  %s13 = inlined_call_operand.hbm [shape: f32[2,16,512], index: 13, kind: output, shape index: {}]
  %s14 = sld [smem:[#allocation0]]
  $region97: #{tpu_custom_call.1} parent=0
    _
  %s16 = ssub.s32 1, %s14
  %s17 = scalar_select 0, %s16, %s14
  $region1: #{tpu_custom_call.1} parent=0
    #allocation3 [shape = 'u8[65536]{0}', space=vmem, size = 0x10000, scoped, tag = 'input window, operand 0']
    #allocation4 [shape = 's32[2]{0}', space=sflag, size = 0x8, scoped, tag = 'scoped memory for tpu_custom_call.1']
    #allocation5 [shape = 's32[2]{0}', space=sflag, size = 0x8, scoped, tag = 'scoped memory for tpu_custom_call.1']
    #allocation6 [shape = 'u8[131072]{0}', space=vmem, size = 0x20000, scoped, tag = 'input window, operand 1, single buffered']
    #allocation7 [shape = 's32[1]{0}', space=sflag, size = 0x4, scoped, tag = 'scoped memory for tpu_custom_call.1']
    #allocation8 [shape = 'u8[524288]{0}', space=vmem, size = 0x80000, scoped, tag = 'input window, operand 9, single buffered']
    #allocation9 [shape = 'u8[65536]{0}', space=vmem, size = 0x10000, scoped, tag = 'output window, operand 0']
    %18 = vsyncpa [#allocation4], 0
    %s19 = scalar_lea.sflag [#allocation4], 1
    %20 = vsyncpa %s19, 0
    %21 = vsyncpa [#allocation7], 0
    %22 = vsyncpa [#allocation5], 0
    %s23 = scalar_lea.sflag [#allocation5], 1
    %24 = vsyncpa %s23, 0
    loop: start=0, step=1, limit=4
    $region2: #{tpu_custom_call.1} parent=1 // loop_pre_header
      _
    $region3: #{tpu_custom_call.1} parent=1 // loop_header
      %s26 = sphi 0, %s30
      %p27 = scmp.ge.s32.totalorder %s26, 4
      %s36 = sphi 0, %s38
      %s39 = sphi 0, %s36
      %s40 = sphi 0, %s39
      %s56 = sphi 0, %s40
      %s60 = sphi 0, %s60
      %s62 = sphi 0, %s60
      %s63 = sphi 0, %s62
      %s77 = sphi 0, %s63
      %s81 = sphi 0, %s81
      %s83 = sphi 0, %s81
      %s84 = sphi 0, %s83
      %s98 = sphi 0, %s84
      %s102 = sphi 0, %s102
      %s104 = sphi 0, %s102
      %s105 = sphi 0, %s104
      %s119 = sphi 0, %s105
      %s123 = sphi 0, %s123
      %s125 = sphi 0, %s123
      %s126 = sphi 0, %s125
      %s140 = sphi 0, %s126
      %s144 = sphi 0, %s144
      %s146 = sphi 0, %s144
      %s147 = sphi 0, %s146
      %s161 = sphi 0, %s147
      %s165 = sphi 0, %s165
      %s167 = sphi 0, %s165
      %s168 = sphi 0, %s167
      %s182 = sphi 0, %s168
      %s186 = sphi 0, %s186
      %s188 = sphi 0, %s186
      %s189 = sphi 0, %s188
      %s203 = sphi 0, %s189
      %s207 = sphi 0, %s207
      %s209 = sphi 0, %s207
      %s210 = sphi 0, %s209
      %s224 = sphi 0, %s210
      %s228 = sphi 0, %s228
      %s230 = sphi 0, %s228
      %s231 = sphi 0, %s230
      %s245 = sphi 0, %s231
      %s249 = sphi 0, %s249
      %s251 = sphi 0, %s249
      %s252 = sphi 0, %s251
      %s266 = sphi 0, %s252
      %s270 = sphi 0, %s270
      %s272 = sphi 0, %s270
      %s273 = sphi 0, %s272
      %s287 = sphi 0, %s273
      %s291 = sphi 0, %s291
      %s293 = sphi 0, %s291
      %s294 = sphi 0, %s293
      %s308 = sphi 0, %s294
      %s314 = sphi 0, %s316
      %s317 = sphi 0, %s314
      %s318 = sphi 0, %s317
      %s334 = sphi 0, %s318
    $region4: #{tpu_custom_call.1} parent=1 // loop_header_branch
      %29 = sbr.rel (%p27) target = $region8
    $region5: #{tpu_custom_call.1} parent=1 // loop_body
      %s31 = ssub.s32 %s26, 1
      %s32 = ssub.s32 %s26, 2
      %s33 = sadd.s32 %s26, 1
      %s34 = ssub.s32 %s26, %s33
      %p35 = scmp.eq.s32.totalorder %s34, 0
      %s37 = sadd.s32 %s36, 1
      %s38 = scalar_select %p35, %s36, %s37
      %p41 = pneg %p35
      %p42 = scmp.eq.s32.totalorder %s26, 1
      %p43 = por %p41, %p42
      %p44 = scmp.ne.s32.totalorder %s36, %s39
      %p45 = scmp.eq.s32.totalorder %s26, 0
      %p46 = por %p44, %p45
      %p47 = scmp.ne.s32.totalorder %s36, %s39
      %p48 = scmp.eq.s32.totalorder %s31, 1
      %p49 = por %p47, %p48
      %p50 = scmp.ne.s32.totalorder %s39, %s40
      %p51 = scmp.eq.s32.totalorder %s31, 0
      %p52 = por %p50, %p51
      %p53 = scmp.ne.s32.totalorder %s39, %s40
      %p54 = scmp.eq.s32.totalorder %s32, 1
      %p55 = por %p53, %p54
      %p57 = scmp.ne.s32.totalorder %s40, %s56
      %p58 = scmp.eq.s32.totalorder %s32, 0
      %p59 = por %p57, %p58
      %s61 = sadd.s32 %s60, 1
      %p64 = scmp.eq.s32.totalorder %s26, 1
      %p65 = scmp.ne.s32.totalorder %s60, %s62
      %p66 = scmp.eq.s32.totalorder %s26, 0
      %p67 = por %p65, %p66
      %p68 = scmp.ne.s32.totalorder %s60, %s62
      %p69 = scmp.eq.s32.totalorder %s31, 1
      %p70 = por %p68, %p69
      %p71 = scmp.ne.s32.totalorder %s62, %s63
      %p72 = scmp.eq.s32.totalorder %s31, 0
      %p73 = por %p71, %p72
      %p74 = scmp.ne.s32.totalorder %s62, %s63
      %p75 = scmp.eq.s32.totalorder %s32, 1
      %p76 = por %p74, %p75
      %p78 = scmp.ne.s32.totalorder %s63, %s77
      %p79 = scmp.eq.s32.totalorder %s32, 0
      %p80 = por %p78, %p79
      %s82 = sadd.s32 %s81, 1
      %p85 = scmp.eq.s32.totalorder %s26, 1
      %p86 = scmp.ne.s32.totalorder %s81, %s83
      %p87 = scmp.eq.s32.totalorder %s26, 0
      %p88 = por %p86, %p87
      %p89 = scmp.ne.s32.totalorder %s81, %s83
      %p90 = scmp.eq.s32.totalorder %s31, 1
      %p91 = por %p89, %p90
      %p92 = scmp.ne.s32.totalorder %s83, %s84
      %p93 = scmp.eq.s32.totalorder %s31, 0
      %p94 = por %p92, %p93
      %p95 = scmp.ne.s32.totalorder %s83, %s84
      %p96 = scmp.eq.s32.totalorder %s32, 1
      %p97 = por %p95, %p96
      %p99 = scmp.ne.s32.totalorder %s84, %s98
      %p100 = scmp.eq.s32.totalorder %s32, 0
      %p101 = por %p99, %p100
      %s103 = sadd.s32 %s102, 1
      %p106 = scmp.eq.s32.totalorder %s26, 1
      %p107 = scmp.ne.s32.totalorder %s102, %s104
      %p108 = scmp.eq.s32.totalorder %s26, 0
      %p109 = por %p107, %p108
      %p110 = scmp.ne.s32.totalorder %s102, %s104
      %p111 = scmp.eq.s32.totalorder %s31, 1
      %p112 = por %p110, %p111
      %p113 = scmp.ne.s32.totalorder %s104, %s105
      %p114 = scmp.eq.s32.totalorder %s31, 0
      %p115 = por %p113, %p114
      %p116 = scmp.ne.s32.totalorder %s104, %s105
      %p117 = scmp.eq.s32.totalorder %s32, 1
      %p118 = por %p116, %p117
      %p120 = scmp.ne.s32.totalorder %s105, %s119
      %p121 = scmp.eq.s32.totalorder %s32, 0
      %p122 = por %p120, %p121
      %s124 = sadd.s32 %s123, 1
      %p127 = scmp.eq.s32.totalorder %s26, 1
      %p128 = scmp.ne.s32.totalorder %s123, %s125
      %p129 = scmp.eq.s32.totalorder %s26, 0
      %p130 = por %p128, %p129
      %p131 = scmp.ne.s32.totalorder %s123, %s125
      %p132 = scmp.eq.s32.totalorder %s31, 1
      %p133 = por %p131, %p132
      %p134 = scmp.ne.s32.totalorder %s125, %s126
      %p135 = scmp.eq.s32.totalorder %s31, 0
      %p136 = por %p134, %p135
      %p137 = scmp.ne.s32.totalorder %s125, %s126
      %p138 = scmp.eq.s32.totalorder %s32, 1
      %p139 = por %p137, %p138
      %p141 = scmp.ne.s32.totalorder %s126, %s140
      %p142 = scmp.eq.s32.totalorder %s32, 0
      %p143 = por %p141, %p142
      %s145 = sadd.s32 %s144, 1
      %p148 = scmp.eq.s32.totalorder %s26, 1
      %p149 = scmp.ne.s32.totalorder %s144, %s146
      %p150 = scmp.eq.s32.totalorder %s26, 0
      %p151 = por %p149, %p150
      %p152 = scmp.ne.s32.totalorder %s144, %s146
      %p153 = scmp.eq.s32.totalorder %s31, 1
      %p154 = por %p152, %p153
      %p155 = scmp.ne.s32.totalorder %s146, %s147
      %p156 = scmp.eq.s32.totalorder %s31, 0
      %p157 = por %p155, %p156
      %p158 = scmp.ne.s32.totalorder %s146, %s147
      %p159 = scmp.eq.s32.totalorder %s32, 1
      %p160 = por %p158, %p159
      %p162 = scmp.ne.s32.totalorder %s147, %s161
      %p163 = scmp.eq.s32.totalorder %s32, 0
      %p164 = por %p162, %p163
      %s166 = sadd.s32 %s165, 1
      %p169 = scmp.eq.s32.totalorder %s26, 1
      %p170 = scmp.ne.s32.totalorder %s165, %s167
      %p171 = scmp.eq.s32.totalorder %s26, 0
      %p172 = por %p170, %p171
      %p173 = scmp.ne.s32.totalorder %s165, %s167
      %p174 = scmp.eq.s32.totalorder %s31, 1
      %p175 = por %p173, %p174
      %p176 = scmp.ne.s32.totalorder %s167, %s168
      %p177 = scmp.eq.s32.totalorder %s31, 0
      %p178 = por %p176, %p177
      %p179 = scmp.ne.s32.totalorder %s167, %s168
      %p180 = scmp.eq.s32.totalorder %s32, 1
      %p181 = por %p179, %p180
      %p183 = scmp.ne.s32.totalorder %s168, %s182
      %p184 = scmp.eq.s32.totalorder %s32, 0
      %p185 = por %p183, %p184
      %s187 = sadd.s32 %s186, 1
      %p190 = scmp.eq.s32.totalorder %s26, 1
      %p191 = scmp.ne.s32.totalorder %s186, %s188
      %p192 = scmp.eq.s32.totalorder %s26, 0
      %p193 = por %p191, %p192
      %p194 = scmp.ne.s32.totalorder %s186, %s188
      %p195 = scmp.eq.s32.totalorder %s31, 1
      %p196 = por %p194, %p195
      %p197 = scmp.ne.s32.totalorder %s188, %s189
      %p198 = scmp.eq.s32.totalorder %s31, 0
      %p199 = por %p197, %p198
      %p200 = scmp.ne.s32.totalorder %s188, %s189
      %p201 = scmp.eq.s32.totalorder %s32, 1
      %p202 = por %p200, %p201
      %p204 = scmp.ne.s32.totalorder %s189, %s203
      %p205 = scmp.eq.s32.totalorder %s32, 0
      %p206 = por %p204, %p205
      %s208 = sadd.s32 %s207, 1
      %p211 = scmp.eq.s32.totalorder %s26, 1
      %p212 = scmp.ne.s32.totalorder %s207, %s209
      %p213 = scmp.eq.s32.totalorder %s26, 0
      %p214 = por %p212, %p213
      %p215 = scmp.ne.s32.totalorder %s207, %s209
      %p216 = scmp.eq.s32.totalorder %s31, 1
      %p217 = por %p215, %p216
      %p218 = scmp.ne.s32.totalorder %s209, %s210
      %p219 = scmp.eq.s32.totalorder %s31, 0
      %p220 = por %p218, %p219
      %p221 = scmp.ne.s32.totalorder %s209, %s210
      %p222 = scmp.eq.s32.totalorder %s32, 1
      %p223 = por %p221, %p222
      %p225 = scmp.ne.s32.totalorder %s210, %s224
      %p226 = scmp.eq.s32.totalorder %s32, 0
      %p227 = por %p225, %p226
      %s229 = sadd.s32 %s228, 1
      %p232 = scmp.eq.s32.totalorder %s26, 1
      %p233 = scmp.ne.s32.totalorder %s228, %s230
      %p234 = scmp.eq.s32.totalorder %s26, 0
      %p235 = por %p233, %p234
      %p236 = scmp.ne.s32.totalorder %s228, %s230
      %p237 = scmp.eq.s32.totalorder %s31, 1
      %p238 = por %p236, %p237
      %p239 = scmp.ne.s32.totalorder %s230, %s231
      %p240 = scmp.eq.s32.totalorder %s31, 0
      %p241 = por %p239, %p240
      %p242 = scmp.ne.s32.totalorder %s230, %s231
      %p243 = scmp.eq.s32.totalorder %s32, 1
      %p244 = por %p242, %p243
      %p246 = scmp.ne.s32.totalorder %s231, %s245
      %p247 = scmp.eq.s32.totalorder %s32, 0
      %p248 = por %p246, %p247
      %s250 = sadd.s32 %s249, 1
      %p253 = scmp.eq.s32.totalorder %s26, 1
      %p254 = scmp.ne.s32.totalorder %s249, %s251
      %p255 = scmp.eq.s32.totalorder %s26, 0
      %p256 = por %p254, %p255
      %p257 = scmp.ne.s32.totalorder %s249, %s251
      %p258 = scmp.eq.s32.totalorder %s31, 1
      %p259 = por %p257, %p258
      %p260 = scmp.ne.s32.totalorder %s251, %s252
      %p261 = scmp.eq.s32.totalorder %s31, 0
      %p262 = por %p260, %p261
      %p263 = scmp.ne.s32.totalorder %s251, %s252
      %p264 = scmp.eq.s32.totalorder %s32, 1
      %p265 = por %p263, %p264
      %p267 = scmp.ne.s32.totalorder %s252, %s266
      %p268 = scmp.eq.s32.totalorder %s32, 0
      %p269 = por %p267, %p268
      %s271 = sadd.s32 %s270, 1
      %p274 = scmp.eq.s32.totalorder %s26, 1
      %p275 = scmp.ne.s32.totalorder %s270, %s272
      %p276 = scmp.eq.s32.totalorder %s26, 0
      %p277 = por %p275, %p276
      %p278 = scmp.ne.s32.totalorder %s270, %s272
      %p279 = scmp.eq.s32.totalorder %s31, 1
      %p280 = por %p278, %p279
      %p281 = scmp.ne.s32.totalorder %s272, %s273
      %p282 = scmp.eq.s32.totalorder %s31, 0
      %p283 = por %p281, %p282
      %p284 = scmp.ne.s32.totalorder %s272, %s273
      %p285 = scmp.eq.s32.totalorder %s32, 1
      %p286 = por %p284, %p285
      %p288 = scmp.ne.s32.totalorder %s273, %s287
      %p289 = scmp.eq.s32.totalorder %s32, 0
      %p290 = por %p288, %p289
      %s292 = sadd.s32 %s291, 1
      %p295 = scmp.eq.s32.totalorder %s26, 1
      %p296 = scmp.ne.s32.totalorder %s291, %s293
      %p297 = scmp.eq.s32.totalorder %s26, 0
      %p298 = por %p296, %p297
      %p299 = scmp.ne.s32.totalorder %s291, %s293
      %p300 = scmp.eq.s32.totalorder %s31, 1
      %p301 = por %p299, %p300
      %p302 = scmp.ne.s32.totalorder %s293, %s294
      %p303 = scmp.eq.s32.totalorder %s31, 0
      %p304 = por %p302, %p303
      %p305 = scmp.ne.s32.totalorder %s293, %s294
      %p306 = scmp.eq.s32.totalorder %s32, 1
      %p307 = por %p305, %p306
      %p309 = scmp.ne.s32.totalorder %s294, %s308
      %p310 = scmp.eq.s32.totalorder %s32, 0
      %p311 = por %p309, %p310
      %s312 = ssub.s32 %s26, %s33
      %p313 = scmp.eq.s32.totalorder %s312, 0
      %s315 = sadd.s32 %s314, 1
      %s316 = scalar_select %p313, %s314, %s315
      %p319 = pneg %p313
      %p320 = scmp.eq.s32.totalorder %s26, 1
      %p321 = por %p319, %p320
      %p322 = scmp.ne.s32.totalorder %s314, %s317
      %p323 = scmp.eq.s32.totalorder %s26, 0
      %p324 = por %p322, %p323
      %p325 = scmp.ne.s32.totalorder %s314, %s317
      %p326 = scmp.eq.s32.totalorder %s31, 1
      %p327 = por %p325, %p326
      %p328 = scmp.ne.s32.totalorder %s317, %s318
      %p329 = scmp.eq.s32.totalorder %s31, 0
      %p330 = por %p328, %p329
      %p331 = scmp.ne.s32.totalorder %s317, %s318
      %p332 = scmp.eq.s32.totalorder %s32, 1
      %p333 = por %p331, %p332
      %p335 = scmp.ne.s32.totalorder %s318, %s334
      %p336 = scmp.eq.s32.totalorder %s32, 0
      %p337 = por %p335, %p336
      %p338 = scmp.le.s32.totalorder 1, %s26
      %p339 = scmp.lt.s32.totalorder %s26, 3
      %p340 = pnand %p338, %p339
      %p341 = pneg %p340
      // Predicated region
      $region9: #{tpu_custom_call.1} parent=5 // pred_check
        _
      $region10: #{tpu_custom_call.1} parent=5 // pred_check_branch
        %343 = sbr.rel (%p340) target = $region12
      $region11: #{tpu_custom_call.1} parent=5 // pred_region
        %s344 = ssub.s32 %s26, 1
        // Predicated region
        $region13: #{tpu_custom_call.1} parent=11 // pred_check
          %p345 = pneg %p73
        $region14: #{tpu_custom_call.1} parent=11 // pred_check_branch
          %347 = sbr.rel (%p345) target = $region16
        $region15: #{tpu_custom_call.1} parent=11 // pred_region
          %s349 = ssub.s32 4096, 4096
          %350 = vsyncadd [#allocation7], %s349
          %s351 = sshll.u32 [#allocation6], 4
          %s352 = int_to_ptr.vmem [resolvable:$true] %s351
          %357 = dma.hbm_to_vmem [thread:$0]  %s1, 4096, %s352, [#allocation7], 64, 64, 4
        $region16: #{tpu_custom_call.1} parent=11 // pred_fallthru
          _
        // Predicated region
        $region17: #{tpu_custom_call.1} parent=11 // pred_check
          %p358 = pneg %p94
        $region18: #{tpu_custom_call.1} parent=11 // pred_check_branch
          %360 = sbr.rel (%p358) target = $region20
        $region19: #{tpu_custom_call.1} parent=11 // pred_region
          _
        $region20: #{tpu_custom_call.1} parent=11 // pred_fallthru
          _
        // Predicated region
        $region21: #{tpu_custom_call.1} parent=11 // pred_check
          %p361 = pneg %p115
        $region22: #{tpu_custom_call.1} parent=11 // pred_check_branch
          %363 = sbr.rel (%p361) target = $region24
        $region23: #{tpu_custom_call.1} parent=11 // pred_region
          _
        $region24: #{tpu_custom_call.1} parent=11 // pred_fallthru
          _
        // Predicated region
        $region25: #{tpu_custom_call.1} parent=11 // pred_check
          %p364 = pneg %p136
        $region26: #{tpu_custom_call.1} parent=11 // pred_check_branch
          %366 = sbr.rel (%p364) target = $region28
        $region27: #{tpu_custom_call.1} parent=11 // pred_region
          _
        $region28: #{tpu_custom_call.1} parent=11 // pred_fallthru
          _
        // Predicated region
        $region29: #{tpu_custom_call.1} parent=11 // pred_check
          %p367 = pneg %p157
        $region30: #{tpu_custom_call.1} parent=11 // pred_check_branch
          %369 = sbr.rel (%p367) target = $region32
        $region31: #{tpu_custom_call.1} parent=11 // pred_region
          _
        $region32: #{tpu_custom_call.1} parent=11 // pred_fallthru
          _
        // Predicated region
        $region33: #{tpu_custom_call.1} parent=11 // pred_check
          %p370 = pneg %p178
        $region34: #{tpu_custom_call.1} parent=11 // pred_check_branch
          %372 = sbr.rel (%p370) target = $region36
        $region35: #{tpu_custom_call.1} parent=11 // pred_region
          _
        $region36: #{tpu_custom_call.1} parent=11 // pred_fallthru
          _
        // Predicated region
        $region37: #{tpu_custom_call.1} parent=11 // pred_check
          %p373 = pneg %p199
        $region38: #{tpu_custom_call.1} parent=11 // pred_check_branch
          %375 = sbr.rel (%p373) target = $region40
        $region39: #{tpu_custom_call.1} parent=11 // pred_region
          _
        $region40: #{tpu_custom_call.1} parent=11 // pred_fallthru
          _
        // Predicated region
        $region41: #{tpu_custom_call.1} parent=11 // pred_check
          %p376 = pneg %p220
        $region42: #{tpu_custom_call.1} parent=11 // pred_check_branch
          %378 = sbr.rel (%p376) target = $region44
        $region43: #{tpu_custom_call.1} parent=11 // pred_region
          _
        $region44: #{tpu_custom_call.1} parent=11 // pred_fallthru
          _
        // Predicated region
        $region45: #{tpu_custom_call.1} parent=11 // pred_check
          %p379 = pneg %p241
        $region46: #{tpu_custom_call.1} parent=11 // pred_check_branch
          %381 = sbr.rel (%p379) target = $region48
        $region47: #{tpu_custom_call.1} parent=11 // pred_region
          %s383 = ssub.s32 16384, 16384
          %384 = vsyncadd [#allocation7], %s383
          %s385 = sshll.u32 [#allocation8], 4
          %s386 = int_to_ptr.vmem [resolvable:$true] %s385
          %391 = dma.hbm_to_vmem [thread:$0]  %s9, 16384, %s386, [#allocation7], 256, 256, 16
        $region48: #{tpu_custom_call.1} parent=11 // pred_fallthru
          _
        // Predicated region
        $region49: #{tpu_custom_call.1} parent=11 // pred_check
          %p392 = pneg %p262
        $region50: #{tpu_custom_call.1} parent=11 // pred_check_branch
          %394 = sbr.rel (%p392) target = $region52
        $region51: #{tpu_custom_call.1} parent=11 // pred_region
          _
        $region52: #{tpu_custom_call.1} parent=11 // pred_fallthru
          _
        // Predicated region
        $region53: #{tpu_custom_call.1} parent=11 // pred_check
          %p395 = pneg %p283
        $region54: #{tpu_custom_call.1} parent=11 // pred_check_branch
          %397 = sbr.rel (%p395) target = $region56
        $region55: #{tpu_custom_call.1} parent=11 // pred_region
          _
        $region56: #{tpu_custom_call.1} parent=11 // pred_fallthru
          _
        // Predicated region
        $region57: #{tpu_custom_call.1} parent=11 // pred_check
          %p398 = pneg %p304
        $region58: #{tpu_custom_call.1} parent=11 // pred_check_branch
          %400 = sbr.rel (%p398) target = $region60
        $region59: #{tpu_custom_call.1} parent=11 // pred_region
          _
        $region60: #{tpu_custom_call.1} parent=11 // pred_fallthru
          _
      $region12: #{tpu_custom_call.1} parent=5 // pred_fallthru
        _
      %p401 = scmp.lt.s32.totalorder %s26, 2
      // Predicated region
      $region61: #{tpu_custom_call.1} parent=5 // pred_check
        %p402 = pneg %p401
      $region62: #{tpu_custom_call.1} parent=5 // pred_check_branch
        %404 = sbr.rel (%p402) target = $region64
      $region63: #{tpu_custom_call.1} parent=5 // pred_region
        // Predicated region
        $region65: #{tpu_custom_call.1} parent=63 // pred_check
          %p405 = pneg %p46
        $region66: #{tpu_custom_call.1} parent=63 // pred_check_branch
          %407 = sbr.rel (%p405) target = $region68
        $region67: #{tpu_custom_call.1} parent=63 // pred_region
          %s408 = sand.u32 %s36, 1
          %s409 = scalar_lea.sflag [#allocation4], %s408
          %s410 = sand.u32 %s36, 1
          %s411 = smul.addr %s410, 64
          %s412 = scalar_lea.vmem [#allocation3], %s411
          %s414 = ssub.s32 1024, 1024
          %415 = vsyncadd %s409, %s414
          %s416 = smul.addr %s26, 8
          %s417 = smul.addr %s416, 128
          %s418 = scalar_lea.hbm %s0, %s417
          %s419 = sshll.u32 %s412, 4
          %s420 = int_to_ptr.vmem [resolvable:$true] %s419
          %425 = dma.hbm_to_vmem [thread:$0]  %s418, 1024, %s420, %s409, 512, 512, 32
        $region68: #{tpu_custom_call.1} parent=63 // pred_fallthru
          _
      $region64: #{tpu_custom_call.1} parent=5 // pred_fallthru
        _
      %p426 = scmp.le.s32.totalorder 1, %s26
      %p427 = scmp.lt.s32.totalorder %s26, 3
      %p428 = pnand %p426, %p427
      %p429 = pneg %p428
      // Predicated region
      $region69: #{tpu_custom_call.1} parent=5 // pred_check
        _
      $region70: #{tpu_custom_call.1} parent=5 // pred_check_branch
        %431 = sbr.rel (%p428) target = $region72
      $region71: #{tpu_custom_call.1} parent=5 // pred_region
        %s432 = ssub.s32 %s26, 1
        %s433 = sand.u32 %s39, 1
        %s434 = scalar_lea.sflag [#allocation4], %s433
        %s435 = sand.u32 %s39, 1
        %s436 = smul.addr %s435, 64
        %s437 = scalar_lea.vmem [#allocation3], %s436
        // Predicated region
        $region73: #{tpu_custom_call.1} parent=71 // pred_check
          %p438 = pneg %p52
        $region74: #{tpu_custom_call.1} parent=71 // pred_check_branch
          %440 = sbr.rel (%p438) target = $region76
        $region75: #{tpu_custom_call.1} parent=71 // pred_region
          %441 = dma.done %s434, 1024
        $region76: #{tpu_custom_call.1} parent=71 // pred_fallthru
          _
        // Predicated region
        $region77: #{tpu_custom_call.1} parent=71 // pred_check
          %p442 = pneg %p73
        $region78: #{tpu_custom_call.1} parent=71 // pred_check_branch
          %444 = sbr.rel (%p442) target = $region80
        $region79: #{tpu_custom_call.1} parent=71 // pred_region
          %445 = dma.done [#allocation7], 4096
        $region80: #{tpu_custom_call.1} parent=71 // pred_fallthru
          _
        // Predicated region
        $region81: #{tpu_custom_call.1} parent=71 // pred_check
          %p446 = pneg %p241
        $region82: #{tpu_custom_call.1} parent=71 // pred_check_branch
          %448 = sbr.rel (%p446) target = $region84
        $region83: #{tpu_custom_call.1} parent=71 // pred_region
          %449 = dma.done [#allocation7], 16384
        $region84: #{tpu_custom_call.1} parent=71 // pred_fallthru
          _
        %s450 = sand.u32 %s39, 1
        %s451 = scalar_lea.sflag [#allocation4], %s450
        %s452 = sand.u32 %s39, 1
        %s453 = smul.addr %s452, 64
        %s454 = scalar_lea.vmem [#allocation3], %s453
        %p455 = pneg %p52
        %p456 = pneg %p49
        %p457 = pneg %p73
        %p458 = pneg %p70
        %p459 = pneg %p94
        %p460 = pneg %p91
        %p461 = pneg %p115
        %p462 = pneg %p112
        %p463 = pneg %p136
        %p464 = pneg %p133
        %p465 = pneg %p157
        %p466 = pneg %p154
        %p467 = pneg %p178
        %p468 = pneg %p175
        %p469 = pneg %p199
        %p470 = pneg %p196
        %p471 = pneg %p220
        %p472 = pneg %p217
        %p473 = pneg %p241
        %p474 = pneg %p238
        %p475 = pneg %p262
        %p476 = pneg %p259
        %p477 = pneg %p283
        %p478 = pneg %p280
        %p479 = pneg %p304
        %p480 = pneg %p301
        %p481 = pneg %p330
        %p482 = pneg %p327
        %s483 = sand.u32 %s317, 1
        %s484 = scalar_lea.sflag [#allocation5], %s483
        %s485 = sand.u32 %s317, 1
        %s486 = smul.addr %s485, 64
        %s487 = scalar_lea.vmem [#allocation9], %s486
        %v489 = vld [vmem:[%s437] sm:$0xff]
        %v490 = vld [vmem:[%s437 + $0x8] sm:$0xff]
        %v491 = vld [vmem:[%s437 + $0x10] sm:$0xff]
        %v492 = vld [vmem:[%s437 + $0x18] sm:$0xff]
        %v493 = vld [vmem:[%s437 + $0x20] sm:$0xff]
        %v494 = vld [vmem:[%s437 + $0x28] sm:$0xff]
        %v495 = vld [vmem:[%s437 + $0x30] sm:$0xff]
        %v496 = vld [vmem:[%s437 + $0x38] sm:$0xff]
        %v497 = vpack.c.bf16 %v493, %v489
        %v498 = vpack.c.bf16 %v494, %v490
        %v499 = vpack.c.bf16 %v495, %v491
        %v500 = vpack.c.bf16 %v496, %v492
        %v501 = vld [vmem:[#allocation6] sm:$0xf]
        %v502 = vld [vmem:[#allocation6 + $0x4] sm:$0xf]
        %v503 = vld [vmem:[#allocation6 + $0x8] sm:$0xf]
        %v504 = vld [vmem:[#allocation6 + $0xc] sm:$0xf]
        %v505 = vld [vmem:[#allocation6 + $0x10] sm:$0xf]
        %v506 = vld [vmem:[#allocation6 + $0x14] sm:$0xf]
        %v507 = vld [vmem:[#allocation6 + $0x18] sm:$0xf]
        %v508 = vld [vmem:[#allocation6 + $0x1c] sm:$0xf]
        %v509 = vld [vmem:[#allocation6 + $0x20] sm:$0xf]
        %v510 = vld [vmem:[#allocation6 + $0x24] sm:$0xf]
        %v511 = vld [vmem:[#allocation6 + $0x28] sm:$0xf]
        %v512 = vld [vmem:[#allocation6 + $0x2c] sm:$0xf]
        %v513 = vld [vmem:[#allocation6 + $0x30] sm:$0xf]
        %v514 = vld [vmem:[#allocation6 + $0x34] sm:$0xf]
        %v515 = vld [vmem:[#allocation6 + $0x38] sm:$0xf]
        %v516 = vld [vmem:[#allocation6 + $0x3c] sm:$0xf]
        %v517 = vld [vmem:[#allocation6 + $0x40] sm:$0xf]
        %v518 = vld [vmem:[#allocation6 + $0x44] sm:$0xf]
        %v519 = vld [vmem:[#allocation6 + $0x48] sm:$0xf]
        %v520 = vld [vmem:[#allocation6 + $0x4c] sm:$0xf]
        %v521 = vld [vmem:[#allocation6 + $0x50] sm:$0xf]
        %v522 = vld [vmem:[#allocation6 + $0x54] sm:$0xf]
        %v523 = vld [vmem:[#allocation6 + $0x58] sm:$0xf]
        %v524 = vld [vmem:[#allocation6 + $0x5c] sm:$0xf]
        %v525 = vld [vmem:[#allocation6 + $0x60] sm:$0xf]
        %v526 = vld [vmem:[#allocation6 + $0x64] sm:$0xf]
        %v527 = vld [vmem:[#allocation6 + $0x68] sm:$0xf]
        %v528 = vld [vmem:[#allocation6 + $0x6c] sm:$0xf]
        %v529 = vld [vmem:[#allocation6 + $0x70] sm:$0xf]
        %v530 = vld [vmem:[#allocation6 + $0x74] sm:$0xf]
        %v531 = vld [vmem:[#allocation6 + $0x78] sm:$0xf]
        %v532 = vld [vmem:[#allocation6 + $0x7c] sm:$0xf]
        %v533 = vld [vmem:[#allocation6 + $0x80] sm:$0xf]
        %v534 = vld [vmem:[#allocation6 + $0x84] sm:$0xf]
        %v535 = vld [vmem:[#allocation6 + $0x88] sm:$0xf]
        %v536 = vld [vmem:[#allocation6 + $0x8c] sm:$0xf]
        %v537 = vld [vmem:[#allocation6 + $0x90] sm:$0xf]
        %v538 = vld [vmem:[#allocation6 + $0x94] sm:$0xf]
        %v539 = vld [vmem:[#allocation6 + $0x98] sm:$0xf]
        %v540 = vld [vmem:[#allocation6 + $0x9c] sm:$0xf]
        %v541 = vld [vmem:[#allocation6 + $0xa0] sm:$0xf]
        %v542 = vld [vmem:[#allocation6 + $0xa4] sm:$0xf]
        %v543 = vld [vmem:[#allocation6 + $0xa8] sm:$0xf]
        %v544 = vld [vmem:[#allocation6 + $0xac] sm:$0xf]
        %v545 = vld [vmem:[#allocation6 + $0xb0] sm:$0xf]
        %v546 = vld [vmem:[#allocation6 + $0xb4] sm:$0xf]
        %v547 = vld [vmem:[#allocation6 + $0xb8] sm:$0xf]
        %v548 = vld [vmem:[#allocation6 + $0xbc] sm:$0xf]
        %v549 = vld [vmem:[#allocation6 + $0xc0] sm:$0xf]
        %v550 = vld [vmem:[#allocation6 + $0xc4] sm:$0xf]
        %v551 = vld [vmem:[#allocation6 + $0xc8] sm:$0xf]
        %v552 = vld [vmem:[#allocation6 + $0xcc] sm:$0xf]
        %v553 = vld [vmem:[#allocation6 + $0xd0] sm:$0xf]
        %v554 = vld [vmem:[#allocation6 + $0xd4] sm:$0xf]
        %v555 = vld [vmem:[#allocation6 + $0xd8] sm:$0xf]
        %v556 = vld [vmem:[#allocation6 + $0xdc] sm:$0xf]
        %v557 = vld [vmem:[#allocation6 + $0xe0] sm:$0xf]
        %v558 = vld [vmem:[#allocation6 + $0xe4] sm:$0xf]
        %v559 = vld [vmem:[#allocation6 + $0xe8] sm:$0xf]
        %v560 = vld [vmem:[#allocation6 + $0xec] sm:$0xf]
        %v561 = vld [vmem:[#allocation6 + $0xf0] sm:$0xf]
        %v562 = vld [vmem:[#allocation6 + $0xf4] sm:$0xf]
        %v563 = vld [vmem:[#allocation6 + $0xf8] sm:$0xf]
        %v564 = vld [vmem:[#allocation6 + $0xfc] sm:$0xf]
        %v629 = vunpack.c.l.b16 %v501
        %v630 = vunpack.c.l.b16 %v502
        %v631 = vunpack.c.l.b16 %v503
        %v632 = vunpack.c.l.b16 %v504
        %v633 = vunpack.c.l.b16 %v505
        %v634 = vunpack.c.l.b16 %v506
        %v635 = vunpack.c.l.b16 %v507
        %v636 = vunpack.c.l.b16 %v508
        %v637 = vunpack.c.l.b16 %v509
        %v638 = vunpack.c.l.b16 %v510
        %v639 = vunpack.c.l.b16 %v511
        %v640 = vunpack.c.l.b16 %v512
        %v641 = vunpack.c.l.b16 %v513
        %v642 = vunpack.c.l.b16 %v514
        %v643 = vunpack.c.l.b16 %v515
        %v644 = vunpack.c.l.b16 %v516
        %v645 = vunpack.c.l.b16 %v517
        %v646 = vunpack.c.l.b16 %v518
        %v647 = vunpack.c.l.b16 %v519
        %v648 = vunpack.c.l.b16 %v520
        %v649 = vunpack.c.l.b16 %v521
        %v650 = vunpack.c.l.b16 %v522
        %v651 = vunpack.c.l.b16 %v523
        %v652 = vunpack.c.l.b16 %v524
        %v653 = vunpack.c.l.b16 %v525
        %v654 = vunpack.c.l.b16 %v526
        %v655 = vunpack.c.l.b16 %v527
        %v656 = vunpack.c.l.b16 %v528
        %v657 = vunpack.c.l.b16 %v529
        %v658 = vunpack.c.l.b16 %v530
        %v659 = vunpack.c.l.b16 %v531
        %v660 = vunpack.c.l.b16 %v532
        %v661 = vunpack.c.l.b16 %v533
        %v662 = vunpack.c.l.b16 %v534
        %v663 = vunpack.c.l.b16 %v535
        %v664 = vunpack.c.l.b16 %v536
        %v665 = vunpack.c.l.b16 %v537
        %v666 = vunpack.c.l.b16 %v538
        %v667 = vunpack.c.l.b16 %v539
        %v668 = vunpack.c.l.b16 %v540
        %v669 = vunpack.c.l.b16 %v541
        %v670 = vunpack.c.l.b16 %v542
        %v671 = vunpack.c.l.b16 %v543
        %v672 = vunpack.c.l.b16 %v544
        %v673 = vunpack.c.l.b16 %v545
        %v674 = vunpack.c.l.b16 %v546
        %v675 = vunpack.c.l.b16 %v547
        %v676 = vunpack.c.l.b16 %v548
        %v677 = vunpack.c.l.b16 %v549
        %v678 = vunpack.c.l.b16 %v550
        %v679 = vunpack.c.l.b16 %v551
        %v680 = vunpack.c.l.b16 %v552
        %v681 = vunpack.c.l.b16 %v553
        %v682 = vunpack.c.l.b16 %v554
        %v683 = vunpack.c.l.b16 %v555
        %v684 = vunpack.c.l.b16 %v556
        %v685 = vunpack.c.l.b16 %v557
        %v686 = vunpack.c.l.b16 %v558
        %v687 = vunpack.c.l.b16 %v559
        %v688 = vunpack.c.l.b16 %v560
        %v689 = vunpack.c.l.b16 %v561
        %v690 = vunpack.c.l.b16 %v562
        %v691 = vunpack.c.l.b16 %v563
        %v692 = vunpack.c.l.b16 %v564
        %v693 = vpack.c.b16 %v630, %v629
        %v694 = vpack.c.b16 %v632, %v631
        %v695 = vpack.c.b16 %v634, %v633
        %v696 = vpack.c.b16 %v636, %v635
        %v697 = vpack.c.b16 %v638, %v637
        %v698 = vpack.c.b16 %v640, %v639
        %v699 = vpack.c.b16 %v642, %v641
        %v700 = vpack.c.b16 %v644, %v643
        %v701 = vpack.c.b16 %v646, %v645
        %v702 = vpack.c.b16 %v648, %v647
        %v703 = vpack.c.b16 %v650, %v649
        %v704 = vpack.c.b16 %v652, %v651
        %v705 = vpack.c.b16 %v654, %v653
        %v706 = vpack.c.b16 %v656, %v655
        %v707 = vpack.c.b16 %v658, %v657
        %v708 = vpack.c.b16 %v660, %v659
        %v709 = vpack.c.b16 %v662, %v661
        %v710 = vpack.c.b16 %v664, %v663
        %v711 = vpack.c.b16 %v666, %v665
        %v712 = vpack.c.b16 %v668, %v667
        %v713 = vpack.c.b16 %v670, %v669
        %v714 = vpack.c.b16 %v672, %v671
        %v715 = vpack.c.b16 %v674, %v673
        %v716 = vpack.c.b16 %v676, %v675
        %v717 = vpack.c.b16 %v678, %v677
        %v718 = vpack.c.b16 %v680, %v679
        %v719 = vpack.c.b16 %v682, %v681
        %v720 = vpack.c.b16 %v684, %v683
        %v721 = vpack.c.b16 %v686, %v685
        %v722 = vpack.c.b16 %v688, %v687
        %v723 = vpack.c.b16 %v690, %v689
        %v724 = vpack.c.b16 %v692, %v691
        %757 = vmatprep.subr.bf16.mxu0 0
        %758 = vmatpush1.bf16.msra.mxu0 %v700
        %759 = vmatprep.subr.bf16.mxu0 0
        %760 = vmatpush1.bf16.msra.mxu0 %v699
        %761 = vmatprep.subr.bf16.mxu0 0
        %762 = vmatpush1.bf16.msra.mxu0 %v698
        %763 = vmatprep.subr.bf16.mxu0 0
        %764 = vmatpush1.bf16.msra.mxu0 %v697
        %765 = vmatprep.subr.bf16.mxu0 0
        %766 = vmatpush1.bf16.msra.mxu0 %v696
        %767 = vmatprep.subr.bf16.mxu0 0
        %768 = vmatpush1.bf16.msra.mxu0 %v695
        %769 = vmatprep.subr.bf16.mxu0 0
        %770 = vmatpush1.bf16.msra.mxu0 %v694
        %771 = vmatprep.subr.bf16.mxu0 0
        %772 = vmatpush1.bf16.msra.mxu0 %v693
        %773 = vmatprep.subr.bf16.mxu0 0
        %774 = vmatpush2.bf16.msra.mxu0 %v708
        %775 = vmatprep.subr.bf16.mxu0 0
        %776 = vmatpush2.bf16.msra.mxu0 %v707
        %777 = vmatprep.subr.bf16.mxu0 0
        %778 = vmatpush2.bf16.msra.mxu0 %v706
        %779 = vmatprep.subr.bf16.mxu0 0
        %780 = vmatpush2.bf16.msra.mxu0 %v705
        %781 = vmatprep.subr.bf16.mxu0 0
        %782 = vmatpush2.bf16.msra.mxu0 %v704
        %783 = vmatprep.subr.bf16.mxu0 0
        %784 = vmatpush2.bf16.msra.mxu0 %v703
        %785 = vmatprep.subr.bf16.mxu0 0
        %786 = vmatpush2.bf16.msra.mxu0 %v702
        %787 = vmatprep.subr.bf16.mxu0 0
        %788 = vmatpush2.bf16.msra.mxu0 %v701
        %789 = vmatprep.mubr.bf16.mxu0 %v498
        %790 = vmatmul.mubr.bf16.gmra.mxu0 %v497
        %v791 = vpop.f32.mrf.mxu0
        %v792 = vadd.f32 0.0, %v791
        %v793 = vpop.f32.mrf.mxu0
        %v794 = vpop.f32.mrf.mxu0
        %v795 = vadd.f32 0.0, %v794
        %v796 = vpop.f32.mrf.mxu0
        %797 = vdwg.mxu0
        %798 = vmatprep.subr.bf16.mxu0 0
        %799 = vmatpush1.bf16.msra.mxu0 %v716
        %800 = vmatprep.subr.bf16.mxu0 0
        %801 = vmatpush1.bf16.msra.mxu0 %v715
        %802 = vmatprep.subr.bf16.mxu0 0
        %803 = vmatpush1.bf16.msra.mxu0 %v714
        %804 = vmatprep.subr.bf16.mxu0 0
        %805 = vmatpush1.bf16.msra.mxu0 %v713
        %806 = vmatprep.subr.bf16.mxu0 0
        %807 = vmatpush1.bf16.msra.mxu0 %v712
        %808 = vmatprep.subr.bf16.mxu0 0
        %809 = vmatpush1.bf16.msra.mxu0 %v711
        %810 = vmatprep.subr.bf16.mxu0 0
        %811 = vmatpush1.bf16.msra.mxu0 %v710
        %812 = vmatprep.subr.bf16.mxu0 0
        %813 = vmatpush1.bf16.msra.mxu0 %v709
        %814 = vmatprep.subr.bf16.mxu0 0
        %815 = vmatpush2.bf16.msra.mxu0 %v724
        %816 = vmatprep.subr.bf16.mxu0 0
        %817 = vmatpush2.bf16.msra.mxu0 %v723
        %818 = vmatprep.subr.bf16.mxu0 0
        %819 = vmatpush2.bf16.msra.mxu0 %v722
        %820 = vmatprep.subr.bf16.mxu0 0
        %821 = vmatpush2.bf16.msra.mxu0 %v721
        %822 = vmatprep.subr.bf16.mxu0 0
        %823 = vmatpush2.bf16.msra.mxu0 %v720
        %824 = vmatprep.subr.bf16.mxu0 0
        %825 = vmatpush2.bf16.msra.mxu0 %v719
        %826 = vmatprep.subr.bf16.mxu0 0
        %827 = vmatpush2.bf16.msra.mxu0 %v718
        %828 = vmatprep.subr.bf16.mxu0 0
        %829 = vmatpush2.bf16.msra.mxu0 %v717
        %830 = vmatprep.mubr.bf16.mxu0 %v500
        %831 = vmatmul.mubr.bf16.gmra.mxu0 %v499
        %v832 = vpop.f32.mrf.mxu0
        %v833 = vadd.f32 %v792, %v832
        %v834 = vpop.f32.mrf.mxu0
        %v835 = vpop.f32.mrf.mxu0
        %v836 = vadd.f32 %v795, %v835
        %v837 = vpop.f32.mrf.mxu0
        %838 = vdwg.mxu0
        %v839 = vld [vmem:[%s2] sm:$0x1]
        %v841 = vlaneseq
        %v842 = vshrl.u32 %v841, 7
        %v843 = vsub.s32 0, %v842
        %v844 = vrot.slane %v839, %v843
        %v846 = vmul.f32 %v833, %v844
        %v847 = vmul.f32 %v836, %v844
        %v848 = vld [vmem:[%s3] sm:$0x1]
        %v850 = vlaneseq
        %v851 = vshrl.u32 %v850, 7
        %v852 = vsub.s32 0, %v851
        %v853 = vrot.slane %v848, %v852
        %v855 = vadd.f32 %v846, %v853
        %v856 = vadd.f32 %v847, %v853
        %vm857 = vcmp.ge.f32.partialorder %v855, 0.0
        %vm858 = vcmp.ge.f32.partialorder %v856, 0.0
        %v859 = vld [vmem:[%s4] sm:$0x1]
        %v861 = vlaneseq
        %v862 = vshrl.u32 %v861, 7
        %v863 = vsub.s32 0, %v862
        %v864 = vrot.slane %v859, %v863
        %v866 = vmul.f32 %v864, %v855
        %v867 = vmul.f32 %v864, %v856
        %v868 = vsel %vm857, %v855, %v866
        %v869 = vsel %vm858, %v856, %v867
        %870 = vst [vmem:[#allocation2] sm:$0x7] 0.0
        %vm871 = vcmask 387072
        %872 = vst.msk [vmem:[#allocation2 + $0x8] sm:$0x7] %vm871, 0.0
        %873 = vst [vmem:[#allocation2 + $0x20] sm:$0x38] 0.0
        %vm874 = vcmask 390147
        %875 = vst.msk [vmem:[#allocation2 + $0x28] sm:$0x38] %vm874, 0.0
        %vm876 = vcmask 195584
        %877 = vst.msk [vmem:[#allocation2] sm:$0xff] %vm876, 0.0
        %878 = vst.msk [vmem:[#allocation2 + $0x10] sm:$0xff] %vm876, 0.0
        %vm879 = vcmask 193536
        %880 = vst.msk [vmem:[#allocation2 + $0x20] sm:$0x3f] %vm879, 0.0
        %vm881 = vcmask 392384
        %882 = vst.msk [vmem:[#allocation2 + $0x8] sm:$0xff] %vm881, 0.0
        %883 = vst.msk [vmem:[#allocation2 + $0x18] sm:$0xff] %vm881, 0.0
        %vm884 = vcmask 390336
        %885 = vst.msk [vmem:[#allocation2 + $0x28] sm:$0x3f] %vm884, 0.0
        %vm888 = vcmask 1042432
        %v889 = vrot.slane %v868, 5
        %v890 = vrot.slane %v869, 5
        %v891 = vsel %vm888, %v889, %v890
        %892 = vrot.lane.b32.xlu0 %v889, 24
        %v893 = vpop.permute.xlu0 %892
        %894 = vrot.lane.b32.xlu0 %v891, 24
        %v895 = vpop.permute.xlu0 %894
        %896 = vrot.lane.b32.xlu0 %v890, 24
        %v897 = vpop.permute.xlu0 %896
        %vm901 = vcmask 1047747
        %902 = vst.msk [vmem:[#allocation2] sm:$0xf8] %vm901, %v893
        %vm903 = vcmask 195587
        %904 = vst.msk [vmem:[#allocation2 + $0x8] sm:$0xf8] %vm903, %v893
        %vm905 = vcmask 1047744
        %906 = vst.msk [vmem:[#allocation2 + $0x10] sm:$0xff] %vm905, %v895
        %907 = vst.msk [vmem:[#allocation2 + $0x18] sm:$0xff] %vm876, %v895
        %vm908 = vcmask 1042624
        %909 = vst.msk [vmem:[#allocation2 + $0x20] sm:$0x7] %vm908, %v897
        %vm910 = vcmask 190464
        %911 = vst.msk [vmem:[#allocation2 + $0x28] sm:$0x7] %vm910, %v897
        %v912 = vld [vmem:[#allocation2] sm:$0xfc]
        %v913 = vld [vmem:[#allocation2 + $0x8] sm:$0xfc]
        %v914 = vld [vmem:[#allocation2 + $0x10] sm:$0xff]
        %v915 = vld [vmem:[#allocation2 + $0x18] sm:$0xff]
        %v916 = vld [vmem:[#allocation2 + $0x20] sm:$0x3]
        %v917 = vld [vmem:[#allocation2 + $0x28] sm:$0x3]
        %v918 = vld [vmem:[%s5] sm:$0x1]
        %v919 = vlaneseq
        %v920 = vshrl.u32 %v919, 7
        %v921 = vsub.s32 0, %v920
        %v922 = vrot.slane %v918, %v921
        %924 = vrot.lane.b32.xlu0 %v922, 16
        %v925 = vpop.permute.xlu0 %924
        %v927 = vmul.f32 %v912, %v925
        %v928 = vmul.f32 %v913, %v925
        %v929 = vmul.f32 %v914, %v925
        %v930 = vmul.f32 %v915, %v925
        %v931 = vmul.f32 %v916, %v925
        %v932 = vmul.f32 %v917, %v925
        %v933 = vadd.f32 %v927, 0.0
        %v934 = vadd.f32 %v928, 0.0
        %v935 = vadd.f32 %v929, 0.0
        %v936 = vadd.f32 %v930, 0.0
        %v937 = vadd.f32 %v931, 0.0
        %v938 = vadd.f32 %v932, 0.0
        %s939 = scalar_lea.vmem %s5, 16
        %v940 = vld [vmem:[%s939] sm:$0x1]
        %v941 = vlaneseq
        %v942 = vshrl.u32 %v941, 7
        %v943 = vsub.s32 0, %v942
        %v944 = vrot.slane %v940, %v943
        %946 = vrot.lane.b32.xlu0 %v944, 16
        %v947 = vpop.permute.xlu0 %946
        %v949 = vmul.f32 %v912, %v947
        %v950 = vmul.f32 %v913, %v947
        %v951 = vmul.f32 %v914, %v947
        %v952 = vmul.f32 %v915, %v947
        %v953 = vmul.f32 %v916, %v947
        %v954 = vmul.f32 %v917, %v947
        %v955 = vadd.f32 %v949, 0.0
        %v956 = vadd.f32 %v950, 0.0
        %v957 = vadd.f32 %v951, 0.0
        %v958 = vadd.f32 %v952, 0.0
        %v959 = vadd.f32 %v953, 0.0
        %v960 = vadd.f32 %v954, 0.0
        %v961 = vld [vmem:[#allocation2] sm:$0xfe]
        %v962 = vld [vmem:[#allocation2 + $0x8] sm:$0xfe]
        %v963 = vld [vmem:[#allocation2 + $0x20] sm:$0x1]
        %v964 = vld [vmem:[#allocation2 + $0x28] sm:$0x1]
        %s965 = scalar_lea.vmem %s5, 32
        %v966 = vld [vmem:[%s965] sm:$0x1]
        %v967 = vlaneseq
        %v968 = vshrl.u32 %v967, 7
        %v969 = vsub.s32 0, %v968
        %v970 = vrot.slane %v966, %v969
        %972 = vrot.lane.b32.xlu0 %v970, 8
        %v973 = vpop.permute.xlu0 %972
        %v975 = vmul.f32 %v961, %v973
        %v976 = vmul.f32 %v962, %v973
        %v977 = vmul.f32 %v914, %v973
        %v978 = vmul.f32 %v915, %v973
        %v979 = vmul.f32 %v963, %v973
        %v980 = vmul.f32 %v964, %v973
        %v981 = vadd.f32 %v975, 0.0
        %v982 = vadd.f32 %v976, 0.0
        %v983 = vadd.f32 %v977, 0.0
        %v984 = vadd.f32 %v978, 0.0
        %v985 = vadd.f32 %v979, 0.0
        %v986 = vadd.f32 %v980, 0.0
        %v987 = vld [vmem:[#allocation2] sm:$0xff]
        %s988 = scalar_lea.vmem %s5, 48
        %v989 = vld [vmem:[%s988] sm:$0x1]
        %v990 = vlaneseq
        %v991 = vshrl.u32 %v990, 7
        %v992 = vsub.s32 0, %v991
        %v993 = vrot.slane %v989, %v992
        %v994 = vmul.f32 %v987, %v993
        %v995 = vmul.f32 %v914, %v993
        %v996 = vadd.f32 %v994, 0.0
        %v997 = vadd.f32 %v995, 0.0
        %v998 = vld [vmem:[%s5 + $0x1] sm:$0x1]
        %v999 = vlaneseq
        %v1000 = vshrl.u32 %v999, 7
        %v1001 = vsub.s32 0, %v1000
        %v1002 = vrot.slane %v998, %v1001
        %1004 = vrot.lane.b32.xlu0 %v1002, 24
        %v1005 = vpop.permute.xlu0 %1004
        %v1007 = vmul.f32 %v912, %v1005
        %v1008 = vmul.f32 %v913, %v1005
        %v1009 = vmul.f32 %v914, %v1005
        %v1010 = vmul.f32 %v915, %v1005
        %v1011 = vmul.f32 %v916, %v1005
        %v1012 = vmul.f32 %v917, %v1005
        %1019 = vrot.lane.b32.xlu0 %v1007, 120
        %v1020 = vpop.permute.xlu0 %1019
        %1021 = vrot.lane.b32.xlu0 %v1008, 120
        %v1022 = vpop.permute.xlu0 %1021
        %1023 = vrot.lane.b32.xlu0 %v1009, 120
        %v1024 = vpop.permute.xlu0 %1023
        %1025 = vrot.lane.b32.xlu0 %v1010, 120
        %v1026 = vpop.permute.xlu0 %1025
        %1027 = vrot.lane.b32.xlu0 %v1011, 120
        %v1028 = vpop.permute.xlu0 %1027
        %1029 = vrot.lane.b32.xlu0 %v1012, 120
        %v1030 = vpop.permute.xlu0 %1029
        %vm1031 = vcmask 982016
        %v1032 = vsel %vm1031, %v1020, %v1022
        %v1033 = vsel %vm1031, %v1024, %v1026
        %v1034 = vsel %vm1031, %v1028, %v1030
        %v1041 = vadd.f32 %v933, %v1032
        %v1042 = vadd.f32 %v934, %v1022
        %v1043 = vadd.f32 %v935, %v1033
        %v1044 = vadd.f32 %v936, %v1026
        %v1045 = vadd.f32 %v937, %v1034
        %v1046 = vadd.f32 %v938, %v1030
        %v1047 = vld [vmem:[%s939 + $0x1] sm:$0x1]
        %v1048 = vlaneseq
        %v1049 = vshrl.u32 %v1048, 7
        %v1050 = vsub.s32 0, %v1049
        %v1051 = vrot.slane %v1047, %v1050
        %1053 = vrot.lane.b32.xlu0 %v1051, 24
        %v1054 = vpop.permute.xlu0 %1053
        %v1056 = vmul.f32 %v912, %v1054
        %v1057 = vmul.f32 %v913, %v1054
        %v1058 = vmul.f32 %v914, %v1054
        %v1059 = vmul.f32 %v915, %v1054
        %v1060 = vmul.f32 %v916, %v1054
        %v1061 = vmul.f32 %v917, %v1054
        %1068 = vrot.lane.b32.xlu0 %v1056, 120
        %v1069 = vpop.permute.xlu0 %1068
        %1070 = vrot.lane.b32.xlu0 %v1057, 120
        %v1071 = vpop.permute.xlu0 %1070
        %1072 = vrot.lane.b32.xlu0 %v1058, 120
        %v1073 = vpop.permute.xlu0 %1072
        %1074 = vrot.lane.b32.xlu0 %v1059, 120
        %v1075 = vpop.permute.xlu0 %1074
        %1076 = vrot.lane.b32.xlu0 %v1060, 120
        %v1077 = vpop.permute.xlu0 %1076
        %1078 = vrot.lane.b32.xlu0 %v1061, 120
        %v1079 = vpop.permute.xlu0 %1078
        %v1080 = vsel %vm1031, %v1069, %v1071
        %v1081 = vsel %vm1031, %v1073, %v1075
        %v1082 = vsel %vm1031, %v1077, %v1079
        %v1089 = vadd.f32 %v955, %v1080
        %v1090 = vadd.f32 %v956, %v1071
        %v1091 = vadd.f32 %v957, %v1081
        %v1092 = vadd.f32 %v958, %v1075
        %v1093 = vadd.f32 %v959, %v1082
        %v1094 = vadd.f32 %v960, %v1079
        %v1095 = vld [vmem:[%s965 + $0x1] sm:$0x1]
        %v1096 = vlaneseq
        %v1097 = vshrl.u32 %v1096, 7
        %v1098 = vsub.s32 0, %v1097
        %v1099 = vrot.slane %v1095, %v1098
        %1101 = vrot.lane.b32.xlu0 %v1099, 24
        %v1102 = vpop.permute.xlu0 %1101
        %v1104 = vmul.f32 %v961, %v1102
        %v1105 = vmul.f32 %v962, %v1102
        %v1106 = vmul.f32 %v914, %v1102
        %v1107 = vmul.f32 %v915, %v1102
        %v1108 = vmul.f32 %v963, %v1102
        %v1109 = vmul.f32 %v964, %v1102
        %1116 = vrot.lane.b32.xlu0 %v1104, 112
        %v1117 = vpop.permute.xlu0 %1116
        %1118 = vrot.lane.b32.xlu0 %v1105, 112
        %v1119 = vpop.permute.xlu0 %1118
        %1120 = vrot.lane.b32.xlu0 %v1106, 112
        %v1121 = vpop.permute.xlu0 %1120
        %1122 = vrot.lane.b32.xlu0 %v1107, 112
        %v1123 = vpop.permute.xlu0 %1122
        %1124 = vrot.lane.b32.xlu0 %v1108, 112
        %v1125 = vpop.permute.xlu0 %1124
        %1126 = vrot.lane.b32.xlu0 %v1109, 112
        %v1127 = vpop.permute.xlu0 %1126
        %vm1128 = vcmask 916480
        %v1129 = vsel %vm1128, %v1117, %v1119
        %v1130 = vsel %vm1128, %v1121, %v1123
        %v1131 = vsel %vm1128, %v1125, %v1127
        %v1138 = vadd.f32 %v981, %v1129
        %v1139 = vadd.f32 %v982, %v1119
        %v1140 = vadd.f32 %v983, %v1130
        %v1141 = vadd.f32 %v984, %v1123
        %v1142 = vadd.f32 %v985, %v1131
        %v1143 = vadd.f32 %v986, %v1127
        %v1144 = vld [vmem:[#allocation2 + $0x8] sm:$0xff]
        %v1145 = vld [vmem:[%s988 + $0x1] sm:$0x1]
        %v1146 = vlaneseq
        %v1147 = vshrl.u32 %v1146, 7
        %v1148 = vsub.s32 0, %v1147
        %v1149 = vrot.slane %v1145, %v1148
        %1151 = vrot.lane.b32.xlu0 %v1149, 24
        %v1152 = vpop.permute.xlu0 %1151
        %v1154 = vmul.f32 %v987, %v1152
        %v1155 = vmul.f32 %v1144, %v1152
        %v1156 = vmul.f32 %v914, %v1152
        %v1157 = vmul.f32 %v915, %v1152
        %1162 = vrot.lane.b32.xlu0 %v1154, 104
        %v1163 = vpop.permute.xlu0 %1162
        %1164 = vrot.lane.b32.xlu0 %v1155, 104
        %v1165 = vpop.permute.xlu0 %1164
        %1166 = vrot.lane.b32.xlu0 %v1156, 104
        %v1167 = vpop.permute.xlu0 %1166
        %1168 = vrot.lane.b32.xlu0 %v1157, 104
        %v1169 = vpop.permute.xlu0 %1168
        %vm1170 = vcmask 850944
        %v1171 = vsel %vm1170, %v1163, %v1165
        %v1172 = vsel %vm1170, %v1167, %v1169
        %v1175 = vadd.f32 %v996, %v1171
        %v1176 = vadd.f32 %v997, %v1172
        %v1177 = vld [vmem:[%s5 + $0x2] sm:$0x1]
        %v1178 = vlaneseq
        %v1179 = vshrl.u32 %v1178, 7
        %v1180 = vsub.s32 0, %v1179
        %v1181 = vrot.slane %v1177, %v1180
        %1183 = vrot.lane.b32.xlu0 %v1181, 32
        %v1184 = vpop.permute.xlu0 %1183
        %v1186 = vmul.f32 %v912, %v1184
        %v1187 = vmul.f32 %v913, %v1184
        %v1188 = vmul.f32 %v914, %v1184
        %v1189 = vmul.f32 %v915, %v1184
        %v1190 = vmul.f32 %v916, %v1184
        %v1191 = vmul.f32 %v917, %v1184
        %1198 = vrot.lane.b32.xlu0 %v1186, 112
        %v1199 = vpop.permute.xlu0 %1198
        %1200 = vrot.lane.b32.xlu0 %v1187, 112
        %v1201 = vpop.permute.xlu0 %1200
        %1202 = vrot.lane.b32.xlu0 %v1188, 112
        %v1203 = vpop.permute.xlu0 %1202
        %1204 = vrot.lane.b32.xlu0 %v1189, 112
        %v1205 = vpop.permute.xlu0 %1204
        %1206 = vrot.lane.b32.xlu0 %v1190, 112
        %v1207 = vpop.permute.xlu0 %1206
        %1208 = vrot.lane.b32.xlu0 %v1191, 112
        %v1209 = vpop.permute.xlu0 %1208
        %v1210 = vsel %vm1128, %v1199, %v1201
        %v1211 = vsel %vm1128, %v1203, %v1205
        %v1212 = vsel %vm1128, %v1207, %v1209
        %v1219 = vadd.f32 %v1041, %v1210
        %v1220 = vadd.f32 %v1042, %v1201
        %v1221 = vadd.f32 %v1043, %v1211
        %v1222 = vadd.f32 %v1044, %v1205
        %v1223 = vadd.f32 %v1045, %v1212
        %v1224 = vadd.f32 %v1046, %v1209
        %v1225 = vld [vmem:[%s939 + $0x2] sm:$0x1]
        %v1226 = vlaneseq
        %v1227 = vshrl.u32 %v1226, 7
        %v1228 = vsub.s32 0, %v1227
        %v1229 = vrot.slane %v1225, %v1228
        %1231 = vrot.lane.b32.xlu0 %v1229, 32
        %v1232 = vpop.permute.xlu0 %1231
        %v1234 = vmul.f32 %v912, %v1232
        %v1235 = vmul.f32 %v913, %v1232
        %v1236 = vmul.f32 %v914, %v1232
        %v1237 = vmul.f32 %v915, %v1232
        %v1238 = vmul.f32 %v916, %v1232
        %v1239 = vmul.f32 %v917, %v1232
        %1246 = vrot.lane.b32.xlu0 %v1234, 112
        %v1247 = vpop.permute.xlu0 %1246
        %1248 = vrot.lane.b32.xlu0 %v1235, 112
        %v1249 = vpop.permute.xlu0 %1248
        %1250 = vrot.lane.b32.xlu0 %v1236, 112
        %v1251 = vpop.permute.xlu0 %1250
        %1252 = vrot.lane.b32.xlu0 %v1237, 112
        %v1253 = vpop.permute.xlu0 %1252
        %1254 = vrot.lane.b32.xlu0 %v1238, 112
        %v1255 = vpop.permute.xlu0 %1254
        %1256 = vrot.lane.b32.xlu0 %v1239, 112
        %v1257 = vpop.permute.xlu0 %1256
        %v1258 = vsel %vm1128, %v1247, %v1249
        %v1259 = vsel %vm1128, %v1251, %v1253
        %v1260 = vsel %vm1128, %v1255, %v1257
        %v1267 = vadd.f32 %v1089, %v1258
        %v1268 = vadd.f32 %v1090, %v1249
        %v1269 = vadd.f32 %v1091, %v1259
        %v1270 = vadd.f32 %v1092, %v1253
        %v1271 = vadd.f32 %v1093, %v1260
        %v1272 = vadd.f32 %v1094, %v1257
        %v1273 = vld [vmem:[%s965 + $0x2] sm:$0x1]
        %v1274 = vlaneseq
        %v1275 = vshrl.u32 %v1274, 7
        %v1276 = vsub.s32 0, %v1275
        %v1277 = vrot.slane %v1273, %v1276
        %1279 = vrot.lane.b32.xlu0 %v1277, 40
        %v1280 = vpop.permute.xlu0 %1279
        %v1282 = vmul.f32 %v961, %v1280
        %v1283 = vmul.f32 %v962, %v1280
        %v1284 = vmul.f32 %v914, %v1280
        %v1285 = vmul.f32 %v915, %v1280
        %v1286 = vmul.f32 %v963, %v1280
        %v1287 = vmul.f32 %v964, %v1280
        %1294 = vrot.lane.b32.xlu0 %v1282, 96
        %v1295 = vpop.permute.xlu0 %1294
        %1296 = vrot.lane.b32.xlu0 %v1283, 96
        %v1297 = vpop.permute.xlu0 %1296
        %1298 = vrot.lane.b32.xlu0 %v1284, 96
        %v1299 = vpop.permute.xlu0 %1298
        %1300 = vrot.lane.b32.xlu0 %v1285, 96
        %v1301 = vpop.permute.xlu0 %1300
        %1302 = vrot.lane.b32.xlu0 %v1286, 96
        %v1303 = vpop.permute.xlu0 %1302
        %1304 = vrot.lane.b32.xlu0 %v1287, 96
        %v1305 = vpop.permute.xlu0 %1304
        %vm1306 = vcmask 785408
        %v1307 = vsel %vm1306, %v1295, %v1297
        %v1308 = vsel %vm1306, %v1299, %v1301
        %v1309 = vsel %vm1306, %v1303, %v1305
        %v1316 = vadd.f32 %v1138, %v1307
        %v1317 = vadd.f32 %v1139, %v1297
        %v1318 = vadd.f32 %v1140, %v1308
        %v1319 = vadd.f32 %v1141, %v1301
        %v1320 = vadd.f32 %v1142, %v1309
        %v1321 = vadd.f32 %v1143, %v1305
        %v1322 = vld [vmem:[%s988 + $0x2] sm:$0x1]
        %v1323 = vlaneseq
        %v1324 = vshrl.u32 %v1323, 7
        %v1325 = vsub.s32 0, %v1324
        %v1326 = vrot.slane %v1322, %v1325
        %1328 = vrot.lane.b32.xlu0 %v1326, 48
        %v1329 = vpop.permute.xlu0 %1328
        %v1331 = vmul.f32 %v987, %v1329
        %v1332 = vmul.f32 %v1144, %v1329
        %v1333 = vmul.f32 %v914, %v1329
        %v1334 = vmul.f32 %v915, %v1329
        %1339 = vrot.lane.b32.xlu0 %v1331, 80
        %v1340 = vpop.permute.xlu0 %1339
        %1341 = vrot.lane.b32.xlu0 %v1332, 80
        %v1342 = vpop.permute.xlu0 %1341
        %1343 = vrot.lane.b32.xlu0 %v1333, 80
        %v1344 = vpop.permute.xlu0 %1343
        %1345 = vrot.lane.b32.xlu0 %v1334, 80
        %v1346 = vpop.permute.xlu0 %1345
        %vm1347 = vcmask 654336
        %v1348 = vsel %vm1347, %v1340, %v1342
        %v1349 = vsel %vm1347, %v1344, %v1346
        %v1352 = vadd.f32 %v1175, %v1348
        %v1353 = vadd.f32 %v1176, %v1349
        %v1354 = vld [vmem:[#allocation2] sm:$0xf8]
        %v1355 = vld [vmem:[#allocation2 + $0x8] sm:$0xf8]
        %v1356 = vld [vmem:[#allocation2 + $0x20] sm:$0x7]
        %v1357 = vld [vmem:[#allocation2 + $0x28] sm:$0x7]
        %v1358 = vld [vmem:[%s5 + $0x3] sm:$0x1]
        %v1359 = vlaneseq
        %v1360 = vshrl.u32 %v1359, 7
        %v1361 = vsub.s32 0, %v1360
        %v1362 = vrot.slane %v1358, %v1361
        %1364 = vrot.lane.b32.xlu0 %v1362, 16
        %v1365 = vpop.permute.xlu0 %1364
        %v1367 = vmul.f32 %v1354, %v1365
        %v1368 = vmul.f32 %v1355, %v1365
        %v1369 = vmul.f32 %v914, %v1365
        %v1370 = vmul.f32 %v915, %v1365
        %v1371 = vmul.f32 %v1356, %v1365
        %v1372 = vmul.f32 %v1357, %v1365
        %vm1379 = vcmask 1046528
        %v1380 = vrot.slane %v1367, 1
        %v1381 = vrot.slane %v1369, 1
        %v1382 = vsel %vm1379, %v1380, %v1381
        %v1383 = vrot.slane %v1368, 1
        %v1384 = vrot.slane %v1370, 1
        %v1385 = vsel %vm1379, %v1383, %v1384
        %v1386 = vrot.slane %v1371, 1
        %v1387 = vsel %vm1379, %v1381, %v1386
        %v1388 = vrot.slane %v1372, 1
        %v1389 = vsel %vm1379, %v1384, %v1388
        %v1396 = vadd.f32 %v1219, %v1382
        %v1397 = vadd.f32 %v1220, %v1385
        %v1398 = vadd.f32 %v1221, %v1387
        %v1399 = vadd.f32 %v1222, %v1389
        %v1400 = vadd.f32 %v1223, %v1386
        %v1401 = vadd.f32 %v1224, %v1388
        %v1402 = vld [vmem:[%s939 + $0x3] sm:$0x1]
        %v1403 = vlaneseq
        %v1404 = vshrl.u32 %v1403, 7
        %v1405 = vsub.s32 0, %v1404
        %v1406 = vrot.slane %v1402, %v1405
        %1408 = vrot.lane.b32.xlu0 %v1406, 16
        %v1409 = vpop.permute.xlu0 %1408
        %v1411 = vmul.f32 %v1354, %v1409
        %v1412 = vmul.f32 %v1355, %v1409
        %v1413 = vmul.f32 %v914, %v1409
        %v1414 = vmul.f32 %v915, %v1409
        %v1415 = vmul.f32 %v1356, %v1409
        %v1416 = vmul.f32 %v1357, %v1409
        %v1423 = vrot.slane %v1411, 1
        %v1424 = vrot.slane %v1413, 1
        %v1425 = vsel %vm1379, %v1423, %v1424
        %v1426 = vrot.slane %v1412, 1
        %v1427 = vrot.slane %v1414, 1
        %v1428 = vsel %vm1379, %v1426, %v1427
        %v1429 = vrot.slane %v1415, 1
        %v1430 = vsel %vm1379, %v1424, %v1429
        %v1431 = vrot.slane %v1416, 1
        %v1432 = vsel %vm1379, %v1427, %v1431
        %v1439 = vadd.f32 %v1267, %v1425
        %v1440 = vadd.f32 %v1268, %v1428
        %v1441 = vadd.f32 %v1269, %v1430
        %v1442 = vadd.f32 %v1270, %v1432
        %v1443 = vadd.f32 %v1271, %v1429
        %v1444 = vadd.f32 %v1272, %v1431
        %v1445 = vld [vmem:[%s965 + $0x3] sm:$0x1]
        %v1446 = vlaneseq
        %v1447 = vshrl.u32 %v1446, 7
        %v1448 = vsub.s32 0, %v1447
        %v1449 = vrot.slane %v1445, %v1448
        %1451 = vrot.lane.b32.xlu0 %v1449, 8
        %v1452 = vpop.permute.xlu0 %1451
        %v1454 = vmul.f32 %v1354, %v1452
        %v1455 = vmul.f32 %v1355, %v1452
        %v1456 = vmul.f32 %v914, %v1452
        %v1457 = vmul.f32 %v915, %v1452
        %v1458 = vmul.f32 %v1356, %v1452
        %v1459 = vmul.f32 %v1357, %v1452
        %vm1466 = vcmask 1045504
        %v1467 = vrot.slane %v1454, 2
        %v1468 = vrot.slane %v1456, 2
        %v1469 = vsel %vm1466, %v1467, %v1468
        %v1470 = vrot.slane %v1455, 2
        %v1471 = vrot.slane %v1457, 2
        %v1472 = vsel %vm1466, %v1470, %v1471
        %v1473 = vrot.slane %v1458, 2
        %v1474 = vsel %vm1466, %v1468, %v1473
        %v1475 = vrot.slane %v1459, 2
        %v1476 = vsel %vm1466, %v1471, %v1475
        %v1483 = vadd.f32 %v1316, %v1469
        %v1484 = vadd.f32 %v1317, %v1472
        %v1485 = vadd.f32 %v1318, %v1474
        %v1486 = vadd.f32 %v1319, %v1476
        %v1487 = vadd.f32 %v1320, %v1473
        %v1488 = vadd.f32 %v1321, %v1475
        %v1489 = vld [vmem:[%s988 + $0x3] sm:$0x1]
        %v1490 = vlaneseq
        %v1491 = vshrl.u32 %v1490, 7
        %v1492 = vsub.s32 0, %v1491
        %v1493 = vrot.slane %v1489, %v1492
        %v1494 = vmul.f32 %v1354, %v1493
        %v1495 = vmul.f32 %v914, %v1493
        %v1496 = vmul.f32 %v1356, %v1493
        %vm1500 = vcmask 1044480
        %v1501 = vrot.slane %v1494, 3
        %v1502 = vrot.slane %v1495, 3
        %v1503 = vsel %vm1500, %v1501, %v1502
        %v1504 = vrot.slane %v1496, 3
        %v1505 = vsel %vm1500, %v1502, %v1504
        %v1508 = vadd.f32 %v1352, %v1503
        %v1509 = vadd.f32 %v1353, %v1505
        %v1510 = vld [vmem:[%s5 + $0x4] sm:$0x1]
        %v1511 = vlaneseq
        %v1512 = vshrl.u32 %v1511, 7
        %v1513 = vsub.s32 0, %v1512
        %v1514 = vrot.slane %v1510, %v1513
        %1516 = vrot.lane.b32.xlu0 %v1514, 24
        %v1517 = vpop.permute.xlu0 %1516
        %v1519 = vmul.f32 %v1354, %v1517
        %v1520 = vmul.f32 %v1355, %v1517
        %v1521 = vmul.f32 %v914, %v1517
        %v1522 = vmul.f32 %v915, %v1517
        %v1523 = vmul.f32 %v1356, %v1517
        %v1524 = vmul.f32 %v1357, %v1517
        %v1531 = vrot.slane %v1519, 1
        %v1532 = vrot.slane %v1521, 1
        %v1533 = vsel %vm1379, %v1531, %v1532
        %v1534 = vrot.slane %v1520, 1
        %v1535 = vrot.slane %v1522, 1
        %v1536 = vsel %vm1379, %v1534, %v1535
        %v1537 = vrot.slane %v1523, 1
        %v1538 = vsel %vm1379, %v1532, %v1537
        %v1539 = vrot.slane %v1524, 1
        %v1540 = vsel %vm1379, %v1535, %v1539
        %1541 = vrot.lane.b32.xlu0 %v1533, 120
        %v1542 = vpop.permute.xlu0 %1541
        %1543 = vrot.lane.b32.xlu0 %v1536, 120
        %v1544 = vpop.permute.xlu0 %1543
        %1545 = vrot.lane.b32.xlu0 %v1538, 120
        %v1546 = vpop.permute.xlu0 %1545
        %1547 = vrot.lane.b32.xlu0 %v1540, 120
        %v1548 = vpop.permute.xlu0 %1547
        %1549 = vrot.lane.b32.xlu0 %v1537, 120
        %v1550 = vpop.permute.xlu0 %1549
        %1551 = vrot.lane.b32.xlu0 %v1539, 120
        %v1552 = vpop.permute.xlu0 %1551
        %v1553 = vsel %vm1031, %v1542, %v1544
        %v1554 = vsel %vm1031, %v1546, %v1548
        %v1555 = vsel %vm1031, %v1550, %v1552
        %v1562 = vadd.f32 %v1396, %v1553
        %v1563 = vadd.f32 %v1397, %v1544
        %v1564 = vadd.f32 %v1398, %v1554
        %v1565 = vadd.f32 %v1399, %v1548
        %v1566 = vadd.f32 %v1400, %v1555
        %v1567 = vadd.f32 %v1401, %v1552
        %v1568 = vld [vmem:[%s939 + $0x4] sm:$0x1]
        %v1569 = vlaneseq
        %v1570 = vshrl.u32 %v1569, 7
        %v1571 = vsub.s32 0, %v1570
        %v1572 = vrot.slane %v1568, %v1571
        %1574 = vrot.lane.b32.xlu0 %v1572, 24
        %v1575 = vpop.permute.xlu0 %1574
        %v1577 = vmul.f32 %v1354, %v1575
        %v1578 = vmul.f32 %v1355, %v1575
        %v1579 = vmul.f32 %v914, %v1575
        %v1580 = vmul.f32 %v915, %v1575
        %v1581 = vmul.f32 %v1356, %v1575
        %v1582 = vmul.f32 %v1357, %v1575
        %v1589 = vrot.slane %v1577, 1
        %v1590 = vrot.slane %v1579, 1
        %v1591 = vsel %vm1379, %v1589, %v1590
        %v1592 = vrot.slane %v1578, 1
        %v1593 = vrot.slane %v1580, 1
        %v1594 = vsel %vm1379, %v1592, %v1593
        %v1595 = vrot.slane %v1581, 1
        %v1596 = vsel %vm1379, %v1590, %v1595
        %v1597 = vrot.slane %v1582, 1
        %v1598 = vsel %vm1379, %v1593, %v1597
        %1599 = vrot.lane.b32.xlu0 %v1591, 120
        %v1600 = vpop.permute.xlu0 %1599
        %1601 = vrot.lane.b32.xlu0 %v1594, 120
        %v1602 = vpop.permute.xlu0 %1601
        %1603 = vrot.lane.b32.xlu0 %v1596, 120
        %v1604 = vpop.permute.xlu0 %1603
        %1605 = vrot.lane.b32.xlu0 %v1598, 120
        %v1606 = vpop.permute.xlu0 %1605
        %1607 = vrot.lane.b32.xlu0 %v1595, 120
        %v1608 = vpop.permute.xlu0 %1607
        %1609 = vrot.lane.b32.xlu0 %v1597, 120
        %v1610 = vpop.permute.xlu0 %1609
        %v1611 = vsel %vm1031, %v1600, %v1602
        %v1612 = vsel %vm1031, %v1604, %v1606
        %v1613 = vsel %vm1031, %v1608, %v1610
        %v1620 = vadd.f32 %v1439, %v1611
        %v1621 = vadd.f32 %v1440, %v1602
        %v1622 = vadd.f32 %v1441, %v1612
        %v1623 = vadd.f32 %v1442, %v1606
        %v1624 = vadd.f32 %v1443, %v1613
        %v1625 = vadd.f32 %v1444, %v1610
        %v1626 = vld [vmem:[%s965 + $0x4] sm:$0x1]
        %v1627 = vlaneseq
        %v1628 = vshrl.u32 %v1627, 7
        %v1629 = vsub.s32 0, %v1628
        %v1630 = vrot.slane %v1626, %v1629
        %1632 = vrot.lane.b32.xlu0 %v1630, 24
        %v1633 = vpop.permute.xlu0 %1632
        %v1635 = vmul.f32 %v1354, %v1633
        %v1636 = vmul.f32 %v1355, %v1633
        %v1637 = vmul.f32 %v914, %v1633
        %v1638 = vmul.f32 %v915, %v1633
        %v1639 = vmul.f32 %v1356, %v1633
        %v1640 = vmul.f32 %v1357, %v1633
        %v1647 = vrot.slane %v1635, 2
        %v1648 = vrot.slane %v1637, 2
        %v1649 = vsel %vm1466, %v1647, %v1648
        %v1650 = vrot.slane %v1636, 2
        %v1651 = vrot.slane %v1638, 2
        %v1652 = vsel %vm1466, %v1650, %v1651
        %v1653 = vrot.slane %v1639, 2
        %v1654 = vsel %vm1466, %v1648, %v1653
        %v1655 = vrot.slane %v1640, 2
        %v1656 = vsel %vm1466, %v1651, %v1655
        %1657 = vrot.lane.b32.xlu0 %v1649, 112
        %v1658 = vpop.permute.xlu0 %1657
        %1659 = vrot.lane.b32.xlu0 %v1652, 112
        %v1660 = vpop.permute.xlu0 %1659
        %1661 = vrot.lane.b32.xlu0 %v1654, 112
        %v1662 = vpop.permute.xlu0 %1661
        %1663 = vrot.lane.b32.xlu0 %v1656, 112
        %v1664 = vpop.permute.xlu0 %1663
        %1665 = vrot.lane.b32.xlu0 %v1653, 112
        %v1666 = vpop.permute.xlu0 %1665
        %1667 = vrot.lane.b32.xlu0 %v1655, 112
        %v1668 = vpop.permute.xlu0 %1667
        %v1669 = vsel %vm1128, %v1658, %v1660
        %v1670 = vsel %vm1128, %v1662, %v1664
        %v1671 = vsel %vm1128, %v1666, %v1668
        %v1678 = vadd.f32 %v1483, %v1669
        %v1679 = vadd.f32 %v1484, %v1660
        %v1680 = vadd.f32 %v1485, %v1670
        %v1681 = vadd.f32 %v1486, %v1664
        %v1682 = vadd.f32 %v1487, %v1671
        %v1683 = vadd.f32 %v1488, %v1668
        %v1684 = vld [vmem:[%s988 + $0x4] sm:$0x1]
        %v1685 = vlaneseq
        %v1686 = vshrl.u32 %v1685, 7
        %v1687 = vsub.s32 0, %v1686
        %v1688 = vrot.slane %v1684, %v1687
        %1690 = vrot.lane.b32.xlu0 %v1688, 24
        %v1691 = vpop.permute.xlu0 %1690
        %v1693 = vmul.f32 %v1354, %v1691
        %v1694 = vmul.f32 %v1355, %v1691
        %v1695 = vmul.f32 %v914, %v1691
        %v1696 = vmul.f32 %v915, %v1691
        %v1697 = vmul.f32 %v1356, %v1691
        %v1698 = vmul.f32 %v1357, %v1691
        %v1705 = vrot.slane %v1693, 3
        %v1706 = vrot.slane %v1695, 3
        %v1707 = vsel %vm1500, %v1705, %v1706
        %v1708 = vrot.slane %v1694, 3
        %v1709 = vrot.slane %v1696, 3
        %v1710 = vsel %vm1500, %v1708, %v1709
        %v1711 = vrot.slane %v1697, 3
        %v1712 = vsel %vm1500, %v1706, %v1711
        %v1713 = vrot.slane %v1698, 3
        %v1714 = vsel %vm1500, %v1709, %v1713
        %1715 = vrot.lane.b32.xlu0 %v1707, 104
        %v1716 = vpop.permute.xlu0 %1715
        %1717 = vrot.lane.b32.xlu0 %v1710, 104
        %v1718 = vpop.permute.xlu0 %1717
        %1719 = vrot.lane.b32.xlu0 %v1712, 104
        %v1720 = vpop.permute.xlu0 %1719
        %1721 = vrot.lane.b32.xlu0 %v1714, 104
        %v1722 = vpop.permute.xlu0 %1721
        %v1723 = vsel %vm1170, %v1716, %v1718
        %v1724 = vsel %vm1170, %v1720, %v1722
        %v1727 = vadd.f32 %v1508, %v1723
        %v1728 = vadd.f32 %v1509, %v1724
        %v1729 = vld [vmem:[%s5 + $0x5] sm:$0x1]
        %v1730 = vlaneseq
        %v1731 = vshrl.u32 %v1730, 7
        %v1732 = vsub.s32 0, %v1731
        %v1733 = vrot.slane %v1729, %v1732
        %1735 = vrot.lane.b32.xlu0 %v1733, 32
        %v1736 = vpop.permute.xlu0 %1735
        %v1738 = vmul.f32 %v1354, %v1736
        %v1739 = vmul.f32 %v1355, %v1736
        %v1740 = vmul.f32 %v914, %v1736
        %v1741 = vmul.f32 %v915, %v1736
        %v1742 = vmul.f32 %v1356, %v1736
        %v1743 = vmul.f32 %v1357, %v1736
        %v1750 = vrot.slane %v1738, 1
        %v1751 = vrot.slane %v1740, 1
        %v1752 = vsel %vm1379, %v1750, %v1751
        %v1753 = vrot.slane %v1739, 1
        %v1754 = vrot.slane %v1741, 1
        %v1755 = vsel %vm1379, %v1753, %v1754
        %v1756 = vrot.slane %v1742, 1
        %v1757 = vsel %vm1379, %v1751, %v1756
        %v1758 = vrot.slane %v1743, 1
        %v1759 = vsel %vm1379, %v1754, %v1758
        %1760 = vrot.lane.b32.xlu0 %v1752, 112
        %v1761 = vpop.permute.xlu0 %1760
        %1762 = vrot.lane.b32.xlu0 %v1755, 112
        %v1763 = vpop.permute.xlu0 %1762
        %1764 = vrot.lane.b32.xlu0 %v1757, 112
        %v1765 = vpop.permute.xlu0 %1764
        %1766 = vrot.lane.b32.xlu0 %v1759, 112
        %v1767 = vpop.permute.xlu0 %1766
        %1768 = vrot.lane.b32.xlu0 %v1756, 112
        %v1769 = vpop.permute.xlu0 %1768
        %1770 = vrot.lane.b32.xlu0 %v1758, 112
        %v1771 = vpop.permute.xlu0 %1770
        %v1772 = vsel %vm1128, %v1761, %v1763
        %v1773 = vsel %vm1128, %v1765, %v1767
        %v1774 = vsel %vm1128, %v1769, %v1771
        %v1781 = vadd.f32 %v1562, %v1772
        %v1782 = vadd.f32 %v1563, %v1763
        %v1783 = vadd.f32 %v1564, %v1773
        %v1784 = vadd.f32 %v1565, %v1767
        %v1785 = vadd.f32 %v1566, %v1774
        %v1786 = vadd.f32 %v1567, %v1771
        %v1787 = vld [vmem:[%s939 + $0x5] sm:$0x1]
        %v1788 = vlaneseq
        %v1789 = vshrl.u32 %v1788, 7
        %v1790 = vsub.s32 0, %v1789
        %v1791 = vrot.slane %v1787, %v1790
        %1793 = vrot.lane.b32.xlu0 %v1791, 32
        %v1794 = vpop.permute.xlu0 %1793
        %v1796 = vmul.f32 %v1354, %v1794
        %v1797 = vmul.f32 %v1355, %v1794
        %v1798 = vmul.f32 %v914, %v1794
        %v1799 = vmul.f32 %v915, %v1794
        %v1800 = vmul.f32 %v1356, %v1794
        %v1801 = vmul.f32 %v1357, %v1794
        %v1808 = vrot.slane %v1796, 1
        %v1809 = vrot.slane %v1798, 1
        %v1810 = vsel %vm1379, %v1808, %v1809
        %v1811 = vrot.slane %v1797, 1
        %v1812 = vrot.slane %v1799, 1
        %v1813 = vsel %vm1379, %v1811, %v1812
        %v1814 = vrot.slane %v1800, 1
        %v1815 = vsel %vm1379, %v1809, %v1814
        %v1816 = vrot.slane %v1801, 1
        %v1817 = vsel %vm1379, %v1812, %v1816
        %1818 = vrot.lane.b32.xlu0 %v1810, 112
        %v1819 = vpop.permute.xlu0 %1818
        %1820 = vrot.lane.b32.xlu0 %v1813, 112
        %v1821 = vpop.permute.xlu0 %1820
        %1822 = vrot.lane.b32.xlu0 %v1815, 112
        %v1823 = vpop.permute.xlu0 %1822
        %1824 = vrot.lane.b32.xlu0 %v1817, 112
        %v1825 = vpop.permute.xlu0 %1824
        %1826 = vrot.lane.b32.xlu0 %v1814, 112
        %v1827 = vpop.permute.xlu0 %1826
        %1828 = vrot.lane.b32.xlu0 %v1816, 112
        %v1829 = vpop.permute.xlu0 %1828
        %v1830 = vsel %vm1128, %v1819, %v1821
        %v1831 = vsel %vm1128, %v1823, %v1825
        %v1832 = vsel %vm1128, %v1827, %v1829
        %v1839 = vadd.f32 %v1620, %v1830
        %v1840 = vadd.f32 %v1621, %v1821
        %v1841 = vadd.f32 %v1622, %v1831
        %v1842 = vadd.f32 %v1623, %v1825
        %v1843 = vadd.f32 %v1624, %v1832
        %v1844 = vadd.f32 %v1625, %v1829
        %v1845 = vld [vmem:[%s965 + $0x5] sm:$0x1]
        %v1846 = vlaneseq
        %v1847 = vshrl.u32 %v1846, 7
        %v1848 = vsub.s32 0, %v1847
        %v1849 = vrot.slane %v1845, %v1848
        %1851 = vrot.lane.b32.xlu0 %v1849, 40
        %v1852 = vpop.permute.xlu0 %1851
        %v1854 = vmul.f32 %v1354, %v1852
        %v1855 = vmul.f32 %v1355, %v1852
        %v1856 = vmul.f32 %v914, %v1852
        %v1857 = vmul.f32 %v915, %v1852
        %v1858 = vmul.f32 %v1356, %v1852
        %v1859 = vmul.f32 %v1357, %v1852
        %v1866 = vrot.slane %v1854, 2
        %v1867 = vrot.slane %v1856, 2
        %v1868 = vsel %vm1466, %v1866, %v1867
        %v1869 = vrot.slane %v1855, 2
        %v1870 = vrot.slane %v1857, 2
        %v1871 = vsel %vm1466, %v1869, %v1870
        %v1872 = vrot.slane %v1858, 2
        %v1873 = vsel %vm1466, %v1867, %v1872
        %v1874 = vrot.slane %v1859, 2
        %v1875 = vsel %vm1466, %v1870, %v1874
        %1876 = vrot.lane.b32.xlu0 %v1868, 96
        %v1877 = vpop.permute.xlu0 %1876
        %1878 = vrot.lane.b32.xlu0 %v1871, 96
        %v1879 = vpop.permute.xlu0 %1878
        %1880 = vrot.lane.b32.xlu0 %v1873, 96
        %v1881 = vpop.permute.xlu0 %1880
        %1882 = vrot.lane.b32.xlu0 %v1875, 96
        %v1883 = vpop.permute.xlu0 %1882
        %1884 = vrot.lane.b32.xlu0 %v1872, 96
        %v1885 = vpop.permute.xlu0 %1884
        %1886 = vrot.lane.b32.xlu0 %v1874, 96
        %v1887 = vpop.permute.xlu0 %1886
        %v1888 = vsel %vm1306, %v1877, %v1879
        %v1889 = vsel %vm1306, %v1881, %v1883
        %v1890 = vsel %vm1306, %v1885, %v1887
        %v1897 = vadd.f32 %v1678, %v1888
        %v1898 = vadd.f32 %v1679, %v1879
        %v1899 = vadd.f32 %v1680, %v1889
        %v1900 = vadd.f32 %v1681, %v1883
        %v1901 = vadd.f32 %v1682, %v1890
        %v1902 = vadd.f32 %v1683, %v1887
        %v1903 = vld [vmem:[%s988 + $0x5] sm:$0x1]
        %v1904 = vlaneseq
        %v1905 = vshrl.u32 %v1904, 7
        %v1906 = vsub.s32 0, %v1905
        %v1907 = vrot.slane %v1903, %v1906
        %1909 = vrot.lane.b32.xlu0 %v1907, 48
        %v1910 = vpop.permute.xlu0 %1909
        %v1912 = vmul.f32 %v1354, %v1910
        %v1913 = vmul.f32 %v1355, %v1910
        %v1914 = vmul.f32 %v914, %v1910
        %v1915 = vmul.f32 %v915, %v1910
        %v1916 = vmul.f32 %v1356, %v1910
        %v1917 = vmul.f32 %v1357, %v1910
        %v1924 = vrot.slane %v1912, 3
        %v1925 = vrot.slane %v1914, 3
        %v1926 = vsel %vm1500, %v1924, %v1925
        %v1927 = vrot.slane %v1913, 3
        %v1928 = vrot.slane %v1915, 3
        %v1929 = vsel %vm1500, %v1927, %v1928
        %v1930 = vrot.slane %v1916, 3
        %v1931 = vsel %vm1500, %v1925, %v1930
        %v1932 = vrot.slane %v1917, 3
        %v1933 = vsel %vm1500, %v1928, %v1932
        %1934 = vrot.lane.b32.xlu0 %v1926, 80
        %v1935 = vpop.permute.xlu0 %1934
        %1936 = vrot.lane.b32.xlu0 %v1929, 80
        %v1937 = vpop.permute.xlu0 %1936
        %1938 = vrot.lane.b32.xlu0 %v1931, 80
        %v1939 = vpop.permute.xlu0 %1938
        %1940 = vrot.lane.b32.xlu0 %v1933, 80
        %v1941 = vpop.permute.xlu0 %1940
        %v1942 = vsel %vm1347, %v1935, %v1937
        %v1943 = vsel %vm1347, %v1939, %v1941
        %v1946 = vadd.f32 %v1727, %v1942
        %v1947 = vadd.f32 %v1728, %v1943
        %v1948 = vld [vmem:[#allocation2] sm:$0xf0]
        %v1949 = vld [vmem:[#allocation2 + $0x8] sm:$0xf0]
        %v1950 = vld [vmem:[#allocation2 + $0x20] sm:$0xf]
        %v1951 = vld [vmem:[#allocation2 + $0x28] sm:$0xf]
        %v1952 = vld [vmem:[%s5 + $0x6] sm:$0x1]
        %v1953 = vlaneseq
        %v1954 = vshrl.u32 %v1953, 7
        %v1955 = vsub.s32 0, %v1954
        %v1956 = vrot.slane %v1952, %v1955
        %1958 = vrot.lane.b32.xlu0 %v1956, 16
        %v1959 = vpop.permute.xlu0 %1958
        %v1961 = vmul.f32 %v1948, %v1959
        %v1962 = vmul.f32 %v1949, %v1959
        %v1963 = vmul.f32 %v914, %v1959
        %v1964 = vmul.f32 %v915, %v1959
        %v1965 = vmul.f32 %v1950, %v1959
        %v1966 = vmul.f32 %v1951, %v1959
        %v1973 = vrot.slane %v1961, 2
        %v1974 = vrot.slane %v1963, 2
        %v1975 = vsel %vm1466, %v1973, %v1974
        %v1976 = vrot.slane %v1962, 2
        %v1977 = vrot.slane %v1964, 2
        %v1978 = vsel %vm1466, %v1976, %v1977
        %v1979 = vrot.slane %v1965, 2
        %v1980 = vsel %vm1466, %v1974, %v1979
        %v1981 = vrot.slane %v1966, 2
        %v1982 = vsel %vm1466, %v1977, %v1981
        %v1989 = vadd.f32 %v1781, %v1975
        %v1990 = vadd.f32 %v1782, %v1978
        %v1991 = vadd.f32 %v1783, %v1980
        %v1992 = vadd.f32 %v1784, %v1982
        %v1993 = vadd.f32 %v1785, %v1979
        %v1994 = vadd.f32 %v1786, %v1981
        %v1995 = vld [vmem:[%s939 + $0x6] sm:$0x1]
        %v1996 = vlaneseq
        %v1997 = vshrl.u32 %v1996, 7
        %v1998 = vsub.s32 0, %v1997
        %v1999 = vrot.slane %v1995, %v1998
        %2001 = vrot.lane.b32.xlu0 %v1999, 16
        %v2002 = vpop.permute.xlu0 %2001
        %v2004 = vmul.f32 %v1948, %v2002
        %v2005 = vmul.f32 %v1949, %v2002
        %v2006 = vmul.f32 %v914, %v2002
        %v2007 = vmul.f32 %v915, %v2002
        %v2008 = vmul.f32 %v1950, %v2002
        %v2009 = vmul.f32 %v1951, %v2002
        %v2016 = vrot.slane %v2004, 2
        %v2017 = vrot.slane %v2006, 2
        %v2018 = vsel %vm1466, %v2016, %v2017
        %v2019 = vrot.slane %v2005, 2
        %v2020 = vrot.slane %v2007, 2
        %v2021 = vsel %vm1466, %v2019, %v2020
        %v2022 = vrot.slane %v2008, 2
        %v2023 = vsel %vm1466, %v2017, %v2022
        %v2024 = vrot.slane %v2009, 2
        %v2025 = vsel %vm1466, %v2020, %v2024
        %v2032 = vadd.f32 %v1839, %v2018
        %v2033 = vadd.f32 %v1840, %v2021
        %v2034 = vadd.f32 %v1841, %v2023
        %v2035 = vadd.f32 %v1842, %v2025
        %v2036 = vadd.f32 %v1843, %v2022
        %v2037 = vadd.f32 %v1844, %v2024
        %v2038 = vld [vmem:[#allocation2] sm:$0xe0]
        %v2039 = vld [vmem:[#allocation2 + $0x8] sm:$0xe0]
        %v2040 = vld [vmem:[#allocation2 + $0x20] sm:$0x1f]
        %v2041 = vld [vmem:[#allocation2 + $0x28] sm:$0x1f]
        %v2042 = vld [vmem:[%s965 + $0x6] sm:$0x1]
        %v2043 = vlaneseq
        %v2044 = vshrl.u32 %v2043, 7
        %v2045 = vsub.s32 0, %v2044
        %v2046 = vrot.slane %v2042, %v2045
        %2048 = vrot.lane.b32.xlu0 %v2046, 8
        %v2049 = vpop.permute.xlu0 %2048
        %v2051 = vmul.f32 %v2038, %v2049
        %v2052 = vmul.f32 %v2039, %v2049
        %v2053 = vmul.f32 %v914, %v2049
        %v2054 = vmul.f32 %v915, %v2049
        %v2055 = vmul.f32 %v2040, %v2049
        %v2056 = vmul.f32 %v2041, %v2049
        %vm2063 = vcmask 1043456
        %v2064 = vrot.slane %v2051, 4
        %v2065 = vrot.slane %v2053, 4
        %v2066 = vsel %vm2063, %v2064, %v2065
        %v2067 = vrot.slane %v2052, 4
        %v2068 = vrot.slane %v2054, 4
        %v2069 = vsel %vm2063, %v2067, %v2068
        %v2070 = vrot.slane %v2055, 4
        %v2071 = vsel %vm2063, %v2065, %v2070
        %v2072 = vrot.slane %v2056, 4
        %v2073 = vsel %vm2063, %v2068, %v2072
        %v2080 = vadd.f32 %v1897, %v2066
        %v2081 = vadd.f32 %v1898, %v2069
        %v2082 = vadd.f32 %v1899, %v2071
        %v2083 = vadd.f32 %v1900, %v2073
        %v2084 = vadd.f32 %v1901, %v2070
        %v2085 = vadd.f32 %v1902, %v2072
        %v2086 = vld [vmem:[#allocation2] sm:$0xc0]
        %v2087 = vld [vmem:[#allocation2 + $0x20] sm:$0x3f]
        %v2088 = vld [vmem:[%s988 + $0x6] sm:$0x1]
        %v2089 = vlaneseq
        %v2090 = vshrl.u32 %v2089, 7
        %v2091 = vsub.s32 0, %v2090
        %v2092 = vrot.slane %v2088, %v2091
        %v2093 = vmul.f32 %v2086, %v2092
        %v2094 = vmul.f32 %v914, %v2092
        %v2095 = vmul.f32 %v2087, %v2092
        %vm2099 = vcmask 1041408
        %v2100 = vrot.slane %v2093, 6
        %v2101 = vrot.slane %v2094, 6
        %v2102 = vsel %vm2099, %v2100, %v2101
        %v2103 = vrot.slane %v2095, 6
        %v2104 = vsel %vm2099, %v2101, %v2103
        %v2107 = vadd.f32 %v1946, %v2102
        %v2108 = vadd.f32 %v1947, %v2104
        %v2109 = vld [vmem:[%s5 + $0x7] sm:$0x1]
        %v2110 = vlaneseq
        %v2111 = vshrl.u32 %v2110, 7
        %v2112 = vsub.s32 0, %v2111
        %v2113 = vrot.slane %v2109, %v2112
        %2115 = vrot.lane.b32.xlu0 %v2113, 24
        %v2116 = vpop.permute.xlu0 %2115
        %v2118 = vmul.f32 %v1948, %v2116
        %v2119 = vmul.f32 %v1949, %v2116
        %v2120 = vmul.f32 %v914, %v2116
        %v2121 = vmul.f32 %v915, %v2116
        %v2122 = vmul.f32 %v1950, %v2116
        %v2123 = vmul.f32 %v1951, %v2116
        %v2130 = vrot.slane %v2118, 2
        %v2131 = vrot.slane %v2120, 2
        %v2132 = vsel %vm1466, %v2130, %v2131
        %v2133 = vrot.slane %v2119, 2
        %v2134 = vrot.slane %v2121, 2
        %v2135 = vsel %vm1466, %v2133, %v2134
        %v2136 = vrot.slane %v2122, 2
        %v2137 = vsel %vm1466, %v2131, %v2136
        %v2138 = vrot.slane %v2123, 2
        %v2139 = vsel %vm1466, %v2134, %v2138
        %2140 = vrot.lane.b32.xlu0 %v2132, 120
        %v2141 = vpop.permute.xlu0 %2140
        %2142 = vrot.lane.b32.xlu0 %v2135, 120
        %v2143 = vpop.permute.xlu0 %2142
        %2144 = vrot.lane.b32.xlu0 %v2137, 120
        %v2145 = vpop.permute.xlu0 %2144
        %2146 = vrot.lane.b32.xlu0 %v2139, 120
        %v2147 = vpop.permute.xlu0 %2146
        %2148 = vrot.lane.b32.xlu0 %v2136, 120
        %v2149 = vpop.permute.xlu0 %2148
        %2150 = vrot.lane.b32.xlu0 %v2138, 120
        %v2151 = vpop.permute.xlu0 %2150
        %v2152 = vsel %vm1031, %v2141, %v2143
        %v2153 = vsel %vm1031, %v2145, %v2147
        %v2154 = vsel %vm1031, %v2149, %v2151
        %v2161 = vadd.f32 %v1989, %v2152
        %v2162 = vadd.f32 %v1990, %v2143
        %v2163 = vadd.f32 %v1991, %v2153
        %v2164 = vadd.f32 %v1992, %v2147
        %v2165 = vadd.f32 %v1993, %v2154
        %v2166 = vadd.f32 %v1994, %v2151
        %v2167 = vld [vmem:[%s939 + $0x7] sm:$0x1]
        %v2168 = vlaneseq
        %v2169 = vshrl.u32 %v2168, 7
        %v2170 = vsub.s32 0, %v2169
        %v2171 = vrot.slane %v2167, %v2170
        %2173 = vrot.lane.b32.xlu0 %v2171, 24
        %v2174 = vpop.permute.xlu0 %2173
        %v2176 = vmul.f32 %v1948, %v2174
        %v2177 = vmul.f32 %v1949, %v2174
        %v2178 = vmul.f32 %v914, %v2174
        %v2179 = vmul.f32 %v915, %v2174
        %v2180 = vmul.f32 %v1950, %v2174
        %v2181 = vmul.f32 %v1951, %v2174
        %v2188 = vrot.slane %v2176, 2
        %v2189 = vrot.slane %v2178, 2
        %v2190 = vsel %vm1466, %v2188, %v2189
        %v2191 = vrot.slane %v2177, 2
        %v2192 = vrot.slane %v2179, 2
        %v2193 = vsel %vm1466, %v2191, %v2192
        %v2194 = vrot.slane %v2180, 2
        %v2195 = vsel %vm1466, %v2189, %v2194
        %v2196 = vrot.slane %v2181, 2
        %v2197 = vsel %vm1466, %v2192, %v2196
        %2198 = vrot.lane.b32.xlu0 %v2190, 120
        %v2199 = vpop.permute.xlu0 %2198
        %2200 = vrot.lane.b32.xlu0 %v2193, 120
        %v2201 = vpop.permute.xlu0 %2200
        %2202 = vrot.lane.b32.xlu0 %v2195, 120
        %v2203 = vpop.permute.xlu0 %2202
        %2204 = vrot.lane.b32.xlu0 %v2197, 120
        %v2205 = vpop.permute.xlu0 %2204
        %2206 = vrot.lane.b32.xlu0 %v2194, 120
        %v2207 = vpop.permute.xlu0 %2206
        %2208 = vrot.lane.b32.xlu0 %v2196, 120
        %v2209 = vpop.permute.xlu0 %2208
        %v2210 = vsel %vm1031, %v2199, %v2201
        %v2211 = vsel %vm1031, %v2203, %v2205
        %v2212 = vsel %vm1031, %v2207, %v2209
        %v2219 = vadd.f32 %v2032, %v2210
        %v2220 = vadd.f32 %v2033, %v2201
        %v2221 = vadd.f32 %v2034, %v2211
        %v2222 = vadd.f32 %v2035, %v2205
        %v2223 = vadd.f32 %v2036, %v2212
        %v2224 = vadd.f32 %v2037, %v2209
        %v2225 = vld [vmem:[%s965 + $0x7] sm:$0x1]
        %v2226 = vlaneseq
        %v2227 = vshrl.u32 %v2226, 7
        %v2228 = vsub.s32 0, %v2227
        %v2229 = vrot.slane %v2225, %v2228
        %2231 = vrot.lane.b32.xlu0 %v2229, 24
        %v2232 = vpop.permute.xlu0 %2231
        %v2234 = vmul.f32 %v2038, %v2232
        %v2235 = vmul.f32 %v2039, %v2232
        %v2236 = vmul.f32 %v914, %v2232
        %v2237 = vmul.f32 %v915, %v2232
        %v2238 = vmul.f32 %v2040, %v2232
        %v2239 = vmul.f32 %v2041, %v2232
        %v2246 = vrot.slane %v2234, 4
        %v2247 = vrot.slane %v2236, 4
        %v2248 = vsel %vm2063, %v2246, %v2247
        %v2249 = vrot.slane %v2235, 4
        %v2250 = vrot.slane %v2237, 4
        %v2251 = vsel %vm2063, %v2249, %v2250
        %v2252 = vrot.slane %v2238, 4
        %v2253 = vsel %vm2063, %v2247, %v2252
        %v2254 = vrot.slane %v2239, 4
        %v2255 = vsel %vm2063, %v2250, %v2254
        %2256 = vrot.lane.b32.xlu0 %v2248, 112
        %v2257 = vpop.permute.xlu0 %2256
        %2258 = vrot.lane.b32.xlu0 %v2251, 112
        %v2259 = vpop.permute.xlu0 %2258
        %2260 = vrot.lane.b32.xlu0 %v2253, 112
        %v2261 = vpop.permute.xlu0 %2260
        %2262 = vrot.lane.b32.xlu0 %v2255, 112
        %v2263 = vpop.permute.xlu0 %2262
        %2264 = vrot.lane.b32.xlu0 %v2252, 112
        %v2265 = vpop.permute.xlu0 %2264
        %2266 = vrot.lane.b32.xlu0 %v2254, 112
        %v2267 = vpop.permute.xlu0 %2266
        %v2268 = vsel %vm1128, %v2257, %v2259
        %v2269 = vsel %vm1128, %v2261, %v2263
        %v2270 = vsel %vm1128, %v2265, %v2267
        %v2277 = vadd.f32 %v2080, %v2268
        %v2278 = vadd.f32 %v2081, %v2259
        %v2279 = vadd.f32 %v2082, %v2269
        %v2280 = vadd.f32 %v2083, %v2263
        %v2281 = vadd.f32 %v2084, %v2270
        %v2282 = vadd.f32 %v2085, %v2267
        %v2283 = vld [vmem:[#allocation2 + $0x8] sm:$0xc0]
        %v2284 = vld [vmem:[#allocation2 + $0x28] sm:$0x3f]
        %v2285 = vld [vmem:[%s988 + $0x7] sm:$0x1]
        %v2286 = vlaneseq
        %v2287 = vshrl.u32 %v2286, 7
        %v2288 = vsub.s32 0, %v2287
        %v2289 = vrot.slane %v2285, %v2288
        %2291 = vrot.lane.b32.xlu0 %v2289, 24
        %v2292 = vpop.permute.xlu0 %2291
        %v2294 = vmul.f32 %v2086, %v2292
        %v2295 = vmul.f32 %v2283, %v2292
        %v2296 = vmul.f32 %v914, %v2292
        %v2297 = vmul.f32 %v915, %v2292
        %v2298 = vmul.f32 %v2087, %v2292
        %v2299 = vmul.f32 %v2284, %v2292
        %v2306 = vrot.slane %v2294, 6
        %v2307 = vrot.slane %v2296, 6
        %v2308 = vsel %vm2099, %v2306, %v2307
        %v2309 = vrot.slane %v2295, 6
        %v2310 = vrot.slane %v2297, 6
        %v2311 = vsel %vm2099, %v2309, %v2310
        %v2312 = vrot.slane %v2298, 6
        %v2313 = vsel %vm2099, %v2307, %v2312
        %v2314 = vrot.slane %v2299, 6
        %v2315 = vsel %vm2099, %v2310, %v2314
        %2316 = vrot.lane.b32.xlu0 %v2308, 104
        %v2317 = vpop.permute.xlu0 %2316
        %2318 = vrot.lane.b32.xlu0 %v2311, 104
        %v2319 = vpop.permute.xlu0 %2318
        %2320 = vrot.lane.b32.xlu0 %v2313, 104
        %v2321 = vpop.permute.xlu0 %2320
        %2322 = vrot.lane.b32.xlu0 %v2315, 104
        %v2323 = vpop.permute.xlu0 %2322
        %v2324 = vsel %vm1170, %v2317, %v2319
        %v2325 = vsel %vm1170, %v2321, %v2323
        %v2328 = vadd.f32 %v2107, %v2324
        %v2329 = vadd.f32 %v2108, %v2325
        %v2330 = vld [vmem:[%s5 + $0x8] sm:$0x1]
        %v2331 = vlaneseq
        %v2332 = vshrl.u32 %v2331, 7
        %v2333 = vsub.s32 0, %v2332
        %v2334 = vrot.slane %v2330, %v2333
        %2336 = vrot.lane.b32.xlu0 %v2334, 32
        %v2337 = vpop.permute.xlu0 %2336
        %v2339 = vmul.f32 %v1948, %v2337
        %v2340 = vmul.f32 %v1949, %v2337
        %v2341 = vmul.f32 %v914, %v2337
        %v2342 = vmul.f32 %v915, %v2337
        %v2343 = vmul.f32 %v1950, %v2337
        %v2344 = vmul.f32 %v1951, %v2337
        %v2351 = vrot.slane %v2339, 2
        %v2352 = vrot.slane %v2341, 2
        %v2353 = vsel %vm1466, %v2351, %v2352
        %v2354 = vrot.slane %v2340, 2
        %v2355 = vrot.slane %v2342, 2
        %v2356 = vsel %vm1466, %v2354, %v2355
        %v2357 = vrot.slane %v2343, 2
        %v2358 = vsel %vm1466, %v2352, %v2357
        %v2359 = vrot.slane %v2344, 2
        %v2360 = vsel %vm1466, %v2355, %v2359
        %2361 = vrot.lane.b32.xlu0 %v2353, 112
        %v2362 = vpop.permute.xlu0 %2361
        %2363 = vrot.lane.b32.xlu0 %v2356, 112
        %v2364 = vpop.permute.xlu0 %2363
        %2365 = vrot.lane.b32.xlu0 %v2358, 112
        %v2366 = vpop.permute.xlu0 %2365
        %2367 = vrot.lane.b32.xlu0 %v2360, 112
        %v2368 = vpop.permute.xlu0 %2367
        %2369 = vrot.lane.b32.xlu0 %v2357, 112
        %v2370 = vpop.permute.xlu0 %2369
        %2371 = vrot.lane.b32.xlu0 %v2359, 112
        %v2372 = vpop.permute.xlu0 %2371
        %v2373 = vsel %vm1128, %v2362, %v2364
        %v2374 = vsel %vm1128, %v2366, %v2368
        %v2375 = vsel %vm1128, %v2370, %v2372
        %v2382 = vadd.f32 %v2161, %v2373
        %v2383 = vadd.f32 %v2162, %v2364
        %v2384 = vadd.f32 %v2163, %v2374
        %v2385 = vadd.f32 %v2164, %v2368
        %v2386 = vadd.f32 %v2165, %v2375
        %v2387 = vadd.f32 %v2166, %v2372
        %v2388 = vld [vmem:[%s939 + $0x8] sm:$0x1]
        %v2389 = vlaneseq
        %v2390 = vshrl.u32 %v2389, 7
        %v2391 = vsub.s32 0, %v2390
        %v2392 = vrot.slane %v2388, %v2391
        %2394 = vrot.lane.b32.xlu0 %v2392, 32
        %v2395 = vpop.permute.xlu0 %2394
        %v2397 = vmul.f32 %v1948, %v2395
        %v2398 = vmul.f32 %v1949, %v2395
        %v2399 = vmul.f32 %v914, %v2395
        %v2400 = vmul.f32 %v915, %v2395
        %v2401 = vmul.f32 %v1950, %v2395
        %v2402 = vmul.f32 %v1951, %v2395
        %v2409 = vrot.slane %v2397, 2
        %v2410 = vrot.slane %v2399, 2
        %v2411 = vsel %vm1466, %v2409, %v2410
        %v2412 = vrot.slane %v2398, 2
        %v2413 = vrot.slane %v2400, 2
        %v2414 = vsel %vm1466, %v2412, %v2413
        %v2415 = vrot.slane %v2401, 2
        %v2416 = vsel %vm1466, %v2410, %v2415
        %v2417 = vrot.slane %v2402, 2
        %v2418 = vsel %vm1466, %v2413, %v2417
        %2419 = vrot.lane.b32.xlu0 %v2411, 112
        %v2420 = vpop.permute.xlu0 %2419
        %2421 = vrot.lane.b32.xlu0 %v2414, 112
        %v2422 = vpop.permute.xlu0 %2421
        %2423 = vrot.lane.b32.xlu0 %v2416, 112
        %v2424 = vpop.permute.xlu0 %2423
        %2425 = vrot.lane.b32.xlu0 %v2418, 112
        %v2426 = vpop.permute.xlu0 %2425
        %2427 = vrot.lane.b32.xlu0 %v2415, 112
        %v2428 = vpop.permute.xlu0 %2427
        %2429 = vrot.lane.b32.xlu0 %v2417, 112
        %v2430 = vpop.permute.xlu0 %2429
        %v2431 = vsel %vm1128, %v2420, %v2422
        %v2432 = vsel %vm1128, %v2424, %v2426
        %v2433 = vsel %vm1128, %v2428, %v2430
        %v2440 = vadd.f32 %v2219, %v2431
        %v2441 = vadd.f32 %v2220, %v2422
        %v2442 = vadd.f32 %v2221, %v2432
        %v2443 = vadd.f32 %v2222, %v2426
        %v2444 = vadd.f32 %v2223, %v2433
        %v2445 = vadd.f32 %v2224, %v2430
        %v2446 = vld [vmem:[%s965 + $0x8] sm:$0x1]
        %v2447 = vlaneseq
        %v2448 = vshrl.u32 %v2447, 7
        %v2449 = vsub.s32 0, %v2448
        %v2450 = vrot.slane %v2446, %v2449
        %2452 = vrot.lane.b32.xlu0 %v2450, 40
        %v2453 = vpop.permute.xlu0 %2452
        %v2455 = vmul.f32 %v2038, %v2453
        %v2456 = vmul.f32 %v2039, %v2453
        %v2457 = vmul.f32 %v914, %v2453
        %v2458 = vmul.f32 %v915, %v2453
        %v2459 = vmul.f32 %v2040, %v2453
        %v2460 = vmul.f32 %v2041, %v2453
        %v2467 = vrot.slane %v2455, 4
        %v2468 = vrot.slane %v2457, 4
        %v2469 = vsel %vm2063, %v2467, %v2468
        %v2470 = vrot.slane %v2456, 4
        %v2471 = vrot.slane %v2458, 4
        %v2472 = vsel %vm2063, %v2470, %v2471
        %v2473 = vrot.slane %v2459, 4
        %v2474 = vsel %vm2063, %v2468, %v2473
        %v2475 = vrot.slane %v2460, 4
        %v2476 = vsel %vm2063, %v2471, %v2475
        %2477 = vrot.lane.b32.xlu0 %v2469, 96
        %v2478 = vpop.permute.xlu0 %2477
        %2479 = vrot.lane.b32.xlu0 %v2472, 96
        %v2480 = vpop.permute.xlu0 %2479
        %2481 = vrot.lane.b32.xlu0 %v2474, 96
        %v2482 = vpop.permute.xlu0 %2481
        %2483 = vrot.lane.b32.xlu0 %v2476, 96
        %v2484 = vpop.permute.xlu0 %2483
        %2485 = vrot.lane.b32.xlu0 %v2473, 96
        %v2486 = vpop.permute.xlu0 %2485
        %2487 = vrot.lane.b32.xlu0 %v2475, 96
        %v2488 = vpop.permute.xlu0 %2487
        %v2489 = vsel %vm1306, %v2478, %v2480
        %v2490 = vsel %vm1306, %v2482, %v2484
        %v2491 = vsel %vm1306, %v2486, %v2488
        %v2498 = vadd.f32 %v2277, %v2489
        %v2499 = vadd.f32 %v2278, %v2480
        %v2500 = vadd.f32 %v2279, %v2490
        %v2501 = vadd.f32 %v2280, %v2484
        %v2502 = vadd.f32 %v2281, %v2491
        %v2503 = vadd.f32 %v2282, %v2488
        %v2504 = vld [vmem:[%s988 + $0x8] sm:$0x1]
        %v2505 = vlaneseq
        %v2506 = vshrl.u32 %v2505, 7
        %v2507 = vsub.s32 0, %v2506
        %v2508 = vrot.slane %v2504, %v2507
        %2510 = vrot.lane.b32.xlu0 %v2508, 48
        %v2511 = vpop.permute.xlu0 %2510
        %v2513 = vmul.f32 %v2086, %v2511
        %v2514 = vmul.f32 %v2283, %v2511
        %v2515 = vmul.f32 %v914, %v2511
        %v2516 = vmul.f32 %v915, %v2511
        %v2517 = vmul.f32 %v2087, %v2511
        %v2518 = vmul.f32 %v2284, %v2511
        %v2525 = vrot.slane %v2513, 6
        %v2526 = vrot.slane %v2515, 6
        %v2527 = vsel %vm2099, %v2525, %v2526
        %v2528 = vrot.slane %v2514, 6
        %v2529 = vrot.slane %v2516, 6
        %v2530 = vsel %vm2099, %v2528, %v2529
        %v2531 = vrot.slane %v2517, 6
        %v2532 = vsel %vm2099, %v2526, %v2531
        %v2533 = vrot.slane %v2518, 6
        %v2534 = vsel %vm2099, %v2529, %v2533
        %2535 = vrot.lane.b32.xlu0 %v2527, 80
        %v2536 = vpop.permute.xlu0 %2535
        %2537 = vrot.lane.b32.xlu0 %v2530, 80
        %v2538 = vpop.permute.xlu0 %2537
        %2539 = vrot.lane.b32.xlu0 %v2532, 80
        %v2540 = vpop.permute.xlu0 %2539
        %2541 = vrot.lane.b32.xlu0 %v2534, 80
        %v2542 = vpop.permute.xlu0 %2541
        %v2543 = vsel %vm1347, %v2536, %v2538
        %v2544 = vsel %vm1347, %v2540, %v2542
        %v2547 = vadd.f32 %v2328, %v2543
        %v2548 = vadd.f32 %v2329, %v2544
        %v2549 = vld [vmem:[%s6] sm:$0x1]
        %v2550 = vlaneseq
        %v2551 = vshrl.u32 %v2550, 7
        %v2552 = vsub.s32 0, %v2551
        %v2553 = vrot.slane %v2549, %v2552
        %2555 = vrot.lane.b32.xlu0 %v2553, 16
        %v2556 = vpop.permute.xlu0 %2555
        %v2558 = vmul.f32 %v2382, %v2556
        %v2559 = vmul.f32 %v2383, %v2556
        %v2560 = vmul.f32 %v2384, %v2556
        %v2561 = vmul.f32 %v2385, %v2556
        %v2562 = vmul.f32 %v2386, %v2556
        %v2563 = vmul.f32 %v2387, %v2556
        %v2564 = vld [vmem:[%s7] sm:$0x1]
        %v2565 = vlaneseq
        %v2566 = vshrl.u32 %v2565, 7
        %v2567 = vsub.s32 0, %v2566
        %v2568 = vrot.slane %v2564, %v2567
        %2570 = vrot.lane.b32.xlu0 %v2568, 16
        %v2571 = vpop.permute.xlu0 %2570
        %v2573 = vadd.f32 %v2558, %v2571
        %v2574 = vadd.f32 %v2559, %v2571
        %v2575 = vadd.f32 %v2560, %v2571
        %v2576 = vadd.f32 %v2561, %v2571
        %v2577 = vadd.f32 %v2562, %v2571
        %v2578 = vadd.f32 %v2563, %v2571
        %vm2579 = vcmp.ge.f32.partialorder %v2573, 0.0
        %vm2580 = vcmp.ge.f32.partialorder %v2574, 0.0
        %vm2581 = vcmp.ge.f32.partialorder %v2575, 0.0
        %vm2582 = vcmp.ge.f32.partialorder %v2576, 0.0
        %vm2583 = vcmp.ge.f32.partialorder %v2577, 0.0
        %vm2584 = vcmp.ge.f32.partialorder %v2578, 0.0
        %v2585 = vld [vmem:[%s8] sm:$0x1]
        %v2586 = vlaneseq
        %v2587 = vshrl.u32 %v2586, 7
        %v2588 = vsub.s32 0, %v2587
        %v2589 = vrot.slane %v2585, %v2588
        %v2596 = vrot.slane %v2573, 2
        %v2597 = vrot.slane %v2575, 2
        %v2598 = vsel %vm1466, %v2596, %v2597
        %v2599 = vrot.slane %v2574, 2
        %v2600 = vrot.slane %v2576, 2
        %v2601 = vsel %vm1466, %v2599, %v2600
        %v2602 = vrot.slane %v2577, 2
        %v2603 = vsel %vm1466, %v2597, %v2602
        %v2604 = vrot.slane %v2578, 2
        %v2605 = vsel %vm1466, %v2600, %v2604
        %2606 = vrot.lane.b32.xlu0 %v2598, 112
        %v2607 = vpop.permute.xlu0 %2606
        %2608 = vrot.lane.b32.xlu0 %v2601, 112
        %v2609 = vpop.permute.xlu0 %2608
        %2610 = vrot.lane.b32.xlu0 %v2603, 112
        %v2611 = vpop.permute.xlu0 %2610
        %2612 = vrot.lane.b32.xlu0 %v2605, 112
        %v2613 = vpop.permute.xlu0 %2612
        %v2614 = vsel %vm1128, %v2607, %v2609
        %v2615 = vsel %vm1128, %v2611, %v2613
        %v2618 = vmul.f32 %v2589, %v2614
        %v2619 = vmul.f32 %v2589, %v2615
        %v2622 = vrot.slane %v2618, 6
        %v2623 = vrot.slane %v2619, 6
        %v2624 = vsel %vm2099, %v2622, %v2623
        %2625 = vrot.lane.b32.xlu0 %v2622, 16
        %v2626 = vpop.permute.xlu0 %2625
        %2627 = vrot.lane.b32.xlu0 %v2624, 16
        %v2628 = vpop.permute.xlu0 %2627
        %2629 = vrot.lane.b32.xlu0 %v2623, 16
        %v2630 = vpop.permute.xlu0 %2629
        %v2634 = vsel %vm2579, %v2573, %v2626
        %v2635 = vsel %vm2580, %v2574, %v2626
        %v2636 = vsel %vm2581, %v2575, %v2628
        %v2637 = vsel %vm2582, %v2576, %v2628
        %v2638 = vsel %vm2583, %v2577, %v2630
        %v2639 = vsel %vm2584, %v2578, %v2630
        %v2640 = vadd.f32 %v2382, %v2440
        %v2641 = vadd.f32 %v2383, %v2441
        %v2642 = vadd.f32 %v2384, %v2442
        %v2643 = vadd.f32 %v2385, %v2443
        %v2644 = vadd.f32 %v2386, %v2444
        %v2645 = vadd.f32 %v2387, %v2445
        %v2646 = vld [vmem:[%s6 + $0x1] sm:$0x1]
        %v2647 = vlaneseq
        %v2648 = vshrl.u32 %v2647, 7
        %v2649 = vsub.s32 0, %v2648
        %v2650 = vrot.slane %v2646, %v2649
        %2652 = vrot.lane.b32.xlu0 %v2650, 16
        %v2653 = vpop.permute.xlu0 %2652
        %v2655 = vmul.f32 %v2640, %v2653
        %v2656 = vmul.f32 %v2641, %v2653
        %v2657 = vmul.f32 %v2642, %v2653
        %v2658 = vmul.f32 %v2643, %v2653
        %v2659 = vmul.f32 %v2644, %v2653
        %v2660 = vmul.f32 %v2645, %v2653
        %v2661 = vld [vmem:[%s7 + $0x1] sm:$0x1]
        %v2662 = vlaneseq
        %v2663 = vshrl.u32 %v2662, 7
        %v2664 = vsub.s32 0, %v2663
        %v2665 = vrot.slane %v2661, %v2664
        %2667 = vrot.lane.b32.xlu0 %v2665, 16
        %v2668 = vpop.permute.xlu0 %2667
        %v2670 = vadd.f32 %v2655, %v2668
        %v2671 = vadd.f32 %v2656, %v2668
        %v2672 = vadd.f32 %v2657, %v2668
        %v2673 = vadd.f32 %v2658, %v2668
        %v2674 = vadd.f32 %v2659, %v2668
        %v2675 = vadd.f32 %v2660, %v2668
        %vm2676 = vcmp.ge.f32.partialorder %v2670, 0.0
        %vm2677 = vcmp.ge.f32.partialorder %v2671, 0.0
        %vm2678 = vcmp.ge.f32.partialorder %v2672, 0.0
        %vm2679 = vcmp.ge.f32.partialorder %v2673, 0.0
        %vm2680 = vcmp.ge.f32.partialorder %v2674, 0.0
        %vm2681 = vcmp.ge.f32.partialorder %v2675, 0.0
        %v2682 = vld [vmem:[%s8 + $0x1] sm:$0x1]
        %v2683 = vlaneseq
        %v2684 = vshrl.u32 %v2683, 7
        %v2685 = vsub.s32 0, %v2684
        %v2686 = vrot.slane %v2682, %v2685
        %v2693 = vrot.slane %v2670, 2
        %v2694 = vrot.slane %v2672, 2
        %v2695 = vsel %vm1466, %v2693, %v2694
        %v2696 = vrot.slane %v2671, 2
        %v2697 = vrot.slane %v2673, 2
        %v2698 = vsel %vm1466, %v2696, %v2697
        %v2699 = vrot.slane %v2674, 2
        %v2700 = vsel %vm1466, %v2694, %v2699
        %v2701 = vrot.slane %v2675, 2
        %v2702 = vsel %vm1466, %v2697, %v2701
        %2703 = vrot.lane.b32.xlu0 %v2695, 112
        %v2704 = vpop.permute.xlu0 %2703
        %2705 = vrot.lane.b32.xlu0 %v2698, 112
        %v2706 = vpop.permute.xlu0 %2705
        %2707 = vrot.lane.b32.xlu0 %v2700, 112
        %v2708 = vpop.permute.xlu0 %2707
        %2709 = vrot.lane.b32.xlu0 %v2702, 112
        %v2710 = vpop.permute.xlu0 %2709
        %v2711 = vsel %vm1128, %v2704, %v2706
        %v2712 = vsel %vm1128, %v2708, %v2710
        %v2715 = vmul.f32 %v2686, %v2711
        %v2716 = vmul.f32 %v2686, %v2712
        %v2719 = vrot.slane %v2715, 6
        %v2720 = vrot.slane %v2716, 6
        %v2721 = vsel %vm2099, %v2719, %v2720
        %2722 = vrot.lane.b32.xlu0 %v2719, 16
        %v2723 = vpop.permute.xlu0 %2722
        %2724 = vrot.lane.b32.xlu0 %v2721, 16
        %v2725 = vpop.permute.xlu0 %2724
        %2726 = vrot.lane.b32.xlu0 %v2720, 16
        %v2727 = vpop.permute.xlu0 %2726
        %v2731 = vsel %vm2676, %v2670, %v2723
        %v2732 = vsel %vm2677, %v2671, %v2723
        %v2733 = vsel %vm2678, %v2672, %v2725
        %v2734 = vsel %vm2679, %v2673, %v2725
        %v2735 = vsel %vm2680, %v2674, %v2727
        %v2736 = vsel %vm2681, %v2675, %v2727
        %vm2743 = vcmask 1040384
        %v2744 = vrot.slane %v2498, 7
        %v2745 = vrot.slane %v2499, 7
        %v2746 = vrot.slane %v2500, 7
        %v2747 = vsel %vm2743, %v2744, %v2746
        %v2748 = vrot.slane %v2501, 7
        %v2749 = vsel %vm2743, %v2745, %v2748
        %v2750 = vrot.slane %v2502, 7
        %v2751 = vsel %vm2743, %v2746, %v2750
        %v2752 = vrot.slane %v2503, 7
        %v2753 = vsel %vm2743, %v2748, %v2752
        %2754 = vrot.lane.b32.xlu0 %v2744, 8
        %v2755 = vpop.permute.xlu0 %2754
        %2756 = vrot.lane.b32.xlu0 %v2745, 8
        %v2757 = vpop.permute.xlu0 %2756
        %2758 = vrot.lane.b32.xlu0 %v2747, 8
        %v2759 = vpop.permute.xlu0 %2758
        %2760 = vrot.lane.b32.xlu0 %v2749, 8
        %v2761 = vpop.permute.xlu0 %2760
        %2762 = vrot.lane.b32.xlu0 %v2751, 8
        %v2763 = vpop.permute.xlu0 %2762
        %2764 = vrot.lane.b32.xlu0 %v2753, 8
        %v2765 = vpop.permute.xlu0 %2764
        %vm2766 = vcmask 64512
        %v2767 = vsel %vm2766, %v2755, %v2757
        %v2768 = vsel %vm2766, %v2759, %v2761
        %v2769 = vsel %vm2766, %v2763, %v2765
        %v2776 = vadd.f32 %v2640, %v2755
        %v2777 = vadd.f32 %v2641, %v2767
        %v2778 = vadd.f32 %v2642, %v2759
        %v2779 = vadd.f32 %v2643, %v2768
        %v2780 = vadd.f32 %v2644, %v2763
        %v2781 = vadd.f32 %v2645, %v2769
        %v2782 = vld [vmem:[%s6 + $0x2] sm:$0x1]
        %v2783 = vlaneseq
        %v2784 = vshrl.u32 %v2783, 7
        %v2785 = vsub.s32 0, %v2784
        %v2786 = vrot.slane %v2782, %v2785
        %2788 = vrot.lane.b32.xlu0 %v2786, 16
        %v2789 = vpop.permute.xlu0 %2788
        %v2791 = vmul.f32 %v2776, %v2789
        %v2792 = vmul.f32 %v2777, %v2789
        %v2793 = vmul.f32 %v2778, %v2789
        %v2794 = vmul.f32 %v2779, %v2789
        %v2795 = vmul.f32 %v2780, %v2789
        %v2796 = vmul.f32 %v2781, %v2789
        %v2797 = vld [vmem:[%s7 + $0x2] sm:$0x1]
        %v2798 = vlaneseq
        %v2799 = vshrl.u32 %v2798, 7
        %v2800 = vsub.s32 0, %v2799
        %v2801 = vrot.slane %v2797, %v2800
        %2803 = vrot.lane.b32.xlu0 %v2801, 16
        %v2804 = vpop.permute.xlu0 %2803
        %v2806 = vadd.f32 %v2791, %v2804
        %v2807 = vadd.f32 %v2792, %v2804
        %v2808 = vadd.f32 %v2793, %v2804
        %v2809 = vadd.f32 %v2794, %v2804
        %v2810 = vadd.f32 %v2795, %v2804
        %v2811 = vadd.f32 %v2796, %v2804
        %vm2812 = vcmp.ge.f32.partialorder %v2806, 0.0
        %vm2813 = vcmp.ge.f32.partialorder %v2807, 0.0
        %vm2814 = vcmp.ge.f32.partialorder %v2808, 0.0
        %vm2815 = vcmp.ge.f32.partialorder %v2809, 0.0
        %vm2816 = vcmp.ge.f32.partialorder %v2810, 0.0
        %vm2817 = vcmp.ge.f32.partialorder %v2811, 0.0
        %v2818 = vld [vmem:[%s8 + $0x2] sm:$0x1]
        %v2819 = vlaneseq
        %v2820 = vshrl.u32 %v2819, 7
        %v2821 = vsub.s32 0, %v2820
        %v2822 = vrot.slane %v2818, %v2821
        %v2829 = vrot.slane %v2806, 2
        %v2830 = vrot.slane %v2808, 2
        %v2831 = vsel %vm1466, %v2829, %v2830
        %v2832 = vrot.slane %v2807, 2
        %v2833 = vrot.slane %v2809, 2
        %v2834 = vsel %vm1466, %v2832, %v2833
        %v2835 = vrot.slane %v2810, 2
        %v2836 = vsel %vm1466, %v2830, %v2835
        %v2837 = vrot.slane %v2811, 2
        %v2838 = vsel %vm1466, %v2833, %v2837
        %2839 = vrot.lane.b32.xlu0 %v2831, 112
        %v2840 = vpop.permute.xlu0 %2839
        %2841 = vrot.lane.b32.xlu0 %v2834, 112
        %v2842 = vpop.permute.xlu0 %2841
        %2843 = vrot.lane.b32.xlu0 %v2836, 112
        %v2844 = vpop.permute.xlu0 %2843
        %2845 = vrot.lane.b32.xlu0 %v2838, 112
        %v2846 = vpop.permute.xlu0 %2845
        %v2847 = vsel %vm1128, %v2840, %v2842
        %v2848 = vsel %vm1128, %v2844, %v2846
        %v2851 = vmul.f32 %v2822, %v2847
        %v2852 = vmul.f32 %v2822, %v2848
        %v2855 = vrot.slane %v2851, 6
        %v2856 = vrot.slane %v2852, 6
        %v2857 = vsel %vm2099, %v2855, %v2856
        %2858 = vrot.lane.b32.xlu0 %v2855, 16
        %v2859 = vpop.permute.xlu0 %2858
        %2860 = vrot.lane.b32.xlu0 %v2857, 16
        %v2861 = vpop.permute.xlu0 %2860
        %2862 = vrot.lane.b32.xlu0 %v2856, 16
        %v2863 = vpop.permute.xlu0 %2862
        %v2867 = vsel %vm2812, %v2806, %v2859
        %v2868 = vsel %vm2813, %v2807, %v2859
        %v2869 = vsel %vm2814, %v2808, %v2861
        %v2870 = vsel %vm2815, %v2809, %v2861
        %v2871 = vsel %vm2816, %v2810, %v2863
        %v2872 = vsel %vm2817, %v2811, %v2863
        %v2875 = vrot.slane %v2547, 6
        %v2876 = vrot.slane %v2548, 6
        %v2877 = vsel %vm2099, %v2875, %v2876
        %2878 = vrot.lane.b32.xlu0 %v2875, 16
        %v2879 = vpop.permute.xlu0 %2878
        %2880 = vrot.lane.b32.xlu0 %v2877, 16
        %v2881 = vpop.permute.xlu0 %2880
        %2882 = vrot.lane.b32.xlu0 %v2876, 16
        %v2883 = vpop.permute.xlu0 %2882
        %v2887 = vadd.f32 %v2776, %v2879
        %v2888 = vadd.f32 %v2777, %v2879
        %v2889 = vadd.f32 %v2778, %v2881
        %v2890 = vadd.f32 %v2779, %v2881
        %v2891 = vadd.f32 %v2780, %v2883
        %v2892 = vadd.f32 %v2781, %v2883
        %v2893 = vld [vmem:[%s6 + $0x3] sm:$0x1]
        %v2894 = vlaneseq
        %v2895 = vshrl.u32 %v2894, 7
        %v2896 = vsub.s32 0, %v2895
        %v2897 = vrot.slane %v2893, %v2896
        %2899 = vrot.lane.b32.xlu0 %v2897, 16
        %v2900 = vpop.permute.xlu0 %2899
        %v2902 = vmul.f32 %v2887, %v2900
        %v2903 = vmul.f32 %v2888, %v2900
        %v2904 = vmul.f32 %v2889, %v2900
        %v2905 = vmul.f32 %v2890, %v2900
        %v2906 = vmul.f32 %v2891, %v2900
        %v2907 = vmul.f32 %v2892, %v2900
        %v2908 = vld [vmem:[%s7 + $0x3] sm:$0x1]
        %v2909 = vlaneseq
        %v2910 = vshrl.u32 %v2909, 7
        %v2911 = vsub.s32 0, %v2910
        %v2912 = vrot.slane %v2908, %v2911
        %2914 = vrot.lane.b32.xlu0 %v2912, 16
        %v2915 = vpop.permute.xlu0 %2914
        %v2917 = vadd.f32 %v2902, %v2915
        %v2918 = vadd.f32 %v2903, %v2915
        %v2919 = vadd.f32 %v2904, %v2915
        %v2920 = vadd.f32 %v2905, %v2915
        %v2921 = vadd.f32 %v2906, %v2915
        %v2922 = vadd.f32 %v2907, %v2915
        %vm2923 = vcmp.ge.f32.partialorder %v2917, 0.0
        %vm2924 = vcmp.ge.f32.partialorder %v2918, 0.0
        %vm2925 = vcmp.ge.f32.partialorder %v2919, 0.0
        %vm2926 = vcmp.ge.f32.partialorder %v2920, 0.0
        %vm2927 = vcmp.ge.f32.partialorder %v2921, 0.0
        %vm2928 = vcmp.ge.f32.partialorder %v2922, 0.0
        %v2929 = vld [vmem:[%s8 + $0x3] sm:$0x1]
        %v2930 = vlaneseq
        %v2931 = vshrl.u32 %v2930, 7
        %v2932 = vsub.s32 0, %v2931
        %v2933 = vrot.slane %v2929, %v2932
        %v2940 = vrot.slane %v2917, 2
        %v2941 = vrot.slane %v2919, 2
        %v2942 = vsel %vm1466, %v2940, %v2941
        %v2943 = vrot.slane %v2918, 2
        %v2944 = vrot.slane %v2920, 2
        %v2945 = vsel %vm1466, %v2943, %v2944
        %v2946 = vrot.slane %v2921, 2
        %v2947 = vsel %vm1466, %v2941, %v2946
        %v2948 = vrot.slane %v2922, 2
        %v2949 = vsel %vm1466, %v2944, %v2948
        %2950 = vrot.lane.b32.xlu0 %v2942, 112
        %v2951 = vpop.permute.xlu0 %2950
        %2952 = vrot.lane.b32.xlu0 %v2945, 112
        %v2953 = vpop.permute.xlu0 %2952
        %2954 = vrot.lane.b32.xlu0 %v2947, 112
        %v2955 = vpop.permute.xlu0 %2954
        %2956 = vrot.lane.b32.xlu0 %v2949, 112
        %v2957 = vpop.permute.xlu0 %2956
        %v2958 = vsel %vm1128, %v2951, %v2953
        %v2959 = vsel %vm1128, %v2955, %v2957
        %v2962 = vmul.f32 %v2933, %v2958
        %v2963 = vmul.f32 %v2933, %v2959
        %v2966 = vrot.slane %v2962, 6
        %v2967 = vrot.slane %v2963, 6
        %v2968 = vsel %vm2099, %v2966, %v2967
        %2969 = vrot.lane.b32.xlu0 %v2966, 16
        %v2970 = vpop.permute.xlu0 %2969
        %2971 = vrot.lane.b32.xlu0 %v2968, 16
        %v2972 = vpop.permute.xlu0 %2971
        %2973 = vrot.lane.b32.xlu0 %v2967, 16
        %v2974 = vpop.permute.xlu0 %2973
        %v2978 = vsel %vm2923, %v2917, %v2970
        %v2979 = vsel %vm2924, %v2918, %v2970
        %v2980 = vsel %vm2925, %v2919, %v2972
        %v2981 = vsel %vm2926, %v2920, %v2972
        %v2982 = vsel %vm2927, %v2921, %v2974
        %v2983 = vsel %vm2928, %v2922, %v2974
        %2990 = vrot.lane.b32.xlu0 %v2634, 112
        %v2991 = vpop.permute.xlu0 %2990
        %2992 = vrot.lane.b32.xlu0 %v2635, 112
        %v2993 = vpop.permute.xlu0 %2992
        %2994 = vrot.lane.b32.xlu0 %v2636, 112
        %v2995 = vpop.permute.xlu0 %2994
        %2996 = vrot.lane.b32.xlu0 %v2637, 112
        %v2997 = vpop.permute.xlu0 %2996
        %2998 = vrot.lane.b32.xlu0 %v2638, 112
        %v2999 = vpop.permute.xlu0 %2998
        %3000 = vrot.lane.b32.xlu0 %v2639, 112
        %v3001 = vpop.permute.xlu0 %3000
        %v3002 = vsel %vm1128, %v2991, %v2993
        %v3003 = vsel %vm1128, %v2995, %v2997
        %v3004 = vsel %vm1128, %v2999, %v3001
        %3014 = vrot.lane.b32.xlu0 %v2731, 112
        %v3015 = vpop.permute.xlu0 %3014
        %3016 = vrot.lane.b32.xlu0 %v2732, 112
        %v3017 = vpop.permute.xlu0 %3016
        %3018 = vrot.lane.b32.xlu0 %v2733, 112
        %v3019 = vpop.permute.xlu0 %3018
        %3020 = vrot.lane.b32.xlu0 %v2734, 112
        %v3021 = vpop.permute.xlu0 %3020
        %3022 = vrot.lane.b32.xlu0 %v2735, 112
        %v3023 = vpop.permute.xlu0 %3022
        %3024 = vrot.lane.b32.xlu0 %v2736, 112
        %v3025 = vpop.permute.xlu0 %3024
        %v3026 = vsel %vm1128, %v3015, %v3017
        %v3027 = vsel %vm1128, %v3019, %v3021
        %v3028 = vsel %vm1128, %v3023, %v3025
        %3038 = vrot.lane.b32.xlu0 %v2867, 112
        %v3039 = vpop.permute.xlu0 %3038
        %3040 = vrot.lane.b32.xlu0 %v2868, 112
        %v3041 = vpop.permute.xlu0 %3040
        %3042 = vrot.lane.b32.xlu0 %v2869, 112
        %v3043 = vpop.permute.xlu0 %3042
        %3044 = vrot.lane.b32.xlu0 %v2870, 112
        %v3045 = vpop.permute.xlu0 %3044
        %3046 = vrot.lane.b32.xlu0 %v2871, 112
        %v3047 = vpop.permute.xlu0 %3046
        %3048 = vrot.lane.b32.xlu0 %v2872, 112
        %v3049 = vpop.permute.xlu0 %3048
        %v3050 = vsel %vm1128, %v3039, %v3041
        %v3051 = vsel %vm1128, %v3043, %v3045
        %v3052 = vsel %vm1128, %v3047, %v3049
        %3062 = vrot.lane.b32.xlu0 %v2978, 112
        %v3063 = vpop.permute.xlu0 %3062
        %3064 = vrot.lane.b32.xlu0 %v2979, 112
        %v3065 = vpop.permute.xlu0 %3064
        %3066 = vrot.lane.b32.xlu0 %v2980, 112
        %v3067 = vpop.permute.xlu0 %3066
        %3068 = vrot.lane.b32.xlu0 %v2981, 112
        %v3069 = vpop.permute.xlu0 %3068
        %3070 = vrot.lane.b32.xlu0 %v2982, 112
        %v3071 = vpop.permute.xlu0 %3070
        %3072 = vrot.lane.b32.xlu0 %v2983, 112
        %v3073 = vpop.permute.xlu0 %3072
        %v3074 = vsel %vm1128, %v3063, %v3065
        %v3075 = vsel %vm1128, %v3067, %v3069
        %v3076 = vsel %vm1128, %v3071, %v3073
        %v3080 = vpack.c.bf16 %v3003, %v3002
        %v3081 = vpack.c.bf16 %v3027, %v3026
        %v3082 = vpack.c.bf16 %v3051, %v3050
        %v3083 = vpack.c.bf16 %v3075, %v3074
        %v3084 = vpack.c.bf16 %v3004, %v3004
        %v3085 = vpack.c.bf16 %v3028, %v3028
        %v3086 = vpack.c.bf16 %v3052, %v3052
        %v3087 = vpack.c.bf16 %v3076, %v3076
        %v3088 = vld [vmem:[#allocation8] sm:$0xff]
        %v3089 = vld [vmem:[#allocation8 + $0x8] sm:$0xff]
        %v3090 = vld [vmem:[#allocation8 + $0x10] sm:$0xff]
        %v3091 = vld [vmem:[#allocation8 + $0x18] sm:$0xff]
        %v3092 = vld [vmem:[#allocation8 + $0x20] sm:$0xff]
        %v3093 = vld [vmem:[#allocation8 + $0x28] sm:$0xff]
        %v3094 = vld [vmem:[#allocation8 + $0x30] sm:$0xff]
        %v3095 = vld [vmem:[#allocation8 + $0x38] sm:$0xff]
        %v3096 = vld [vmem:[#allocation8 + $0x40] sm:$0xff]
        %v3097 = vld [vmem:[#allocation8 + $0x48] sm:$0xff]
        %v3098 = vld [vmem:[#allocation8 + $0x50] sm:$0xff]
        %v3099 = vld [vmem:[#allocation8 + $0x58] sm:$0xff]
        %v3100 = vld [vmem:[#allocation8 + $0x60] sm:$0xff]
        %v3101 = vld [vmem:[#allocation8 + $0x68] sm:$0xff]
        %v3102 = vld [vmem:[#allocation8 + $0x70] sm:$0xff]
        %v3103 = vld [vmem:[#allocation8 + $0x78] sm:$0xff]
        %v3104 = vld [vmem:[#allocation8 + $0x80] sm:$0xff]
        %v3105 = vld [vmem:[#allocation8 + $0x88] sm:$0xff]
        %v3106 = vld [vmem:[#allocation8 + $0x90] sm:$0xff]
        %v3107 = vld [vmem:[#allocation8 + $0x98] sm:$0xff]
        %v3108 = vld [vmem:[#allocation8 + $0xa0] sm:$0xff]
        %v3109 = vld [vmem:[#allocation8 + $0xa8] sm:$0xff]
        %v3110 = vld [vmem:[#allocation8 + $0xb0] sm:$0xff]
        %v3111 = vld [vmem:[#allocation8 + $0xb8] sm:$0xff]
        %v3112 = vld [vmem:[#allocation8 + $0xc0] sm:$0xff]
        %v3113 = vld [vmem:[#allocation8 + $0xc8] sm:$0xff]
        %v3114 = vld [vmem:[#allocation8 + $0xd0] sm:$0xff]
        %v3115 = vld [vmem:[#allocation8 + $0xd8] sm:$0xff]
        %v3116 = vld [vmem:[#allocation8 + $0xe0] sm:$0xff]
        %v3117 = vld [vmem:[#allocation8 + $0xe8] sm:$0xff]
        %v3118 = vld [vmem:[#allocation8 + $0xf0] sm:$0xff]
        %v3119 = vld [vmem:[#allocation8 + $0xf8] sm:$0xff]
        %v3120 = vld [vmem:[#allocation8 + $0x100] sm:$0xff]
        %v3121 = vld [vmem:[#allocation8 + $0x108] sm:$0xff]
        %v3122 = vld [vmem:[#allocation8 + $0x110] sm:$0xff]
        %v3123 = vld [vmem:[#allocation8 + $0x118] sm:$0xff]
        %v3124 = vld [vmem:[#allocation8 + $0x120] sm:$0xff]
        %v3125 = vld [vmem:[#allocation8 + $0x128] sm:$0xff]
        %v3126 = vld [vmem:[#allocation8 + $0x130] sm:$0xff]
        %v3127 = vld [vmem:[#allocation8 + $0x138] sm:$0xff]
        %v3128 = vld [vmem:[#allocation8 + $0x140] sm:$0xff]
        %v3129 = vld [vmem:[#allocation8 + $0x148] sm:$0xff]
        %v3130 = vld [vmem:[#allocation8 + $0x150] sm:$0xff]
        %v3131 = vld [vmem:[#allocation8 + $0x158] sm:$0xff]
        %v3132 = vld [vmem:[#allocation8 + $0x160] sm:$0xff]
        %v3133 = vld [vmem:[#allocation8 + $0x168] sm:$0xff]
        %v3134 = vld [vmem:[#allocation8 + $0x170] sm:$0xff]
        %v3135 = vld [vmem:[#allocation8 + $0x178] sm:$0xff]
        %v3136 = vld [vmem:[#allocation8 + $0x180] sm:$0xff]
        %v3137 = vld [vmem:[#allocation8 + $0x188] sm:$0xff]
        %v3138 = vld [vmem:[#allocation8 + $0x190] sm:$0xff]
        %v3139 = vld [vmem:[#allocation8 + $0x198] sm:$0xff]
        %v3140 = vld [vmem:[#allocation8 + $0x1a0] sm:$0xff]
        %v3141 = vld [vmem:[#allocation8 + $0x1a8] sm:$0xff]
        %v3142 = vld [vmem:[#allocation8 + $0x1b0] sm:$0xff]
        %v3143 = vld [vmem:[#allocation8 + $0x1b8] sm:$0xff]
        %v3144 = vld [vmem:[#allocation8 + $0x1c0] sm:$0xff]
        %v3145 = vld [vmem:[#allocation8 + $0x1c8] sm:$0xff]
        %v3146 = vld [vmem:[#allocation8 + $0x1d0] sm:$0xff]
        %v3147 = vld [vmem:[#allocation8 + $0x1d8] sm:$0xff]
        %v3148 = vld [vmem:[#allocation8 + $0x1e0] sm:$0xff]
        %v3149 = vld [vmem:[#allocation8 + $0x1e8] sm:$0xff]
        %v3150 = vld [vmem:[#allocation8 + $0x1f0] sm:$0xff]
        %v3151 = vld [vmem:[#allocation8 + $0x1f8] sm:$0xff]
        %v3152 = vld [vmem:[#allocation8 + $0x200] sm:$0xff]
        %v3153 = vld [vmem:[#allocation8 + $0x208] sm:$0xff]
        %v3154 = vld [vmem:[#allocation8 + $0x210] sm:$0xff]
        %v3155 = vld [vmem:[#allocation8 + $0x218] sm:$0xff]
        %v3156 = vld [vmem:[#allocation8 + $0x220] sm:$0xff]
        %v3157 = vld [vmem:[#allocation8 + $0x228] sm:$0xff]
        %v3158 = vld [vmem:[#allocation8 + $0x230] sm:$0xff]
        %v3159 = vld [vmem:[#allocation8 + $0x238] sm:$0xff]
        %v3160 = vld [vmem:[#allocation8 + $0x240] sm:$0xff]
        %v3161 = vld [vmem:[#allocation8 + $0x248] sm:$0xff]
        %v3162 = vld [vmem:[#allocation8 + $0x250] sm:$0xff]
        %v3163 = vld [vmem:[#allocation8 + $0x258] sm:$0xff]
        %v3164 = vld [vmem:[#allocation8 + $0x260] sm:$0xff]
        %v3165 = vld [vmem:[#allocation8 + $0x268] sm:$0xff]
        %v3166 = vld [vmem:[#allocation8 + $0x270] sm:$0xff]
        %v3167 = vld [vmem:[#allocation8 + $0x278] sm:$0xff]
        %v3168 = vld [vmem:[#allocation8 + $0x280] sm:$0xff]
        %v3169 = vld [vmem:[#allocation8 + $0x288] sm:$0xff]
        %v3170 = vld [vmem:[#allocation8 + $0x290] sm:$0xff]
        %v3171 = vld [vmem:[#allocation8 + $0x298] sm:$0xff]
        %v3172 = vld [vmem:[#allocation8 + $0x2a0] sm:$0xff]
        %v3173 = vld [vmem:[#allocation8 + $0x2a8] sm:$0xff]
        %v3174 = vld [vmem:[#allocation8 + $0x2b0] sm:$0xff]
        %v3175 = vld [vmem:[#allocation8 + $0x2b8] sm:$0xff]
        %v3176 = vld [vmem:[#allocation8 + $0x2c0] sm:$0xff]
        %v3177 = vld [vmem:[#allocation8 + $0x2c8] sm:$0xff]
        %v3178 = vld [vmem:[#allocation8 + $0x2d0] sm:$0xff]
        %v3179 = vld [vmem:[#allocation8 + $0x2d8] sm:$0xff]
        %v3180 = vld [vmem:[#allocation8 + $0x2e0] sm:$0xff]
        %v3181 = vld [vmem:[#allocation8 + $0x2e8] sm:$0xff]
        %v3182 = vld [vmem:[#allocation8 + $0x2f0] sm:$0xff]
        %v3183 = vld [vmem:[#allocation8 + $0x2f8] sm:$0xff]
        %v3184 = vld [vmem:[#allocation8 + $0x300] sm:$0xff]
        %v3185 = vld [vmem:[#allocation8 + $0x308] sm:$0xff]
        %v3186 = vld [vmem:[#allocation8 + $0x310] sm:$0xff]
        %v3187 = vld [vmem:[#allocation8 + $0x318] sm:$0xff]
        %v3188 = vld [vmem:[#allocation8 + $0x320] sm:$0xff]
        %v3189 = vld [vmem:[#allocation8 + $0x328] sm:$0xff]
        %v3190 = vld [vmem:[#allocation8 + $0x330] sm:$0xff]
        %v3191 = vld [vmem:[#allocation8 + $0x338] sm:$0xff]
        %v3192 = vld [vmem:[#allocation8 + $0x340] sm:$0xff]
        %v3193 = vld [vmem:[#allocation8 + $0x348] sm:$0xff]
        %v3194 = vld [vmem:[#allocation8 + $0x350] sm:$0xff]
        %v3195 = vld [vmem:[#allocation8 + $0x358] sm:$0xff]
        %v3196 = vld [vmem:[#allocation8 + $0x360] sm:$0xff]
        %v3197 = vld [vmem:[#allocation8 + $0x368] sm:$0xff]
        %v3198 = vld [vmem:[#allocation8 + $0x370] sm:$0xff]
        %v3199 = vld [vmem:[#allocation8 + $0x378] sm:$0xff]
        %v3200 = vld [vmem:[#allocation8 + $0x380] sm:$0xff]
        %v3201 = vld [vmem:[#allocation8 + $0x388] sm:$0xff]
        %v3202 = vld [vmem:[#allocation8 + $0x390] sm:$0xff]
        %v3203 = vld [vmem:[#allocation8 + $0x398] sm:$0xff]
        %v3204 = vld [vmem:[#allocation8 + $0x3a0] sm:$0xff]
        %v3205 = vld [vmem:[#allocation8 + $0x3a8] sm:$0xff]
        %v3206 = vld [vmem:[#allocation8 + $0x3b0] sm:$0xff]
        %v3207 = vld [vmem:[#allocation8 + $0x3b8] sm:$0xff]
        %v3208 = vld [vmem:[#allocation8 + $0x3c0] sm:$0xff]
        %v3209 = vld [vmem:[#allocation8 + $0x3c8] sm:$0xff]
        %v3210 = vld [vmem:[#allocation8 + $0x3d0] sm:$0xff]
        %v3211 = vld [vmem:[#allocation8 + $0x3d8] sm:$0xff]
        %v3212 = vld [vmem:[#allocation8 + $0x3e0] sm:$0xff]
        %v3213 = vld [vmem:[#allocation8 + $0x3e8] sm:$0xff]
        %v3214 = vld [vmem:[#allocation8 + $0x3f0] sm:$0xff]
        %v3215 = vld [vmem:[#allocation8 + $0x3f8] sm:$0xff]
        %vm3224 = vcmask 1046528
        %v3225 = vrot.slane %v3080, 1
        %v3226 = vrot.slane %v3084, 1
        %v3227 = vsel %vm3224, %v3225, %v3226
        %v3228 = vrot.slane %v3081, 1
        %v3229 = vrot.slane %v3085, 1
        %v3230 = vsel %vm3224, %v3228, %v3229
        %v3231 = vrot.slane %v3082, 1
        %v3232 = vrot.slane %v3086, 1
        %v3233 = vsel %vm3224, %v3231, %v3232
        %v3234 = vrot.slane %v3083, 1
        %v3235 = vrot.slane %v3087, 1
        %v3236 = vsel %vm3224, %v3234, %v3235
        %v3369 = vunpack.c.l.b16 %v3088
        %v3370 = vunpack.c.h.b16 %v3088
        %v3371 = vunpack.c.l.b16 %v3089
        %v3372 = vunpack.c.h.b16 %v3089
        %v3373 = vunpack.c.l.b16 %v3090
        %v3374 = vunpack.c.h.b16 %v3090
        %v3375 = vunpack.c.l.b16 %v3091
        %v3376 = vunpack.c.h.b16 %v3091
        %v3377 = vunpack.c.l.b16 %v3092
        %v3378 = vunpack.c.h.b16 %v3092
        %v3379 = vunpack.c.l.b16 %v3093
        %v3380 = vunpack.c.h.b16 %v3093
        %v3381 = vunpack.c.l.b16 %v3094
        %v3382 = vunpack.c.h.b16 %v3094
        %v3383 = vunpack.c.l.b16 %v3095
        %v3384 = vunpack.c.h.b16 %v3095
        %v3385 = vunpack.c.l.b16 %v3096
        %v3386 = vunpack.c.h.b16 %v3096
        %v3387 = vunpack.c.l.b16 %v3097
        %v3388 = vunpack.c.h.b16 %v3097
        %v3389 = vunpack.c.l.b16 %v3098
        %v3390 = vunpack.c.h.b16 %v3098
        %v3391 = vunpack.c.l.b16 %v3099
        %v3392 = vunpack.c.h.b16 %v3099
        %v3393 = vunpack.c.l.b16 %v3100
        %v3394 = vunpack.c.h.b16 %v3100
        %v3395 = vunpack.c.l.b16 %v3101
        %v3396 = vunpack.c.h.b16 %v3101
        %v3397 = vunpack.c.l.b16 %v3102
        %v3398 = vunpack.c.h.b16 %v3102
        %v3399 = vunpack.c.l.b16 %v3103
        %v3400 = vunpack.c.h.b16 %v3103
        %v3401 = vunpack.c.l.b16 %v3104
        %v3402 = vunpack.c.h.b16 %v3104
        %v3403 = vunpack.c.l.b16 %v3105
        %v3404 = vunpack.c.h.b16 %v3105
        %v3405 = vunpack.c.l.b16 %v3106
        %v3406 = vunpack.c.h.b16 %v3106
        %v3407 = vunpack.c.l.b16 %v3107
        %v3408 = vunpack.c.h.b16 %v3107
        %v3409 = vunpack.c.l.b16 %v3108
        %v3410 = vunpack.c.h.b16 %v3108
        %v3411 = vunpack.c.l.b16 %v3109
        %v3412 = vunpack.c.h.b16 %v3109
        %v3413 = vunpack.c.l.b16 %v3110
        %v3414 = vunpack.c.h.b16 %v3110
        %v3415 = vunpack.c.l.b16 %v3111
        %v3416 = vunpack.c.h.b16 %v3111
        %v3417 = vunpack.c.l.b16 %v3112
        %v3418 = vunpack.c.h.b16 %v3112
        %v3419 = vunpack.c.l.b16 %v3113
        %v3420 = vunpack.c.h.b16 %v3113
        %v3421 = vunpack.c.l.b16 %v3114
        %v3422 = vunpack.c.h.b16 %v3114
        %v3423 = vunpack.c.l.b16 %v3115
        %v3424 = vunpack.c.h.b16 %v3115
        %v3425 = vunpack.c.l.b16 %v3116
        %v3426 = vunpack.c.h.b16 %v3116
        %v3427 = vunpack.c.l.b16 %v3117
        %v3428 = vunpack.c.h.b16 %v3117
        %v3429 = vunpack.c.l.b16 %v3118
        %v3430 = vunpack.c.h.b16 %v3118
        %v3431 = vunpack.c.l.b16 %v3119
        %v3432 = vunpack.c.h.b16 %v3119
        %v3433 = vunpack.c.l.b16 %v3120
        %v3434 = vunpack.c.h.b16 %v3120
        %v3435 = vunpack.c.l.b16 %v3121
        %v3436 = vunpack.c.h.b16 %v3121
        %v3437 = vunpack.c.l.b16 %v3122
        %v3438 = vunpack.c.h.b16 %v3122
        %v3439 = vunpack.c.l.b16 %v3123
        %v3440 = vunpack.c.h.b16 %v3123
        %v3441 = vunpack.c.l.b16 %v3124
        %v3442 = vunpack.c.h.b16 %v3124
        %v3443 = vunpack.c.l.b16 %v3125
        %v3444 = vunpack.c.h.b16 %v3125
        %v3445 = vunpack.c.l.b16 %v3126
        %v3446 = vunpack.c.h.b16 %v3126
        %v3447 = vunpack.c.l.b16 %v3127
        %v3448 = vunpack.c.h.b16 %v3127
        %v3449 = vunpack.c.l.b16 %v3128
        %v3450 = vunpack.c.h.b16 %v3128
        %v3451 = vunpack.c.l.b16 %v3129
        %v3452 = vunpack.c.h.b16 %v3129
        %v3453 = vunpack.c.l.b16 %v3130
        %v3454 = vunpack.c.h.b16 %v3130
        %v3455 = vunpack.c.l.b16 %v3131
        %v3456 = vunpack.c.h.b16 %v3131
        %v3457 = vunpack.c.l.b16 %v3132
        %v3458 = vunpack.c.h.b16 %v3132
        %v3459 = vunpack.c.l.b16 %v3133
        %v3460 = vunpack.c.h.b16 %v3133
        %v3461 = vunpack.c.l.b16 %v3134
        %v3462 = vunpack.c.h.b16 %v3134
        %v3463 = vunpack.c.l.b16 %v3135
        %v3464 = vunpack.c.h.b16 %v3135
        %v3465 = vunpack.c.l.b16 %v3136
        %v3466 = vunpack.c.h.b16 %v3136
        %v3467 = vunpack.c.l.b16 %v3137
        %v3468 = vunpack.c.h.b16 %v3137
        %v3469 = vunpack.c.l.b16 %v3138
        %v3470 = vunpack.c.h.b16 %v3138
        %v3471 = vunpack.c.l.b16 %v3139
        %v3472 = vunpack.c.h.b16 %v3139
        %v3473 = vunpack.c.l.b16 %v3140
        %v3474 = vunpack.c.h.b16 %v3140
        %v3475 = vunpack.c.l.b16 %v3141
        %v3476 = vunpack.c.h.b16 %v3141
        %v3477 = vunpack.c.l.b16 %v3142
        %v3478 = vunpack.c.h.b16 %v3142
        %v3479 = vunpack.c.l.b16 %v3143
        %v3480 = vunpack.c.h.b16 %v3143
        %v3481 = vunpack.c.l.b16 %v3144
        %v3482 = vunpack.c.h.b16 %v3144
        %v3483 = vunpack.c.l.b16 %v3145
        %v3484 = vunpack.c.h.b16 %v3145
        %v3485 = vunpack.c.l.b16 %v3146
        %v3486 = vunpack.c.h.b16 %v3146
        %v3487 = vunpack.c.l.b16 %v3147
        %v3488 = vunpack.c.h.b16 %v3147
        %v3489 = vunpack.c.l.b16 %v3148
        %v3490 = vunpack.c.h.b16 %v3148
        %v3491 = vunpack.c.l.b16 %v3149
        %v3492 = vunpack.c.h.b16 %v3149
        %v3493 = vunpack.c.l.b16 %v3150
        %v3494 = vunpack.c.h.b16 %v3150
        %v3495 = vunpack.c.l.b16 %v3151
        %v3496 = vunpack.c.h.b16 %v3151
        %v3497 = vunpack.c.l.b16 %v3152
        %v3498 = vunpack.c.h.b16 %v3152
        %v3499 = vunpack.c.l.b16 %v3153
        %v3500 = vunpack.c.h.b16 %v3153
        %v3501 = vunpack.c.l.b16 %v3154
        %v3502 = vunpack.c.h.b16 %v3154
        %v3503 = vunpack.c.l.b16 %v3155
        %v3504 = vunpack.c.h.b16 %v3155
        %v3505 = vunpack.c.l.b16 %v3156
        %v3506 = vunpack.c.h.b16 %v3156
        %v3507 = vunpack.c.l.b16 %v3157
        %v3508 = vunpack.c.h.b16 %v3157
        %v3509 = vunpack.c.l.b16 %v3158
        %v3510 = vunpack.c.h.b16 %v3158
        %v3511 = vunpack.c.l.b16 %v3159
        %v3512 = vunpack.c.h.b16 %v3159
        %v3513 = vunpack.c.l.b16 %v3160
        %v3514 = vunpack.c.h.b16 %v3160
        %v3515 = vunpack.c.l.b16 %v3161
        %v3516 = vunpack.c.h.b16 %v3161
        %v3517 = vunpack.c.l.b16 %v3162
        %v3518 = vunpack.c.h.b16 %v3162
        %v3519 = vunpack.c.l.b16 %v3163
        %v3520 = vunpack.c.h.b16 %v3163
        %v3521 = vunpack.c.l.b16 %v3164
        %v3522 = vunpack.c.h.b16 %v3164
        %v3523 = vunpack.c.l.b16 %v3165
        %v3524 = vunpack.c.h.b16 %v3165
        %v3525 = vunpack.c.l.b16 %v3166
        %v3526 = vunpack.c.h.b16 %v3166
        %v3527 = vunpack.c.l.b16 %v3167
        %v3528 = vunpack.c.h.b16 %v3167
        %v3529 = vunpack.c.l.b16 %v3168
        %v3530 = vunpack.c.h.b16 %v3168
        %v3531 = vunpack.c.l.b16 %v3169
        %v3532 = vunpack.c.h.b16 %v3169
        %v3533 = vunpack.c.l.b16 %v3170
        %v3534 = vunpack.c.h.b16 %v3170
        %v3535 = vunpack.c.l.b16 %v3171
        %v3536 = vunpack.c.h.b16 %v3171
        %v3537 = vunpack.c.l.b16 %v3172
        %v3538 = vunpack.c.h.b16 %v3172
        %v3539 = vunpack.c.l.b16 %v3173
        %v3540 = vunpack.c.h.b16 %v3173
        %v3541 = vunpack.c.l.b16 %v3174
        %v3542 = vunpack.c.h.b16 %v3174
        %v3543 = vunpack.c.l.b16 %v3175
        %v3544 = vunpack.c.h.b16 %v3175
        %v3545 = vunpack.c.l.b16 %v3176
        %v3546 = vunpack.c.h.b16 %v3176
        %v3547 = vunpack.c.l.b16 %v3177
        %v3548 = vunpack.c.h.b16 %v3177
        %v3549 = vunpack.c.l.b16 %v3178
        %v3550 = vunpack.c.h.b16 %v3178
        %v3551 = vunpack.c.l.b16 %v3179
        %v3552 = vunpack.c.h.b16 %v3179
        %v3553 = vunpack.c.l.b16 %v3180
        %v3554 = vunpack.c.h.b16 %v3180
        %v3555 = vunpack.c.l.b16 %v3181
        %v3556 = vunpack.c.h.b16 %v3181
        %v3557 = vunpack.c.l.b16 %v3182
        %v3558 = vunpack.c.h.b16 %v3182
        %v3559 = vunpack.c.l.b16 %v3183
        %v3560 = vunpack.c.h.b16 %v3183
        %v3561 = vunpack.c.l.b16 %v3184
        %v3562 = vunpack.c.h.b16 %v3184
        %v3563 = vunpack.c.l.b16 %v3185
        %v3564 = vunpack.c.h.b16 %v3185
        %v3565 = vunpack.c.l.b16 %v3186
        %v3566 = vunpack.c.h.b16 %v3186
        %v3567 = vunpack.c.l.b16 %v3187
        %v3568 = vunpack.c.h.b16 %v3187
        %v3569 = vunpack.c.l.b16 %v3188
        %v3570 = vunpack.c.h.b16 %v3188
        %v3571 = vunpack.c.l.b16 %v3189
        %v3572 = vunpack.c.h.b16 %v3189
        %v3573 = vunpack.c.l.b16 %v3190
        %v3574 = vunpack.c.h.b16 %v3190
        %v3575 = vunpack.c.l.b16 %v3191
        %v3576 = vunpack.c.h.b16 %v3191
        %v3577 = vunpack.c.l.b16 %v3192
        %v3578 = vunpack.c.h.b16 %v3192
        %v3579 = vunpack.c.l.b16 %v3193
        %v3580 = vunpack.c.h.b16 %v3193
        %v3581 = vunpack.c.l.b16 %v3194
        %v3582 = vunpack.c.h.b16 %v3194
        %v3583 = vunpack.c.l.b16 %v3195
        %v3584 = vunpack.c.h.b16 %v3195
        %v3585 = vunpack.c.l.b16 %v3196
        %v3586 = vunpack.c.h.b16 %v3196
        %v3587 = vunpack.c.l.b16 %v3197
        %v3588 = vunpack.c.h.b16 %v3197
        %v3589 = vunpack.c.l.b16 %v3198
        %v3590 = vunpack.c.h.b16 %v3198
        %v3591 = vunpack.c.l.b16 %v3199
        %v3592 = vunpack.c.h.b16 %v3199
        %v3593 = vunpack.c.l.b16 %v3200
        %v3594 = vunpack.c.h.b16 %v3200
        %v3595 = vunpack.c.l.b16 %v3201
        %v3596 = vunpack.c.h.b16 %v3201
        %v3597 = vunpack.c.l.b16 %v3202
        %v3598 = vunpack.c.h.b16 %v3202
        %v3599 = vunpack.c.l.b16 %v3203
        %v3600 = vunpack.c.h.b16 %v3203
        %v3601 = vunpack.c.l.b16 %v3204
        %v3602 = vunpack.c.h.b16 %v3204
        %v3603 = vunpack.c.l.b16 %v3205
        %v3604 = vunpack.c.h.b16 %v3205
        %v3605 = vunpack.c.l.b16 %v3206
        %v3606 = vunpack.c.h.b16 %v3206
        %v3607 = vunpack.c.l.b16 %v3207
        %v3608 = vunpack.c.h.b16 %v3207
        %v3609 = vunpack.c.l.b16 %v3208
        %v3610 = vunpack.c.h.b16 %v3208
        %v3611 = vunpack.c.l.b16 %v3209
        %v3612 = vunpack.c.h.b16 %v3209
        %v3613 = vunpack.c.l.b16 %v3210
        %v3614 = vunpack.c.h.b16 %v3210
        %v3615 = vunpack.c.l.b16 %v3211
        %v3616 = vunpack.c.h.b16 %v3211
        %v3617 = vunpack.c.l.b16 %v3212
        %v3618 = vunpack.c.h.b16 %v3212
        %v3619 = vunpack.c.l.b16 %v3213
        %v3620 = vunpack.c.h.b16 %v3213
        %v3621 = vunpack.c.l.b16 %v3214
        %v3622 = vunpack.c.h.b16 %v3214
        %v3623 = vunpack.c.l.b16 %v3215
        %v3624 = vunpack.c.h.b16 %v3215
        %v3625 = vpack.c.b16 %v3373, %v3369
        %v3626 = vpack.c.b16 %v3374, %v3370
        %v3627 = vpack.c.b16 %v3375, %v3371
        %v3628 = vpack.c.b16 %v3376, %v3372
        %v3629 = vpack.c.b16 %v3381, %v3377
        %v3630 = vpack.c.b16 %v3382, %v3378
        %v3631 = vpack.c.b16 %v3383, %v3379
        %v3632 = vpack.c.b16 %v3384, %v3380
        %v3633 = vpack.c.b16 %v3389, %v3385
        %v3634 = vpack.c.b16 %v3390, %v3386
        %v3635 = vpack.c.b16 %v3391, %v3387
        %v3636 = vpack.c.b16 %v3392, %v3388
        %v3637 = vpack.c.b16 %v3397, %v3393
        %v3638 = vpack.c.b16 %v3398, %v3394
        %v3639 = vpack.c.b16 %v3399, %v3395
        %v3640 = vpack.c.b16 %v3400, %v3396
        %v3641 = vpack.c.b16 %v3405, %v3401
        %v3642 = vpack.c.b16 %v3406, %v3402
        %v3643 = vpack.c.b16 %v3407, %v3403
        %v3644 = vpack.c.b16 %v3408, %v3404
        %v3645 = vpack.c.b16 %v3413, %v3409
        %v3646 = vpack.c.b16 %v3414, %v3410
        %v3647 = vpack.c.b16 %v3415, %v3411
        %v3648 = vpack.c.b16 %v3416, %v3412
        %v3649 = vpack.c.b16 %v3421, %v3417
        %v3650 = vpack.c.b16 %v3422, %v3418
        %v3651 = vpack.c.b16 %v3423, %v3419
        %v3652 = vpack.c.b16 %v3424, %v3420
        %v3653 = vpack.c.b16 %v3429, %v3425
        %v3654 = vpack.c.b16 %v3430, %v3426
        %v3655 = vpack.c.b16 %v3431, %v3427
        %v3656 = vpack.c.b16 %v3432, %v3428
        %v3657 = vpack.c.b16 %v3437, %v3433
        %v3658 = vpack.c.b16 %v3438, %v3434
        %v3659 = vpack.c.b16 %v3439, %v3435
        %v3660 = vpack.c.b16 %v3440, %v3436
        %v3661 = vpack.c.b16 %v3445, %v3441
        %v3662 = vpack.c.b16 %v3446, %v3442
        %v3663 = vpack.c.b16 %v3447, %v3443
        %v3664 = vpack.c.b16 %v3448, %v3444
        %v3665 = vpack.c.b16 %v3453, %v3449
        %v3666 = vpack.c.b16 %v3454, %v3450
        %v3667 = vpack.c.b16 %v3455, %v3451
        %v3668 = vpack.c.b16 %v3456, %v3452
        %v3669 = vpack.c.b16 %v3461, %v3457
        %v3670 = vpack.c.b16 %v3462, %v3458
        %v3671 = vpack.c.b16 %v3463, %v3459
        %v3672 = vpack.c.b16 %v3464, %v3460
        %v3673 = vpack.c.b16 %v3469, %v3465
        %v3674 = vpack.c.b16 %v3470, %v3466
        %v3675 = vpack.c.b16 %v3471, %v3467
        %v3676 = vpack.c.b16 %v3472, %v3468
        %v3677 = vpack.c.b16 %v3477, %v3473
        %v3678 = vpack.c.b16 %v3478, %v3474
        %v3679 = vpack.c.b16 %v3479, %v3475
        %v3680 = vpack.c.b16 %v3480, %v3476
        %v3681 = vpack.c.b16 %v3485, %v3481
        %v3682 = vpack.c.b16 %v3486, %v3482
        %v3683 = vpack.c.b16 %v3487, %v3483
        %v3684 = vpack.c.b16 %v3488, %v3484
        %v3685 = vpack.c.b16 %v3493, %v3489
        %v3686 = vpack.c.b16 %v3494, %v3490
        %v3687 = vpack.c.b16 %v3495, %v3491
        %v3688 = vpack.c.b16 %v3496, %v3492
        %v3689 = vpack.c.b16 %v3501, %v3497
        %v3690 = vpack.c.b16 %v3502, %v3498
        %v3691 = vpack.c.b16 %v3503, %v3499
        %v3692 = vpack.c.b16 %v3504, %v3500
        %v3693 = vpack.c.b16 %v3509, %v3505
        %v3694 = vpack.c.b16 %v3510, %v3506
        %v3695 = vpack.c.b16 %v3511, %v3507
        %v3696 = vpack.c.b16 %v3512, %v3508
        %v3697 = vpack.c.b16 %v3517, %v3513
        %v3698 = vpack.c.b16 %v3518, %v3514
        %v3699 = vpack.c.b16 %v3519, %v3515
        %v3700 = vpack.c.b16 %v3520, %v3516
        %v3701 = vpack.c.b16 %v3525, %v3521
        %v3702 = vpack.c.b16 %v3526, %v3522
        %v3703 = vpack.c.b16 %v3527, %v3523
        %v3704 = vpack.c.b16 %v3528, %v3524
        %v3705 = vpack.c.b16 %v3533, %v3529
        %v3706 = vpack.c.b16 %v3534, %v3530
        %v3707 = vpack.c.b16 %v3535, %v3531
        %v3708 = vpack.c.b16 %v3536, %v3532
        %v3709 = vpack.c.b16 %v3541, %v3537
        %v3710 = vpack.c.b16 %v3542, %v3538
        %v3711 = vpack.c.b16 %v3543, %v3539
        %v3712 = vpack.c.b16 %v3544, %v3540
        %v3713 = vpack.c.b16 %v3549, %v3545
        %v3714 = vpack.c.b16 %v3550, %v3546
        %v3715 = vpack.c.b16 %v3551, %v3547
        %v3716 = vpack.c.b16 %v3552, %v3548
        %v3717 = vpack.c.b16 %v3557, %v3553
        %v3718 = vpack.c.b16 %v3558, %v3554
        %v3719 = vpack.c.b16 %v3559, %v3555
        %v3720 = vpack.c.b16 %v3560, %v3556
        %v3721 = vpack.c.b16 %v3565, %v3561
        %v3722 = vpack.c.b16 %v3566, %v3562
        %v3723 = vpack.c.b16 %v3567, %v3563
        %v3724 = vpack.c.b16 %v3568, %v3564
        %v3725 = vpack.c.b16 %v3573, %v3569
        %v3726 = vpack.c.b16 %v3574, %v3570
        %v3727 = vpack.c.b16 %v3575, %v3571
        %v3728 = vpack.c.b16 %v3576, %v3572
        %v3729 = vpack.c.b16 %v3581, %v3577
        %v3730 = vpack.c.b16 %v3582, %v3578
        %v3731 = vpack.c.b16 %v3583, %v3579
        %v3732 = vpack.c.b16 %v3584, %v3580
        %v3733 = vpack.c.b16 %v3589, %v3585
        %v3734 = vpack.c.b16 %v3590, %v3586
        %v3735 = vpack.c.b16 %v3591, %v3587
        %v3736 = vpack.c.b16 %v3592, %v3588
        %v3737 = vpack.c.b16 %v3597, %v3593
        %v3738 = vpack.c.b16 %v3598, %v3594
        %v3739 = vpack.c.b16 %v3599, %v3595
        %v3740 = vpack.c.b16 %v3600, %v3596
        %v3741 = vpack.c.b16 %v3605, %v3601
        %v3742 = vpack.c.b16 %v3606, %v3602
        %v3743 = vpack.c.b16 %v3607, %v3603
        %v3744 = vpack.c.b16 %v3608, %v3604
        %v3745 = vpack.c.b16 %v3613, %v3609
        %v3746 = vpack.c.b16 %v3614, %v3610
        %v3747 = vpack.c.b16 %v3615, %v3611
        %v3748 = vpack.c.b16 %v3616, %v3612
        %v3749 = vpack.c.b16 %v3621, %v3617
        %v3750 = vpack.c.b16 %v3622, %v3618
        %v3751 = vpack.c.b16 %v3623, %v3619
        %v3752 = vpack.c.b16 %v3624, %v3620
        %3881 = vmatprep.subr.bf16.mxu0 %v3654
        %3882 = vmatpush1.bf16.msra.mxu0 %v3653
        %3883 = vmatprep.subr.bf16.mxu0 %v3650
        %3884 = vmatpush1.bf16.msra.mxu0 %v3649
        %3885 = vmatprep.subr.bf16.mxu0 %v3646
        %3886 = vmatpush1.bf16.msra.mxu0 %v3645
        %3887 = vmatprep.subr.bf16.mxu0 %v3642
        %3888 = vmatpush1.bf16.msra.mxu0 %v3641
        %3889 = vmatprep.subr.bf16.mxu0 %v3638
        %3890 = vmatpush1.bf16.msra.mxu0 %v3637
        %3891 = vmatprep.subr.bf16.mxu0 %v3634
        %3892 = vmatpush1.bf16.msra.mxu0 %v3633
        %3893 = vmatprep.subr.bf16.mxu0 %v3630
        %3894 = vmatpush1.bf16.msra.mxu0 %v3629
        %3895 = vmatprep.subr.bf16.mxu0 %v3626
        %3896 = vmatpush1.bf16.msra.mxu0 %v3625
        %3897 = vmatprep.subr.bf16.mxu0 %v3686
        %3898 = vmatpush2.bf16.msra.mxu0 %v3685
        %3899 = vmatprep.subr.bf16.mxu0 %v3682
        %3900 = vmatpush2.bf16.msra.mxu0 %v3681
        %3901 = vmatprep.subr.bf16.mxu0 %v3678
        %3902 = vmatpush2.bf16.msra.mxu0 %v3677
        %3903 = vmatprep.subr.bf16.mxu0 %v3674
        %3904 = vmatpush2.bf16.msra.mxu0 %v3673
        %3905 = vmatprep.subr.bf16.mxu0 %v3670
        %3906 = vmatpush2.bf16.msra.mxu0 %v3669
        %3907 = vmatprep.subr.bf16.mxu0 %v3666
        %3908 = vmatpush2.bf16.msra.mxu0 %v3665
        %3909 = vmatprep.subr.bf16.mxu0 %v3662
        %3910 = vmatpush2.bf16.msra.mxu0 %v3661
        %3911 = vmatprep.subr.bf16.mxu0 %v3658
        %3912 = vmatpush2.bf16.msra.mxu0 %v3657
        %3913 = vmatprep.mubr.bf16.mxu0 %v3230
        %3914 = vmatmul.mubr.bf16.gmra.mxu0 %v3227
        %v3915 = vpop.f32.mrf.mxu0
        %v3916 = vadd.f32 0.0, %v3915
        %v3917 = vpop.f32.mrf.mxu0
        %v3918 = vadd.f32 0.0, %v3917
        %v3919 = vpop.f32.mrf.mxu0
        %v3920 = vadd.f32 0.0, %v3919
        %v3921 = vpop.f32.mrf.mxu0
        %v3922 = vadd.f32 0.0, %v3921
        %3923 = vdwg.mxu0
        %3924 = vmatprep.subr.bf16.mxu0 %v3718
        %3925 = vmatpush1.bf16.msra.mxu0 %v3717
        %3926 = vmatprep.subr.bf16.mxu0 %v3714
        %3927 = vmatpush1.bf16.msra.mxu0 %v3713
        %3928 = vmatprep.subr.bf16.mxu0 %v3710
        %3929 = vmatpush1.bf16.msra.mxu0 %v3709
        %3930 = vmatprep.subr.bf16.mxu0 %v3706
        %3931 = vmatpush1.bf16.msra.mxu0 %v3705
        %3932 = vmatprep.subr.bf16.mxu0 %v3702
        %3933 = vmatpush1.bf16.msra.mxu0 %v3701
        %3934 = vmatprep.subr.bf16.mxu0 %v3698
        %3935 = vmatpush1.bf16.msra.mxu0 %v3697
        %3936 = vmatprep.subr.bf16.mxu0 %v3694
        %3937 = vmatpush1.bf16.msra.mxu0 %v3693
        %3938 = vmatprep.subr.bf16.mxu0 %v3690
        %3939 = vmatpush1.bf16.msra.mxu0 %v3689
        %3940 = vmatprep.subr.bf16.mxu0 %v3750
        %3941 = vmatpush2.bf16.msra.mxu0 %v3749
        %3942 = vmatprep.subr.bf16.mxu0 %v3746
        %3943 = vmatpush2.bf16.msra.mxu0 %v3745
        %3944 = vmatprep.subr.bf16.mxu0 %v3742
        %3945 = vmatpush2.bf16.msra.mxu0 %v3741
        %3946 = vmatprep.subr.bf16.mxu0 %v3738
        %3947 = vmatpush2.bf16.msra.mxu0 %v3737
        %3948 = vmatprep.subr.bf16.mxu0 %v3734
        %3949 = vmatpush2.bf16.msra.mxu0 %v3733
        %3950 = vmatprep.subr.bf16.mxu0 %v3730
        %3951 = vmatpush2.bf16.msra.mxu0 %v3729
        %3952 = vmatprep.subr.bf16.mxu0 %v3726
        %3953 = vmatpush2.bf16.msra.mxu0 %v3725
        %3954 = vmatprep.subr.bf16.mxu0 %v3722
        %3955 = vmatpush2.bf16.msra.mxu0 %v3721
        %3956 = vmatprep.mubr.bf16.mxu0 %v3236
        %3957 = vmatmul.mubr.bf16.gmra.mxu0 %v3233
        %v3958 = vpop.f32.mrf.mxu0
        %v3959 = vadd.f32 %v3916, %v3958
        %v3960 = vpop.f32.mrf.mxu0
        %v3961 = vadd.f32 %v3918, %v3960
        %v3962 = vpop.f32.mrf.mxu0
        %v3963 = vadd.f32 %v3920, %v3962
        %v3964 = vpop.f32.mrf.mxu0
        %v3965 = vadd.f32 %v3922, %v3964
        %3966 = vdwg.mxu0
        %3967 = vmatprep.subr.bf16.mxu0 %v3656
        %3968 = vmatpush1.bf16.msra.mxu0 %v3655
        %3969 = vmatprep.subr.bf16.mxu0 %v3652
        %3970 = vmatpush1.bf16.msra.mxu0 %v3651
        %3971 = vmatprep.subr.bf16.mxu0 %v3648
        %3972 = vmatpush1.bf16.msra.mxu0 %v3647
        %3973 = vmatprep.subr.bf16.mxu0 %v3644
        %3974 = vmatpush1.bf16.msra.mxu0 %v3643
        %3975 = vmatprep.subr.bf16.mxu0 %v3640
        %3976 = vmatpush1.bf16.msra.mxu0 %v3639
        %3977 = vmatprep.subr.bf16.mxu0 %v3636
        %3978 = vmatpush1.bf16.msra.mxu0 %v3635
        %3979 = vmatprep.subr.bf16.mxu0 %v3632
        %3980 = vmatpush1.bf16.msra.mxu0 %v3631
        %3981 = vmatprep.subr.bf16.mxu0 %v3628
        %3982 = vmatpush1.bf16.msra.mxu0 %v3627
        %3983 = vmatprep.subr.bf16.mxu0 %v3688
        %3984 = vmatpush2.bf16.msra.mxu0 %v3687
        %3985 = vmatprep.subr.bf16.mxu0 %v3684
        %3986 = vmatpush2.bf16.msra.mxu0 %v3683
        %3987 = vmatprep.subr.bf16.mxu0 %v3680
        %3988 = vmatpush2.bf16.msra.mxu0 %v3679
        %3989 = vmatprep.subr.bf16.mxu0 %v3676
        %3990 = vmatpush2.bf16.msra.mxu0 %v3675
        %3991 = vmatprep.subr.bf16.mxu0 %v3672
        %3992 = vmatpush2.bf16.msra.mxu0 %v3671
        %3993 = vmatprep.subr.bf16.mxu0 %v3668
        %3994 = vmatpush2.bf16.msra.mxu0 %v3667
        %3995 = vmatprep.subr.bf16.mxu0 %v3664
        %3996 = vmatpush2.bf16.msra.mxu0 %v3663
        %3997 = vmatprep.subr.bf16.mxu0 %v3660
        %3998 = vmatpush2.bf16.msra.mxu0 %v3659
        %3999 = vmatprep.mubr.bf16.mxu0 %v3230
        %4000 = vmatmul.mubr.bf16.gmra.mxu0 %v3227
        %v4001 = vpop.f32.mrf.mxu0
        %v4002 = vadd.f32 0.0, %v4001
        %v4003 = vpop.f32.mrf.mxu0
        %v4004 = vadd.f32 0.0, %v4003
        %v4005 = vpop.f32.mrf.mxu0
        %v4006 = vadd.f32 0.0, %v4005
        %v4007 = vpop.f32.mrf.mxu0
        %v4008 = vadd.f32 0.0, %v4007
        %4009 = vdwg.mxu0
        %4010 = vmatprep.subr.bf16.mxu0 %v3720
        %4011 = vmatpush1.bf16.msra.mxu0 %v3719
        %4012 = vmatprep.subr.bf16.mxu0 %v3716
        %4013 = vmatpush1.bf16.msra.mxu0 %v3715
        %4014 = vmatprep.subr.bf16.mxu0 %v3712
        %4015 = vmatpush1.bf16.msra.mxu0 %v3711
        %4016 = vmatprep.subr.bf16.mxu0 %v3708
        %4017 = vmatpush1.bf16.msra.mxu0 %v3707
        %4018 = vmatprep.subr.bf16.mxu0 %v3704
        %4019 = vmatpush1.bf16.msra.mxu0 %v3703
        %4020 = vmatprep.subr.bf16.mxu0 %v3700
        %4021 = vmatpush1.bf16.msra.mxu0 %v3699
        %4022 = vmatprep.subr.bf16.mxu0 %v3696
        %4023 = vmatpush1.bf16.msra.mxu0 %v3695
        %4024 = vmatprep.subr.bf16.mxu0 %v3692
        %4025 = vmatpush1.bf16.msra.mxu0 %v3691
        %4026 = vmatprep.subr.bf16.mxu0 %v3752
        %4027 = vmatpush2.bf16.msra.mxu0 %v3751
        %4028 = vmatprep.subr.bf16.mxu0 %v3748
        %4029 = vmatpush2.bf16.msra.mxu0 %v3747
        %4030 = vmatprep.subr.bf16.mxu0 %v3744
        %4031 = vmatpush2.bf16.msra.mxu0 %v3743
        %4032 = vmatprep.subr.bf16.mxu0 %v3740
        %4033 = vmatpush2.bf16.msra.mxu0 %v3739
        %4034 = vmatprep.subr.bf16.mxu0 %v3736
        %4035 = vmatpush2.bf16.msra.mxu0 %v3735
        %4036 = vmatprep.subr.bf16.mxu0 %v3732
        %4037 = vmatpush2.bf16.msra.mxu0 %v3731
        %4038 = vmatprep.subr.bf16.mxu0 %v3728
        %4039 = vmatpush2.bf16.msra.mxu0 %v3727
        %4040 = vmatprep.subr.bf16.mxu0 %v3724
        %4041 = vmatpush2.bf16.msra.mxu0 %v3723
        %4042 = vmatprep.mubr.bf16.mxu0 %v3236
        %4043 = vmatmul.mubr.bf16.gmra.mxu0 %v3233
        %v4044 = vpop.f32.mrf.mxu0
        %v4045 = vadd.f32 %v4002, %v4044
        %v4046 = vpop.f32.mrf.mxu0
        %v4047 = vadd.f32 %v4004, %v4046
        %v4048 = vpop.f32.mrf.mxu0
        %v4049 = vadd.f32 %v4006, %v4048
        %v4050 = vpop.f32.mrf.mxu0
        %v4051 = vadd.f32 %v4008, %v4050
        %4052 = vdwg.mxu0
        %v4053 = vld [vmem:[%s10] sm:$0xf]
        %v4055 = vlaneseq
        %v4056 = vshrl.u32 %v4055, 7
        %v4057 = vsub.s32 0, %v4056
        %v4058 = vrot.slane %v4053, %v4057
        %v4059 = vlaneseq
        %v4060 = vshrl.u32 %v4059, 7
        %v4061 = vsub.s32 1, %v4060
        %v4062 = vrot.slane %v4053, %v4061
        %v4063 = vlaneseq
        %v4064 = vshrl.u32 %v4063, 7
        %v4065 = vsub.s32 2, %v4064
        %v4066 = vrot.slane %v4053, %v4065
        %v4067 = vlaneseq
        %v4068 = vshrl.u32 %v4067, 7
        %v4069 = vsub.s32 3, %v4068
        %v4070 = vrot.slane %v4053, %v4069
        %v4075 = vmul.f32 %v3959, %v4058
        %v4076 = vmul.f32 %v3961, %v4062
        %v4077 = vmul.f32 %v4045, %v4066
        %v4078 = vmul.f32 %v4047, %v4070
        %v4079 = vmul.f32 %v3963, %v4058
        %v4080 = vmul.f32 %v3965, %v4062
        %v4081 = vmul.f32 %v4049, %v4066
        %v4082 = vmul.f32 %v4051, %v4070
        %v4083 = vld [vmem:[%s11] sm:$0xf]
        %v4085 = vlaneseq
        %v4086 = vshrl.u32 %v4085, 7
        %v4087 = vsub.s32 0, %v4086
        %v4088 = vrot.slane %v4083, %v4087
        %v4089 = vlaneseq
        %v4090 = vshrl.u32 %v4089, 7
        %v4091 = vsub.s32 1, %v4090
        %v4092 = vrot.slane %v4083, %v4091
        %v4093 = vlaneseq
        %v4094 = vshrl.u32 %v4093, 7
        %v4095 = vsub.s32 2, %v4094
        %v4096 = vrot.slane %v4083, %v4095
        %v4097 = vlaneseq
        %v4098 = vshrl.u32 %v4097, 7
        %v4099 = vsub.s32 3, %v4098
        %v4100 = vrot.slane %v4083, %v4099
        %v4105 = vadd.f32 %v4075, %v4088
        %v4106 = vadd.f32 %v4076, %v4092
        %v4107 = vadd.f32 %v4077, %v4096
        %v4108 = vadd.f32 %v4078, %v4100
        %v4109 = vadd.f32 %v4079, %v4088
        %v4110 = vadd.f32 %v4080, %v4092
        %v4111 = vadd.f32 %v4081, %v4096
        %v4112 = vadd.f32 %v4082, %v4100
        %v4113 = vadd.f32 %v4105, %v489
        %v4114 = vadd.f32 %v4106, %v490
        %v4115 = vadd.f32 %v4107, %v491
        %v4116 = vadd.f32 %v4108, %v492
        %v4117 = vadd.f32 %v4109, %v493
        %v4118 = vadd.f32 %v4110, %v494
        %v4119 = vadd.f32 %v4111, %v495
        %v4120 = vadd.f32 %v4112, %v496
        %vm4121 = vcmp.ge.f32.partialorder %v4113, 0.0
        %vm4122 = vcmp.ge.f32.partialorder %v4114, 0.0
        %vm4123 = vcmp.ge.f32.partialorder %v4115, 0.0
        %vm4124 = vcmp.ge.f32.partialorder %v4116, 0.0
        %vm4125 = vcmp.ge.f32.partialorder %v4117, 0.0
        %vm4126 = vcmp.ge.f32.partialorder %v4118, 0.0
        %vm4127 = vcmp.ge.f32.partialorder %v4119, 0.0
        %vm4128 = vcmp.ge.f32.partialorder %v4120, 0.0
        %v4129 = vld [vmem:[%s12] sm:$0xf]
        %v4131 = vlaneseq
        %v4132 = vshrl.u32 %v4131, 7
        %v4133 = vsub.s32 0, %v4132
        %v4134 = vrot.slane %v4129, %v4133
        %v4135 = vlaneseq
        %v4136 = vshrl.u32 %v4135, 7
        %v4137 = vsub.s32 1, %v4136
        %v4138 = vrot.slane %v4129, %v4137
        %v4139 = vlaneseq
        %v4140 = vshrl.u32 %v4139, 7
        %v4141 = vsub.s32 2, %v4140
        %v4142 = vrot.slane %v4129, %v4141
        %v4143 = vlaneseq
        %v4144 = vshrl.u32 %v4143, 7
        %v4145 = vsub.s32 3, %v4144
        %v4146 = vrot.slane %v4129, %v4145
        %v4151 = vmul.f32 %v4134, %v4113
        %v4152 = vmul.f32 %v4138, %v4114
        %v4153 = vmul.f32 %v4142, %v4115
        %v4154 = vmul.f32 %v4146, %v4116
        %v4155 = vmul.f32 %v4134, %v4117
        %v4156 = vmul.f32 %v4138, %v4118
        %v4157 = vmul.f32 %v4142, %v4119
        %v4158 = vmul.f32 %v4146, %v4120
        %v4159 = vsel %vm4121, %v4113, %v4151
        %v4160 = vsel %vm4122, %v4114, %v4152
        %v4161 = vsel %vm4123, %v4115, %v4153
        %v4162 = vsel %vm4124, %v4116, %v4154
        %v4163 = vsel %vm4125, %v4117, %v4155
        %v4164 = vsel %vm4126, %v4118, %v4156
        %v4165 = vsel %vm4127, %v4119, %v4157
        %v4166 = vsel %vm4128, %v4120, %v4158
        %4167 = vst [vmem:[%s487] sm:$0xff] %v4159
        %4168 = vst [vmem:[%s487 + $0x8] sm:$0xff] %v4160
        %4169 = vst [vmem:[%s487 + $0x10] sm:$0xff] %v4161
        %4170 = vst [vmem:[%s487 + $0x18] sm:$0xff] %v4162
        %4171 = vst [vmem:[%s487 + $0x20] sm:$0xff] %v4163
        %4172 = vst [vmem:[%s487 + $0x28] sm:$0xff] %v4164
        %4173 = vst [vmem:[%s487 + $0x30] sm:$0xff] %v4165
        %4174 = vst [vmem:[%s487 + $0x38] sm:$0xff] %v4166
        %s4175 = sand.u32 %s317, 1
        %s4176 = scalar_lea.sflag [#allocation5], %s4175
        %s4177 = sand.u32 %s317, 1
        %s4178 = smul.addr %s4177, 64
        %s4179 = scalar_lea.vmem [#allocation9], %s4178
        // Predicated region
        $region85: #{tpu_custom_call.1} parent=71 // pred_check
          %p4180 = pneg %p327
        $region86: #{tpu_custom_call.1} parent=71 // pred_check_branch
          %4182 = sbr.rel (%p4180) target = $region88
        $region87: #{tpu_custom_call.1} parent=71 // pred_region
          %s4184 = ssub.s32 1024, 1024
          %4185 = vsyncadd %s4176, %s4184
          %s4186 = smul.addr %s31, 8
          %s4187 = smul.addr %s4186, 128
          %s4188 = scalar_lea.hbm %s13, %s4187
          %s4189 = sshll.u32 %s4179, 4
          %s4190 = int_to_ptr.vmem [resolvable:$true] %s4189
          %4195 = dma.vmem_to_hbm [thread:$0]  %s4190, 1024, %s4188, %s4176, 512, 512, 32
        $region88: #{tpu_custom_call.1} parent=71 // pred_fallthru
          _
      $region72: #{tpu_custom_call.1} parent=5 // pred_fallthru
        _
      %p4196 = scmp.le.s32.totalorder 2, %s26
      // Predicated region
      $region89: #{tpu_custom_call.1} parent=5 // pred_check
        %p4197 = pneg %p4196
      $region90: #{tpu_custom_call.1} parent=5 // pred_check_branch
        %4199 = sbr.rel (%p4197) target = $region92
      $region91: #{tpu_custom_call.1} parent=5 // pred_region
        %s4200 = ssub.s32 %s26, 2
        // Predicated region
        $region93: #{tpu_custom_call.1} parent=91 // pred_check
          %p4201 = pneg %p333
        $region94: #{tpu_custom_call.1} parent=91 // pred_check_branch
          %4203 = sbr.rel (%p4201) target = $region96
        $region95: #{tpu_custom_call.1} parent=91 // pred_region
          %s4204 = sand.u32 %s318, 1
          %s4205 = scalar_lea.sflag [#allocation5], %s4204
          %s4206 = sand.u32 %s318, 1
          %s4207 = smul.addr %s4206, 64
          %s4208 = scalar_lea.vmem [#allocation9], %s4207
          %4209 = dma.done %s4205, 1024
        $region96: #{tpu_custom_call.1} parent=91 // pred_fallthru
          _
      $region92: #{tpu_custom_call.1} parent=5 // pred_fallthru
        _
    $region6: #{tpu_custom_call.1} parent=1 // loop_footer
      %s30 = sadd.s32 1, %s26
    $region7: #{tpu_custom_call.1} parent=1 // loop_footer_branch
      %25 = sbr.rel target = $region3
    $region8: #{tpu_custom_call.1} parent=1 // loop_exit
      _
    %4210 = vsyncpa [#allocation4], 1
    %s4211 = scalar_lea.sflag [#allocation4], 1
    %4212 = vsyncpa %s4211, 1
    %4213 = vsyncpa [#allocation7], 1
    %4214 = vsyncpa [#allocation5], 1
    %s4215 = scalar_lea.sflag [#allocation5], 1
    %4216 = vsyncpa %s4215, 1

</llo_original>
